<compile_context>
chip_gen: v7x
topology: tpu7x:2x2x1
jax: 0.10.0
libtpu: 0.0.40
codegen_flags: <defaults>
</compile_context>

<pallas_src>
import functools

import numpy as np
import jax
import jax.numpy as jnp
from jax import lax
from jax.experimental import pallas as pl
from jax.experimental.pallas import tpu as pltpu


# ----------------------------------------------------------------------- device helpers

def _tpu_kind():
    try:
        return jax.devices()[0].device_kind.lower()
    except Exception:
        return ""


def _m_target():
    """Target rows (M) of the fused matmul per grid step for good MXU cadence."""
    kind = _tpu_kind()
    if "v5e" in kind or "v5 lite" in kind or "v5lite" in kind:
        return 128            # v5e MXU: 4x128^2
    return 256                # v6e / v7x MXU: 2x256^2


def _pick_nb(n, ho, wo, hq, wq, cq, cout, kkc, mm_bytes, m_target):
    """Images per grid step: M = nb*Ho*Wo >= m_target when the batch allows, always
    >= 2 grid steps for pipelining / dual-TC sharding, bounded VMEM footprint."""
    hw = ho * wo
    nb = max(1, -(-m_target // hw))            # ceil(m_target / hw)
    if n >= 2:
        nb = min(nb, n // 2)                   # keep at least 2 grid steps
    nb = max(1, min(nb, n))
    while n % nb:
        nb -= 1

    def footprint(k):
        m = k * hw
        return (2 * k * hq * wq * cq * mm_bytes     # double-buffered input block
                + 2 * kkc * cout * mm_bytes         # weight (buffered)
                + m * kkc * mm_bytes                # im2col / per-tap staging (upper bound)
                + 2 * m * cout * 4)                 # f32 accumulator + output block

    while nb > 1 and footprint(nb) > (24 << 20):
        nb -= 1
        while n % nb:
            nb -= 1
    return nb, footprint(nb)


# ----------------------------------------------------------------------------- kernel

def _fused_sepconv_kernel(x_ref, w_ref, b_ref, o_ref, *,
                          nb, taps, Ho, Wo, Cin, Cout, per_tap, c_last):
    """One grid step = nb images. Depthwise + pointwise + BN + ReLU fused on the MXU.

    x_ref: (nb, Hq, Wq, Cq)   padded (stride-2: phase-packed) NHWC input (matmul dtype)
    w_ref: (K*K*Cin, Cout)    fused dw (x) pw weight with BN scale folded (matmul dtype)
    b_ref: (1, Cout)          folded BN shift (f32)
    o_ref: (nb, Ho*Wo, Cout)  if c_last  (lane axis = Cout)
           (nb, Cout, Ho*Wo)  otherwise  (lane axis = Ho*Wo)
    """
    M = nb * Ho * Wo
    xblk = x_ref[...]                                              # (nb, Hq, Wq, Cq)

    if per_tap:
        # Large-Cin blocks: K*K per-tap accumulating matmuls -> no K*K*Cin im2col slab.
        y = None
        for t, (ro, co, ch) in enumerate(taps):
            xt = xblk[:, ro:ro + Ho, co:co + Wo, ch:ch + Cin].reshape(M, Cin)
            part = jnp.dot(xt, w_ref[t * Cin:(t + 1) * Cin, :],
                           preferred_element_type=jnp.float32)
            y = part if y is None else y + part
    else:
        # Tiny-Cin blocks: im2col so the single contraction (K*K*Cin) feeds the MXU.
        cols = [xblk[:, ro:ro + Ho, co:co + Wo, ch:ch + Cin] for (ro, co, ch) in taps]
        pat = jnp.concatenate(cols, axis=-1).reshape(M, len(taps) * Cin)
        y = jnp.dot(pat, w_ref[...], preferred_element_type=jnp.float32)

    y = jnp.maximum(y + b_ref[...], 0.0)                           # BN shift + ReLU

    if c_last:                                                     # dense vst, no transpose
        o_ref[...] = y.reshape(nb, Ho * Wo, Cout).astype(o_ref.dtype)
    else:                                                          # one transpose of the
        yt = jnp.transpose(y, (1, 0))                              # whole (M, Cout) result
        if nb == 1:
            o_ref[...] = yt.reshape(1, Cout, Ho * Wo).astype(o_ref.dtype)
        else:
            o_ref[...] = jnp.transpose(
                yt.reshape(Cout, nb, Ho * Wo), (1, 0, 2)).astype(o_ref.dtype)


# ----------------------------------------------------------------------------- wrapper

def separable_conv_block(x_nchw, dw_w, pw_w, gamma, beta, run_mean, run_var,
                         *, stride, padding, eps=1e-5,
                         images_per_step=None, matmul_dtype=None):
    """LMNet15c SeparableConv2d* block forward (eval-mode BN), NCHW in / NCHW out.

    x_nchw: (N, Cin, H, W); dw_w: (Cin, 1, K, K) torch depthwise layout; pw_w: (Cout, Cin).
    matmul_dtype defaults to bf16 operands (f32 accumulation) on all TPU generations.
    """
    N, Cin, H, W = x_nchw.shape
    Cout = pw_w.shape[0]
    K = dw_w.shape[-1]
    assert stride in (1, 2), "LMNet15c only uses stride 1 or 2"
    Ho = (H + 2 * padding - K) // stride + 1
    Wo = (W + 2 * padding - K) // stride + 1

    mm_dtype = matmul_dtype if matmul_dtype is not None else jnp.bfloat16
    mm_bytes = np.dtype(mm_dtype).itemsize

    # ---- parameter folding (tiny, wrapper-side) ---------------------------------------
    scale = gamma / jnp.sqrt(run_var + eps)                            # (Cout,)
    shift = (beta - run_mean * scale).reshape(1, Cout).astype(jnp.float32)
    # W_full[(kh,kw,cin), cout] = dw[cin,kh,kw] * pw[cout,cin] * scale[cout]
    dw_khkwc = jnp.transpose(dw_w[:, 0, :, :], (1, 2, 0))              # (K, K, Cin)
    w_full = dw_khkwc[:, :, :, None] * jnp.transpose(pw_w, (1, 0))[None, None, :, :]
    w_full = (w_full * scale[None, None, None, :]).reshape(K * K * Cin, Cout)
    w_full = w_full.astype(mm_dtype)

    # ---- activation layout: NCHW -> NHWC, pad, (stride 2: even/odd phase packing) -----
    x = jnp.transpose(x_nchw, (0, 2, 3, 1))                            # (N, H, W, Cin)
    x = jnp.pad(x, ((0, 0), (padding, padding), (padding, padding), (0, 0)))
    Hp, Wp = H + 2 * padding, W + 2 * padding
    if stride == 1:
        xq = x
        Hq, Wq, Cq = Hp, Wp, Cin
        taps = [(kh, kw, 0) for kh in range(K) for kw in range(K)]
    else:  # stride == 2: pack the 2x2 spatial phases into channels -> contiguous taps.
        if Hp % 2:
            x = jnp.pad(x, ((0, 0), (0, 1), (0, 0), (0, 0)))
            Hp += 1
        if Wp % 2:
            x = jnp.pad(x, ((0, 0), (0, 0), (0, 1), (0, 0)))
            Wp += 1
        xq = x.reshape(N, Hp // 2, 2, Wp // 2, 2, Cin)
        xq = jnp.transpose(xq, (0, 1, 3, 2, 4, 5)).reshape(N, Hp // 2, Wp // 2, 4 * Cin)
        Hq, Wq, Cq = Hp // 2, Wp // 2, 4 * Cin
        taps = [(kh // 2, kw // 2, ((kh % 2) * 2 + (kw % 2)) * Cin)
                for kh in range(K) for kw in range(K)]
    xq = xq.astype(mm_dtype)       # bf16 activations: halves input DMA + staging traffic

    per_tap = Cin >= 128           # per-tap contraction is MXU-efficient only for big Cin
    c_last = Cout >= Ho * Wo       # lane axis of the output = max(Cout, Ho*Wo)

    # ---- images per grid step + derived VMEM limit -------------------------------------
    kkc = K * K * Cin
    if images_per_step is not None:
        nb = max(1, min(int(images_per_step), N))
        while N % nb:
            nb -= 1
        m = nb * Ho * Wo
        fp = (2 * nb * Hq * Wq * Cq * mm_bytes + 2 * kkc * Cout * mm_bytes
              + m * kkc * mm_bytes + 2 * m * Cout * 4)
    else:
        nb, fp = _pick_nb(N, Ho, Wo, Hq, Wq, Cq, Cout, kkc, mm_bytes, _m_target())
    nblocks = N // nb
    vmem_limit = int(min(max(2 * fp + (4 << 20), 16 << 20), 56 << 20))

    kernel = functools.partial(_fused_sepconv_kernel, nb=nb, taps=tuple(taps),
                               Ho=Ho, Wo=Wo, Cin=Cin, Cout=Cout,
                               per_tap=per_tap, c_last=c_last)

    if c_last:
        out_shape = jax.ShapeDtypeStruct((N, Ho * Wo, Cout), x_nchw.dtype)
        out_spec = pl.BlockSpec((nb, Ho * Wo, Cout), lambda g: (g, 0, 0))
    else:
        out_shape = jax.ShapeDtypeStruct((N, Cout, Ho * Wo), x_nchw.dtype)
        out_spec = pl.BlockSpec((nb, Cout, Ho * Wo), lambda g: (g, 0, 0))

    out = pl.pallas_call(
        kernel,
        out_shape=out_shape,
        grid_spec=pltpu.PrefetchScalarGridSpec(
            num_scalar_prefetch=0,
            grid=(nblocks,),
            in_specs=[
                pl.BlockSpec((nb, Hq, Wq, Cq), lambda g: (g, 0, 0, 0)),
                pl.BlockSpec((kkc, Cout), lambda g: (0, 0)),
                pl.BlockSpec((1, Cout), lambda g: (0, 0)),
            ],
            out_specs=out_spec,
        ),
        compiler_params=pltpu.CompilerParams(
            dimension_semantics=("parallel",),
            vmem_limit_bytes=vmem_limit,
        ),
    )(xq, w_full, shift)

    if c_last:
        # Tiny lane-dense slab -> NCHW; negligible XLA transpose (output is small here).
        out = out.reshape(N, Ho, Wo, Cout)
        return jnp.transpose(out, (0, 3, 1, 2))
    # Kernel already emitted NCHW-flat (N, Cout, Ho*Wo): pure reshape.
    return out.reshape(N, Cout, Ho, Wo)


# ------------------------------------------------------------------------- reference

def _reference_block(x, dw_w, pw_w, gamma, beta, run_mean, run_var,
                     *, stride, padding, eps=1e-5):
    """Pure-JAX reference, same semantics as the PyTorch block in eval mode."""
    Cin = x.shape[1]
    y = lax.conv_general_dilated(
        x, dw_w, window_strides=(stride, stride),
        padding=((padding, padding), (padding, padding)),
        feature_group_count=Cin, dimension_numbers=("NCHW", "OIHW", "NCHW"),
        precision=lax.Precision.HIGHEST)
    y = lax.conv_general_dilated(
        y, pw_w[:, :, None, None], window_strides=(1, 1), padding=((0, 0), (0, 0)),
        dimension_numbers=("NCHW", "OIHW", "NCHW"), precision=lax.Precision.HIGHEST)
    scale = gamma / jnp.sqrt(run_var + eps)
    shift = beta - run_mean * scale
    y = y * scale[None, :, None, None] + shift[None, :, None, None]
    return jnp.maximum(y, 0.0)


# ------------------------------------------------------------------------------- main

if __name__ == "__main__":
    key = jax.random.PRNGKey(0)
    N = 2
    # (name, Cin, Cout, H, K, stride, pad) -- channel counts from LMNet15c, spatial at
    # (or capped to) the block's real operating size so the demo stays small.
    cases = [
        ("Sblock4    SeparableConv2d5   64->64   k5 s1 p2", 64, 64, 16, 5, 1, 2),
        ("Sblock1_S2 SeparableConv2dS2   8->16   k3 s2 p1", 8, 16, 16, 3, 2, 1),
        ("Sblock4_S2 SeparableConv2d5S2 64->128  k5 s2 p2", 64, 128, 16, 5, 2, 2),
        ("Sblock5_S2 SeparableConv2d7S2 128->256 k7 s2 p3", 128, 256, 8, 7, 2, 3),
        ("Sblock6    SeparableConv2d   256->256  k3 s1 p1", 256, 256, 4, 3, 1, 1),
    ]

    for (name, Cin, Cout, H, K, S, P) in cases:
        key, kx, kdw, kpw, kg, kb, km, kv = jax.random.split(key, 8)
        x = jax.random.normal(kx, (N, Cin, H, H), jnp.float32)
        dw_w = 0.1 * jax.random.normal(kdw, (Cin, 1, K, K), jnp.float32)
        pw_w = 0.1 * jax.random.normal(kpw, (Cout, Cin), jnp.float32)
        gamma = 1.0 + 0.1 * jax.random.normal(kg, (Cout,), jnp.float32)
        beta = 0.1 * jax.random.normal(kb, (Cout,), jnp.float32)
        run_mean = 0.05 * jax.random.normal(km, (Cout,), jnp.float32)
        run_var = 1.0 + 0.1 * jnp.abs(jax.random.normal(kv, (Cout,), jnp.float32))

        out = separable_conv_block(x, dw_w, pw_w, gamma, beta, run_mean, run_var,
                                   stride=S, padding=P)
        out = jax.block_until_ready(out)

        ref = _reference_block(x, dw_w, pw_w, gamma, beta, run_mean, run_var,
                               stride=S, padding=P)
        Ho = (H + 2 * P - K) // S + 1
        assert out.shape == (N, Cout, Ho, Ho), (name, out.shape)
        err = float(jnp.max(jnp.abs(out - ref)))
        # bf16 MXU operands (f32 accumulation) -> looser-than-f32 but bounded error.
        assert jnp.allclose(out, ref, atol=2.5e-2, rtol=2.5e-2), (name, err)

    print("KERNEL_OK")
</pallas_src>

<mosaic_0001>
module attributes {stable_mosaic.version = 11 : i64} {
  func.func @_fused_sepconv_kernel(%arg0: i32, %arg1: memref<1x20x20x64xbf16, #tpu.memory_space<vmem>>, %arg2: memref<1600x64xbf16, #tpu.memory_space<vmem>>, %arg3: memref<1x64xf32, #tpu.memory_space<vmem>>, %arg4: memref<1x64x256xf32, #tpu.memory_space<vmem>>) attributes {dimension_semantics = [#tpu.dimension_semantics<parallel>], iteration_bounds = array<i64: 2>, scalar_prefetch = 0 : i64, scratch_operands = 0 : i64, tpu.core_type = #tpu.core_type<tc>, window_params = [{transform_indices = @transform_0, window_bounds = array<i64: 1, 20, 20, 64>}, {pipeline_mode = #tpu.pipeline_mode<synchronous>, transform_indices = @transform_1, window_bounds = array<i64: 1600, 64>}, {pipeline_mode = #tpu.pipeline_mode<synchronous>, transform_indices = @transform_2, window_bounds = array<i64: 1, 64>}, {transform_indices = @transform_3, window_bounds = array<i64: 1, 64, 256>}]} {
    %c0 = arith.constant 0 : index
    %c0_0 = arith.constant 0 : index
    %c0_1 = arith.constant 0 : index
    %c0_2 = arith.constant 0 : index
    %0 = vector.load %arg1[%c0, %c0_0, %c0_1, %c0_2] : memref<1x20x20x64xbf16, #tpu.memory_space<vmem>>, vector<1x20x20x64xbf16>
    %1 = vector.extract_strided_slice %0 {offsets = [0, 0, 0, 0], sizes = [1, 16, 16, 64], strides = [1, 1, 1, 1]} : vector<1x20x20x64xbf16> to vector<1x16x16x64xbf16>
    %2 = vector.extract_strided_slice %0 {offsets = [0, 0, 1, 0], sizes = [1, 16, 16, 64], strides = [1, 1, 1, 1]} : vector<1x20x20x64xbf16> to vector<1x16x16x64xbf16>
    %3 = vector.extract_strided_slice %0 {offsets = [0, 0, 2, 0], sizes = [1, 16, 16, 64], strides = [1, 1, 1, 1]} : vector<1x20x20x64xbf16> to vector<1x16x16x64xbf16>
    %4 = vector.extract_strided_slice %0 {offsets = [0, 0, 3, 0], sizes = [1, 16, 16, 64], strides = [1, 1, 1, 1]} : vector<1x20x20x64xbf16> to vector<1x16x16x64xbf16>
    %5 = vector.extract_strided_slice %0 {offsets = [0, 0, 4, 0], sizes = [1, 16, 16, 64], strides = [1, 1, 1, 1]} : vector<1x20x20x64xbf16> to vector<1x16x16x64xbf16>
    %6 = vector.extract_strided_slice %0 {offsets = [0, 1, 0, 0], sizes = [1, 16, 16, 64], strides = [1, 1, 1, 1]} : vector<1x20x20x64xbf16> to vector<1x16x16x64xbf16>
    %7 = vector.extract_strided_slice %0 {offsets = [0, 1, 1, 0], sizes = [1, 16, 16, 64], strides = [1, 1, 1, 1]} : vector<1x20x20x64xbf16> to vector<1x16x16x64xbf16>
    %8 = vector.extract_strided_slice %0 {offsets = [0, 1, 2, 0], sizes = [1, 16, 16, 64], strides = [1, 1, 1, 1]} : vector<1x20x20x64xbf16> to vector<1x16x16x64xbf16>
    %9 = vector.extract_strided_slice %0 {offsets = [0, 1, 3, 0], sizes = [1, 16, 16, 64], strides = [1, 1, 1, 1]} : vector<1x20x20x64xbf16> to vector<1x16x16x64xbf16>
    %10 = vector.extract_strided_slice %0 {offsets = [0, 1, 4, 0], sizes = [1, 16, 16, 64], strides = [1, 1, 1, 1]} : vector<1x20x20x64xbf16> to vector<1x16x16x64xbf16>
    %11 = vector.extract_strided_slice %0 {offsets = [0, 2, 0, 0], sizes = [1, 16, 16, 64], strides = [1, 1, 1, 1]} : vector<1x20x20x64xbf16> to vector<1x16x16x64xbf16>
    %12 = vector.extract_strided_slice %0 {offsets = [0, 2, 1, 0], sizes = [1, 16, 16, 64], strides = [1, 1, 1, 1]} : vector<1x20x20x64xbf16> to vector<1x16x16x64xbf16>
    %13 = vector.extract_strided_slice %0 {offsets = [0, 2, 2, 0], sizes = [1, 16, 16, 64], strides = [1, 1, 1, 1]} : vector<1x20x20x64xbf16> to vector<1x16x16x64xbf16>
    %14 = vector.extract_strided_slice %0 {offsets = [0, 2, 3, 0], sizes = [1, 16, 16, 64], strides = [1, 1, 1, 1]} : vector<1x20x20x64xbf16> to vector<1x16x16x64xbf16>
    %15 = vector.extract_strided_slice %0 {offsets = [0, 2, 4, 0], sizes = [1, 16, 16, 64], strides = [1, 1, 1, 1]} : vector<1x20x20x64xbf16> to vector<1x16x16x64xbf16>
    %16 = vector.extract_strided_slice %0 {offsets = [0, 3, 0, 0], sizes = [1, 16, 16, 64], strides = [1, 1, 1, 1]} : vector<1x20x20x64xbf16> to vector<1x16x16x64xbf16>
    %17 = vector.extract_strided_slice %0 {offsets = [0, 3, 1, 0], sizes = [1, 16, 16, 64], strides = [1, 1, 1, 1]} : vector<1x20x20x64xbf16> to vector<1x16x16x64xbf16>
    %18 = vector.extract_strided_slice %0 {offsets = [0, 3, 2, 0], sizes = [1, 16, 16, 64], strides = [1, 1, 1, 1]} : vector<1x20x20x64xbf16> to vector<1x16x16x64xbf16>
    %19 = vector.extract_strided_slice %0 {offsets = [0, 3, 3, 0], sizes = [1, 16, 16, 64], strides = [1, 1, 1, 1]} : vector<1x20x20x64xbf16> to vector<1x16x16x64xbf16>
    %20 = vector.extract_strided_slice %0 {offsets = [0, 3, 4, 0], sizes = [1, 16, 16, 64], strides = [1, 1, 1, 1]} : vector<1x20x20x64xbf16> to vector<1x16x16x64xbf16>
    %21 = vector.extract_strided_slice %0 {offsets = [0, 4, 0, 0], sizes = [1, 16, 16, 64], strides = [1, 1, 1, 1]} : vector<1x20x20x64xbf16> to vector<1x16x16x64xbf16>
    %22 = vector.extract_strided_slice %0 {offsets = [0, 4, 1, 0], sizes = [1, 16, 16, 64], strides = [1, 1, 1, 1]} : vector<1x20x20x64xbf16> to vector<1x16x16x64xbf16>
    %23 = vector.extract_strided_slice %0 {offsets = [0, 4, 2, 0], sizes = [1, 16, 16, 64], strides = [1, 1, 1, 1]} : vector<1x20x20x64xbf16> to vector<1x16x16x64xbf16>
    %24 = vector.extract_strided_slice %0 {offsets = [0, 4, 3, 0], sizes = [1, 16, 16, 64], strides = [1, 1, 1, 1]} : vector<1x20x20x64xbf16> to vector<1x16x16x64xbf16>
    %25 = vector.extract_strided_slice %0 {offsets = [0, 4, 4, 0], sizes = [1, 16, 16, 64], strides = [1, 1, 1, 1]} : vector<1x20x20x64xbf16> to vector<1x16x16x64xbf16>
    %26 = tpu.concatenate %1, %2, %3, %4, %5, %6, %7, %8, %9, %10, %11, %12, %13, %14, %15, %16 in 3 : vector<1x16x16x64xbf16>, vector<1x16x16x64xbf16>, vector<1x16x16x64xbf16>, vector<1x16x16x64xbf16>, vector<1x16x16x64xbf16>, vector<1x16x16x64xbf16>, vector<1x16x16x64xbf16>, vector<1x16x16x64xbf16>, vector<1x16x16x64xbf16>, vector<1x16x16x64xbf16>, vector<1x16x16x64xbf16>, vector<1x16x16x64xbf16>, vector<1x16x16x64xbf16>, vector<1x16x16x64xbf16>, vector<1x16x16x64xbf16>, vector<1x16x16x64xbf16> -> vector<1x16x16x1024xbf16>
    %27 = tpu.concatenate %17, %18, %19, %20, %21, %22, %23, %24, %25 in 3 : vector<1x16x16x64xbf16>, vector<1x16x16x64xbf16>, vector<1x16x16x64xbf16>, vector<1x16x16x64xbf16>, vector<1x16x16x64xbf16>, vector<1x16x16x64xbf16>, vector<1x16x16x64xbf16>, vector<1x16x16x64xbf16>, vector<1x16x16x64xbf16> -> vector<1x16x16x576xbf16>
    %28 = tpu.concatenate %26, %27 in 3 : vector<1x16x16x1024xbf16>, vector<1x16x16x576xbf16> -> vector<1x16x16x1600xbf16>
    %29 = vector.shape_cast %28 : vector<1x16x16x1600xbf16> to vector<256x1600xbf16>
    %c0_3 = arith.constant 0 : index
    %c0_4 = arith.constant 0 : index
    %30 = vector.load %arg2[%c0_3, %c0_4] : memref<1600x64xbf16, #tpu.memory_space<vmem>>, vector<1600x64xbf16>
    %cst = arith.constant dense<0.000000e+00> : vector<256x64xf32>
    %31 = tpu.matmul %29, %30, %cst {dimension_numbers = #tpu.dot_dimension_numbers<[1], [0], [0], [1], [0, 0, 1, 1], [], []>} : vector<256x1600xbf16>, vector<1600x64xbf16>, vector<256x64xf32> -> vector<256x64xf32>
    %c0_5 = arith.constant 0 : index
    %c0_6 = arith.constant 0 : index
    %32 = vector.load %arg3[%c0_5, %c0_6] : memref<1x64xf32, #tpu.memory_space<vmem>>, vector<1x64xf32>
    %33 = vector.broadcast %32 : vector<1x64xf32> to vector<256x64xf32>
    %34 = arith.addf %31, %33 : vector<256x64xf32>
    %cst_7 = arith.constant 0.000000e+00 : f32
    %35 = vector.broadcast %cst_7 : f32 to vector<256x64xf32>
    %36 = arith.maximumf %34, %35 : vector<256x64xf32>
    %37 = tpu.transpose %36, [1, 0] : vector<256x64xf32> -> vector<64x256xf32>
    %38 = vector.shape_cast %37 : vector<64x256xf32> to vector<1x64x256xf32>
    %c0_8 = arith.constant 0 : index
    %c0_9 = arith.constant 0 : index
    %c0_10 = arith.constant 0 : index
    %39 = vector.load %arg4[%c0_8, %c0_9, %c0_10] : memref<1x64x256xf32, #tpu.memory_space<vmem>>, vector<1x64x256xf32>
    tpu.vector_store %arg4[%c0_8, %c0_9, %c0_10], %38 {strides = array<i32>} : memref<1x64x256xf32, #tpu.memory_space<vmem>>, vector<1x64x256xf32>,
    return
  }
  func.func @transform_0(%arg0: i32) -> (i32, i32, i32, i32) {
    %c0_i32 = arith.constant 0 : i32
    %c0_i32_0 = arith.constant 0 : i32
    %c0_i32_1 = arith.constant 0 : i32
    %c0_i32_2 = arith.constant 0 : i32
    return %arg0, %c0_i32, %c0_i32_0, %c0_i32_1 : i32, i32, i32, i32
  }
  func.func @transform_1(%arg0: i32) -> (i32, i32) {
    %c0_i32 = arith.constant 0 : i32
    %c0_i32_0 = arith.constant 0 : i32
    %c0_i32_1 = arith.constant 0 : i32
    return %c0_i32, %c0_i32_0 : i32, i32
  }
  func.func @transform_2(%arg0: i32) -> (i32, i32) {
    %c0_i32 = arith.constant 0 : i32
    %c0_i32_0 = arith.constant 0 : i32
    %c0_i32_1 = arith.constant 0 : i32
    return %c0_i32, %c0_i32_0 : i32, i32
  }
  func.func @transform_3(%arg0: i32) -> (i32, i32, i32) {
    %c0_i32 = arith.constant 0 : i32
    %c0_i32_0 = arith.constant 0 : i32
    %c0_i32_1 = arith.constant 0 : i32
    return %arg0, %c0_i32, %c0_i32_0 : i32, i32, i32
  }
}

</mosaic_0001>

<llo_original>
// kernel: tpu_custom_call.1
$region0: #{tpu_custom_call.1}
  #allocation0 [shape = 'u32[]', space=smem, size = 0x4, offset = 0x4, fixed_abs, tag = 'smem constant byte address 0x4 - core index']
  #allocation1 [shape = 'u32[144,128]{1,0:T(1,128)}', space=vmem, size = 0x12000, scoped, tag = 'internal scratch']
  %s0 = inlined_call_operand.vmem [shape: bf16[2,20,20,64], index: 0, kind: input, shape index: {}]
  %s1 = inlined_call_operand.vmem [shape: bf16[1600,64], index: 1, kind: input, shape index: {}]
  %s2 = inlined_call_operand.vmem [shape: f32[1,64], index: 2, kind: input, shape index: {}]
  %s3 = inlined_call_operand.hbm [shape: f32[2,64,256], index: 3, kind: output, shape index: {}]
  %s4 = sld [smem:[#allocation0]]
  $region45: #{tpu_custom_call.1} parent=0
    _
  %s6 = ssub.s32 1, %s4
  %s7 = scalar_select 0, %s6, %s4
  $region1: #{tpu_custom_call.1} parent=0
    #allocation2 [shape = 'u8[131072]{0}', space=vmem, size = 0x20000, scoped, tag = 'output window, operand 0']
    #allocation3 [shape = 's32[2]{0}', space=sflag, size = 0x8, scoped, tag = 'scoped memory for tpu_custom_call.1']
    %8 = vsyncpa [#allocation3], 0
    %s9 = scalar_lea.sflag [#allocation3], 1
    %10 = vsyncpa %s9, 0
    loop: start=0, step=1, limit=4
    $region2: #{tpu_custom_call.1} parent=1 // loop_pre_header
      _
    $region3: #{tpu_custom_call.1} parent=1 // loop_header
      %s12 = sphi 0, %s16
      %p13 = scmp.ge.s32.totalorder %s12, 4
      %s22 = sphi 0, %s24
      %s25 = sphi 0, %s22
      %s26 = sphi 0, %s25
      %s42 = sphi 0, %s26
      %s46 = sphi 0, %s46
      %s48 = sphi 0, %s46
      %s49 = sphi 0, %s48
      %s63 = sphi 0, %s49
      %s67 = sphi 0, %s67
      %s69 = sphi 0, %s67
      %s70 = sphi 0, %s69
      %s84 = sphi 0, %s70
      %s90 = sphi 0, %s92
      %s93 = sphi 0, %s90
      %s94 = sphi 0, %s93
      %s110 = sphi 0, %s94
    $region4: #{tpu_custom_call.1} parent=1 // loop_header_branch
      %15 = sbr.rel (%p13) target = $region8
    $region5: #{tpu_custom_call.1} parent=1 // loop_body
      %s17 = ssub.s32 %s12, 1
      %s18 = ssub.s32 %s12, 2
      %s19 = sadd.s32 %s12, 1
      %s20 = ssub.s32 %s12, %s19
      %p21 = scmp.eq.s32.totalorder %s20, 0
      %s23 = sadd.s32 %s22, 1
      %s24 = scalar_select %p21, %s22, %s23
      %p27 = pneg %p21
      %p28 = scmp.eq.s32.totalorder %s12, 1
      %p29 = por %p27, %p28
      %p30 = scmp.ne.s32.totalorder %s22, %s25
      %p31 = scmp.eq.s32.totalorder %s12, 0
      %p32 = por %p30, %p31
      %p33 = scmp.ne.s32.totalorder %s22, %s25
      %p34 = scmp.eq.s32.totalorder %s17, 1
      %p35 = por %p33, %p34
      %p36 = scmp.ne.s32.totalorder %s25, %s26
      %p37 = scmp.eq.s32.totalorder %s17, 0
      %p38 = por %p36, %p37
      %p39 = scmp.ne.s32.totalorder %s25, %s26
      %p40 = scmp.eq.s32.totalorder %s18, 1
      %p41 = por %p39, %p40
      %p43 = scmp.ne.s32.totalorder %s26, %s42
      %p44 = scmp.eq.s32.totalorder %s18, 0
      %p45 = por %p43, %p44
      %s47 = sadd.s32 %s46, 1
      %p50 = scmp.eq.s32.totalorder %s12, 1
      %p51 = scmp.ne.s32.totalorder %s46, %s48
      %p52 = scmp.eq.s32.totalorder %s12, 0
      %p53 = por %p51, %p52
      %p54 = scmp.ne.s32.totalorder %s46, %s48
      %p55 = scmp.eq.s32.totalorder %s17, 1
      %p56 = por %p54, %p55
      %p57 = scmp.ne.s32.totalorder %s48, %s49
      %p58 = scmp.eq.s32.totalorder %s17, 0
      %p59 = por %p57, %p58
      %p60 = scmp.ne.s32.totalorder %s48, %s49
      %p61 = scmp.eq.s32.totalorder %s18, 1
      %p62 = por %p60, %p61
      %p64 = scmp.ne.s32.totalorder %s49, %s63
      %p65 = scmp.eq.s32.totalorder %s18, 0
      %p66 = por %p64, %p65
      %s68 = sadd.s32 %s67, 1
      %p71 = scmp.eq.s32.totalorder %s12, 1
      %p72 = scmp.ne.s32.totalorder %s67, %s69
      %p73 = scmp.eq.s32.totalorder %s12, 0
      %p74 = por %p72, %p73
      %p75 = scmp.ne.s32.totalorder %s67, %s69
      %p76 = scmp.eq.s32.totalorder %s17, 1
      %p77 = por %p75, %p76
      %p78 = scmp.ne.s32.totalorder %s69, %s70
      %p79 = scmp.eq.s32.totalorder %s17, 0
      %p80 = por %p78, %p79
      %p81 = scmp.ne.s32.totalorder %s69, %s70
      %p82 = scmp.eq.s32.totalorder %s18, 1
      %p83 = por %p81, %p82
      %p85 = scmp.ne.s32.totalorder %s70, %s84
      %p86 = scmp.eq.s32.totalorder %s18, 0
      %p87 = por %p85, %p86
      %s88 = ssub.s32 %s12, %s19
      %p89 = scmp.eq.s32.totalorder %s88, 0
      %s91 = sadd.s32 %s90, 1
      %s92 = scalar_select %p89, %s90, %s91
      %p95 = pneg %p89
      %p96 = scmp.eq.s32.totalorder %s12, 1
      %p97 = por %p95, %p96
      %p98 = scmp.ne.s32.totalorder %s90, %s93
      %p99 = scmp.eq.s32.totalorder %s12, 0
      %p100 = por %p98, %p99
      %p101 = scmp.ne.s32.totalorder %s90, %s93
      %p102 = scmp.eq.s32.totalorder %s17, 1
      %p103 = por %p101, %p102
      %p104 = scmp.ne.s32.totalorder %s93, %s94
      %p105 = scmp.eq.s32.totalorder %s17, 0
      %p106 = por %p104, %p105
      %p107 = scmp.ne.s32.totalorder %s93, %s94
      %p108 = scmp.eq.s32.totalorder %s18, 1
      %p109 = por %p107, %p108
      %p111 = scmp.ne.s32.totalorder %s94, %s110
      %p112 = scmp.eq.s32.totalorder %s18, 0
      %p113 = por %p111, %p112
      %p114 = scmp.le.s32.totalorder 1, %s12
      %p115 = scmp.lt.s32.totalorder %s12, 3
      %p116 = pnand %p114, %p115
      %p117 = pneg %p116
      // Predicated region
      $region9: #{tpu_custom_call.1} parent=5 // pred_check
        _
      $region10: #{tpu_custom_call.1} parent=5 // pred_check_branch
        %119 = sbr.rel (%p116) target = $region12
      $region11: #{tpu_custom_call.1} parent=5 // pred_region
        %s120 = ssub.s32 %s12, 1
        // Predicated region
        $region13: #{tpu_custom_call.1} parent=11 // pred_check
          %p121 = pneg %p59
        $region14: #{tpu_custom_call.1} parent=11 // pred_check_branch
          %123 = sbr.rel (%p121) target = $region16
        $region15: #{tpu_custom_call.1} parent=11 // pred_region
          _
        $region16: #{tpu_custom_call.1} parent=11 // pred_fallthru
          _
        // Predicated region
        $region17: #{tpu_custom_call.1} parent=11 // pred_check
          %p124 = pneg %p80
        $region18: #{tpu_custom_call.1} parent=11 // pred_check_branch
          %126 = sbr.rel (%p124) target = $region20
        $region19: #{tpu_custom_call.1} parent=11 // pred_region
          _
        $region20: #{tpu_custom_call.1} parent=11 // pred_fallthru
          _
      $region12: #{tpu_custom_call.1} parent=5 // pred_fallthru
        _
      %p127 = scmp.lt.s32.totalorder %s12, 2
      // Predicated region
      $region21: #{tpu_custom_call.1} parent=5 // pred_check
        %p128 = pneg %p127
      $region22: #{tpu_custom_call.1} parent=5 // pred_check_branch
        %130 = sbr.rel (%p128) target = $region24
      $region23: #{tpu_custom_call.1} parent=5 // pred_region
        // Predicated region
        $region25: #{tpu_custom_call.1} parent=23 // pred_check
          %p131 = pneg %p32
        $region26: #{tpu_custom_call.1} parent=23 // pred_check_branch
          %133 = sbr.rel (%p131) target = $region28
        $region27: #{tpu_custom_call.1} parent=23 // pred_region
          %p134 = scmp.lt.s32.totalorder %s12, 1
          %s135 = scalar_select %p134, %s12, 1
          %s136 = smul.addr %s135, 60
          %s137 = smul.addr %s136, 4
          %s138 = scalar_lea.vmem %s0, %s137
        $region28: #{tpu_custom_call.1} parent=23 // pred_fallthru
          _
      $region24: #{tpu_custom_call.1} parent=5 // pred_fallthru
        _
      %p139 = scmp.le.s32.totalorder 1, %s12
      %p140 = scmp.lt.s32.totalorder %s12, 3
      %p141 = pnand %p139, %p140
      %p142 = pneg %p141
      // Predicated region
      $region29: #{tpu_custom_call.1} parent=5 // pred_check
        _
      $region30: #{tpu_custom_call.1} parent=5 // pred_check_branch
        %144 = sbr.rel (%p141) target = $region32
      $region31: #{tpu_custom_call.1} parent=5 // pred_region
        %s145 = ssub.s32 %s12, 1
        %p146 = scmp.lt.s32.totalorder %s17, 1
        %s147 = scalar_select %p146, %s17, 1
        %s148 = smul.addr %s147, 60
        %s149 = smul.addr %s148, 4
        %s150 = scalar_lea.vmem %s0, %s149
        %p151 = pneg %p38
        %p152 = pneg %p35
        %p153 = pneg %p59
        %p154 = pneg %p56
        %p155 = pneg %p80
        %p156 = pneg %p77
        %p157 = pneg %p106
        %p158 = pneg %p103
        %s159 = sand.u32 %s93, 1
        %s160 = scalar_lea.sflag [#allocation3], %s159
        %s161 = sand.u32 %s93, 1
        %s162 = smul.addr %s161, 128
        %s163 = scalar_lea.vmem [#allocation2], %s162
        %p164 = scmp.lt.s32.totalorder %s17, 1
        %s165 = scalar_select %p164, %s17, 1
        %s166 = smul.addr %s165, 60
        %s167 = smul.addr %s166, 4
        %s168 = scalar_lea.vmem %s0, %s167
        %v170 = vld [vmem:[%s168] sm:$0xf]
        %v171 = vld [vmem:[%s168 + $0x4] sm:$0xf]
        %v172 = vld [vmem:[%s168 + $0x8] sm:$0x3]
        %v173 = vld [vmem:[%s168 + $0xc] sm:$0xf]
        %v174 = vld [vmem:[%s168 + $0x10] sm:$0xf]
        %v175 = vld [vmem:[%s168 + $0x14] sm:$0x3]
        %v176 = vld [vmem:[%s168 + $0x18] sm:$0xf]
        %v177 = vld [vmem:[%s168 + $0x1c] sm:$0xf]
        %v178 = vld [vmem:[%s168 + $0x20] sm:$0x3]
        %v179 = vld [vmem:[%s168 + $0x24] sm:$0xf]
        %v180 = vld [vmem:[%s168 + $0x28] sm:$0xf]
        %v181 = vld [vmem:[%s168 + $0x2c] sm:$0x3]
        %v182 = vld [vmem:[%s168 + $0x30] sm:$0xf]
        %v183 = vld [vmem:[%s168 + $0x34] sm:$0xf]
        %v184 = vld [vmem:[%s168 + $0x38] sm:$0x3]
        %v185 = vld [vmem:[%s168 + $0x3c] sm:$0xf]
        %v186 = vld [vmem:[%s168 + $0x40] sm:$0xf]
        %v187 = vld [vmem:[%s168 + $0x44] sm:$0x3]
        %v188 = vld [vmem:[%s168 + $0x48] sm:$0xf]
        %v189 = vld [vmem:[%s168 + $0x4c] sm:$0xf]
        %v190 = vld [vmem:[%s168 + $0x50] sm:$0x3]
        %v191 = vld [vmem:[%s168 + $0x54] sm:$0xf]
        %v192 = vld [vmem:[%s168 + $0x58] sm:$0xf]
        %v193 = vld [vmem:[%s168 + $0x5c] sm:$0x3]
        %v194 = vld [vmem:[%s168 + $0x60] sm:$0xf]
        %v195 = vld [vmem:[%s168 + $0x64] sm:$0xf]
        %v196 = vld [vmem:[%s168 + $0x68] sm:$0x3]
        %v197 = vld [vmem:[%s168 + $0x6c] sm:$0xf]
        %v198 = vld [vmem:[%s168 + $0x70] sm:$0xf]
        %v199 = vld [vmem:[%s168 + $0x74] sm:$0x3]
        %v200 = vld [vmem:[%s168 + $0x78] sm:$0xf]
        %v201 = vld [vmem:[%s168 + $0x7c] sm:$0xf]
        %v202 = vld [vmem:[%s168 + $0x80] sm:$0x3]
        %v203 = vld [vmem:[%s168 + $0x84] sm:$0xf]
        %v204 = vld [vmem:[%s168 + $0x88] sm:$0xf]
        %v205 = vld [vmem:[%s168 + $0x8c] sm:$0x3]
        %v206 = vld [vmem:[%s168 + $0x90] sm:$0xf]
        %v207 = vld [vmem:[%s168 + $0x94] sm:$0xf]
        %v208 = vld [vmem:[%s168 + $0x98] sm:$0x3]
        %v209 = vld [vmem:[%s168 + $0x9c] sm:$0xf]
        %v210 = vld [vmem:[%s168 + $0xa0] sm:$0xf]
        %v211 = vld [vmem:[%s168 + $0xa4] sm:$0x3]
        %v212 = vld [vmem:[%s168 + $0xa8] sm:$0xf]
        %v213 = vld [vmem:[%s168 + $0xac] sm:$0xf]
        %v214 = vld [vmem:[%s168 + $0xb0] sm:$0x3]
        %v215 = vld [vmem:[%s168 + $0xb4] sm:$0xf]
        %v216 = vld [vmem:[%s168 + $0xb8] sm:$0xf]
        %v217 = vld [vmem:[%s168 + $0xbc] sm:$0x3]
        %v218 = vld [vmem:[%s168 + $0xc0] sm:$0xf]
        %v219 = vld [vmem:[%s168 + $0xc4] sm:$0xf]
        %v220 = vld [vmem:[%s168 + $0xc8] sm:$0x3]
        %v221 = vld [vmem:[%s168 + $0xcc] sm:$0xf]
        %v222 = vld [vmem:[%s168 + $0xd0] sm:$0xf]
        %v223 = vld [vmem:[%s168 + $0xd4] sm:$0x3]
        %v224 = vld [vmem:[%s168 + $0xd8] sm:$0xf]
        %v225 = vld [vmem:[%s168 + $0xdc] sm:$0xf]
        %v226 = vld [vmem:[%s168 + $0xe0] sm:$0x3]
        %v227 = vld [vmem:[%s168 + $0xe4] sm:$0xf]
        %v228 = vld [vmem:[%s168 + $0xe8] sm:$0xf]
        %v229 = vld [vmem:[%s168 + $0xec] sm:$0x3]
        %v262 = vunpack.c.l.b16 %v170
        %v263 = vunpack.c.l.b16 %v171
        %v264 = vunpack.c.l.b16 %v173
        %v265 = vunpack.c.l.b16 %v174
        %v266 = vunpack.c.l.b16 %v176
        %v267 = vunpack.c.l.b16 %v177
        %v268 = vunpack.c.l.b16 %v179
        %v269 = vunpack.c.l.b16 %v180
        %v270 = vunpack.c.l.b16 %v182
        %v271 = vunpack.c.l.b16 %v183
        %v272 = vunpack.c.l.b16 %v185
        %v273 = vunpack.c.l.b16 %v186
        %v274 = vunpack.c.l.b16 %v188
        %v275 = vunpack.c.l.b16 %v189
        %v276 = vunpack.c.l.b16 %v191
        %v277 = vunpack.c.l.b16 %v192
        %v278 = vunpack.c.l.b16 %v194
        %v279 = vunpack.c.l.b16 %v195
        %v280 = vunpack.c.l.b16 %v197
        %v281 = vunpack.c.l.b16 %v198
        %v282 = vunpack.c.l.b16 %v200
        %v283 = vunpack.c.l.b16 %v201
        %v284 = vunpack.c.l.b16 %v203
        %v285 = vunpack.c.l.b16 %v204
        %v286 = vunpack.c.l.b16 %v206
        %v287 = vunpack.c.l.b16 %v207
        %v288 = vunpack.c.l.b16 %v209
        %v289 = vunpack.c.l.b16 %v210
        %v290 = vunpack.c.l.b16 %v212
        %v291 = vunpack.c.l.b16 %v213
        %v292 = vunpack.c.l.b16 %v215
        %v293 = vunpack.c.l.b16 %v216
        %v294 = vpack.c.b16 %v263, %v262
        %v295 = vpack.c.b16 %v265, %v264
        %v296 = vpack.c.b16 %v267, %v266
        %v297 = vpack.c.b16 %v269, %v268
        %v298 = vpack.c.b16 %v271, %v270
        %v299 = vpack.c.b16 %v273, %v272
        %v300 = vpack.c.b16 %v275, %v274
        %v301 = vpack.c.b16 %v277, %v276
        %v302 = vpack.c.b16 %v279, %v278
        %v303 = vpack.c.b16 %v281, %v280
        %v304 = vpack.c.b16 %v283, %v282
        %v305 = vpack.c.b16 %v285, %v284
        %v306 = vpack.c.b16 %v287, %v286
        %v307 = vpack.c.b16 %v289, %v288
        %v308 = vpack.c.b16 %v291, %v290
        %v309 = vpack.c.b16 %v293, %v292
        %v326 = vunpack.c.l.b16 %v172
        %v327 = vunpack.c.l.b16 %v175
        %v328 = vunpack.c.l.b16 %v178
        %v329 = vunpack.c.l.b16 %v181
        %v330 = vunpack.c.l.b16 %v184
        %v331 = vunpack.c.l.b16 %v187
        %v332 = vunpack.c.l.b16 %v190
        %v333 = vunpack.c.l.b16 %v193
        %v334 = vunpack.c.l.b16 %v196
        %v335 = vunpack.c.l.b16 %v199
        %v336 = vunpack.c.l.b16 %v202
        %v337 = vunpack.c.l.b16 %v205
        %v338 = vunpack.c.l.b16 %v208
        %v339 = vunpack.c.l.b16 %v211
        %v340 = vunpack.c.l.b16 %v214
        %v341 = vunpack.c.l.b16 %v217
        %v342 = vpack.c.b16 %v326, %v326
        %v343 = vpack.c.b16 %v327, %v327
        %v344 = vpack.c.b16 %v328, %v328
        %v345 = vpack.c.b16 %v329, %v329
        %v346 = vpack.c.b16 %v330, %v330
        %v347 = vpack.c.b16 %v331, %v331
        %v348 = vpack.c.b16 %v332, %v332
        %v349 = vpack.c.b16 %v333, %v333
        %v350 = vpack.c.b16 %v334, %v334
        %v351 = vpack.c.b16 %v335, %v335
        %v352 = vpack.c.b16 %v336, %v336
        %v353 = vpack.c.b16 %v337, %v337
        %v354 = vpack.c.b16 %v338, %v338
        %v355 = vpack.c.b16 %v339, %v339
        %v356 = vpack.c.b16 %v340, %v340
        %v357 = vpack.c.b16 %v341, %v341
        %vm358 = vsmask.f32 7424
        %v360 = vshrl.u32 %v294, 16
        %v362 = vshll.u32 %v294, 16
        %v364 = vrot.slane %v362, 1
        %v365 = vor.u32 %v360, %v364
        %v367 = vshll.u32 %v342, 16
        %v369 = vrot.slane %v367, 1
        %v370 = vsel %vm358, %v365, %v369
        %v372 = vshrl.u32 %v295, 16
        %v374 = vshll.u32 %v295, 16
        %v376 = vrot.slane %v374, 1
        %v377 = vor.u32 %v372, %v376
        %v379 = vshll.u32 %v343, 16
        %v381 = vrot.slane %v379, 1
        %v382 = vsel %vm358, %v377, %v381
        %v384 = vshrl.u32 %v296, 16
        %v386 = vshll.u32 %v296, 16
        %v388 = vrot.slane %v386, 1
        %v389 = vor.u32 %v384, %v388
        %v391 = vshll.u32 %v344, 16
        %v393 = vrot.slane %v391, 1
        %v394 = vsel %vm358, %v389, %v393
        %v396 = vshrl.u32 %v297, 16
        %v398 = vshll.u32 %v297, 16
        %v400 = vrot.slane %v398, 1
        %v401 = vor.u32 %v396, %v400
        %v403 = vshll.u32 %v345, 16
        %v405 = vrot.slane %v403, 1
        %v406 = vsel %vm358, %v401, %v405
        %v408 = vshrl.u32 %v298, 16
        %v410 = vshll.u32 %v298, 16
        %v412 = vrot.slane %v410, 1
        %v413 = vor.u32 %v408, %v412
        %v415 = vshll.u32 %v346, 16
        %v417 = vrot.slane %v415, 1
        %v418 = vsel %vm358, %v413, %v417
        %v420 = vshrl.u32 %v299, 16
        %v422 = vshll.u32 %v299, 16
        %v424 = vrot.slane %v422, 1
        %v425 = vor.u32 %v420, %v424
        %v427 = vshll.u32 %v347, 16
        %v429 = vrot.slane %v427, 1
        %v430 = vsel %vm358, %v425, %v429
        %v432 = vshrl.u32 %v300, 16
        %v434 = vshll.u32 %v300, 16
        %v436 = vrot.slane %v434, 1
        %v437 = vor.u32 %v432, %v436
        %v439 = vshll.u32 %v348, 16
        %v441 = vrot.slane %v439, 1
        %v442 = vsel %vm358, %v437, %v441
        %v444 = vshrl.u32 %v301, 16
        %v446 = vshll.u32 %v301, 16
        %v448 = vrot.slane %v446, 1
        %v449 = vor.u32 %v444, %v448
        %v451 = vshll.u32 %v349, 16
        %v453 = vrot.slane %v451, 1
        %v454 = vsel %vm358, %v449, %v453
        %v456 = vshrl.u32 %v302, 16
        %v458 = vshll.u32 %v302, 16
        %v460 = vrot.slane %v458, 1
        %v461 = vor.u32 %v456, %v460
        %v463 = vshll.u32 %v350, 16
        %v465 = vrot.slane %v463, 1
        %v466 = vsel %vm358, %v461, %v465
        %v468 = vshrl.u32 %v303, 16
        %v470 = vshll.u32 %v303, 16
        %v472 = vrot.slane %v470, 1
        %v473 = vor.u32 %v468, %v472
        %v475 = vshll.u32 %v351, 16
        %v477 = vrot.slane %v475, 1
        %v478 = vsel %vm358, %v473, %v477
        %v480 = vshrl.u32 %v304, 16
        %v482 = vshll.u32 %v304, 16
        %v484 = vrot.slane %v482, 1
        %v485 = vor.u32 %v480, %v484
        %v487 = vshll.u32 %v352, 16
        %v489 = vrot.slane %v487, 1
        %v490 = vsel %vm358, %v485, %v489
        %v492 = vshrl.u32 %v305, 16
        %v494 = vshll.u32 %v305, 16
        %v496 = vrot.slane %v494, 1
        %v497 = vor.u32 %v492, %v496
        %v499 = vshll.u32 %v353, 16
        %v501 = vrot.slane %v499, 1
        %v502 = vsel %vm358, %v497, %v501
        %v504 = vshrl.u32 %v306, 16
        %v506 = vshll.u32 %v306, 16
        %v508 = vrot.slane %v506, 1
        %v509 = vor.u32 %v504, %v508
        %v511 = vshll.u32 %v354, 16
        %v513 = vrot.slane %v511, 1
        %v514 = vsel %vm358, %v509, %v513
        %v516 = vshrl.u32 %v307, 16
        %v518 = vshll.u32 %v307, 16
        %v520 = vrot.slane %v518, 1
        %v521 = vor.u32 %v516, %v520
        %v523 = vshll.u32 %v355, 16
        %v525 = vrot.slane %v523, 1
        %v526 = vsel %vm358, %v521, %v525
        %v528 = vshrl.u32 %v308, 16
        %v530 = vshll.u32 %v308, 16
        %v532 = vrot.slane %v530, 1
        %v533 = vor.u32 %v528, %v532
        %v535 = vshll.u32 %v356, 16
        %v537 = vrot.slane %v535, 1
        %v538 = vsel %vm358, %v533, %v537
        %v540 = vshrl.u32 %v309, 16
        %v542 = vshll.u32 %v309, 16
        %v544 = vrot.slane %v542, 1
        %v545 = vor.u32 %v540, %v544
        %v547 = vshll.u32 %v357, 16
        %v549 = vrot.slane %v547, 1
        %v550 = vsel %vm358, %v545, %v549
        %551 = vrot.lane.b32.xlu0 %v370, 64
        %v552 = vpop.permute.xlu0 %551
        %553 = vrot.lane.b32.xlu0 %v382, 64
        %v554 = vpop.permute.xlu0 %553
        %555 = vrot.lane.b32.xlu0 %v394, 64
        %v556 = vpop.permute.xlu0 %555
        %557 = vrot.lane.b32.xlu0 %v406, 64
        %v558 = vpop.permute.xlu0 %557
        %559 = vrot.lane.b32.xlu0 %v418, 64
        %v560 = vpop.permute.xlu0 %559
        %561 = vrot.lane.b32.xlu0 %v430, 64
        %v562 = vpop.permute.xlu0 %561
        %563 = vrot.lane.b32.xlu0 %v442, 64
        %v564 = vpop.permute.xlu0 %563
        %565 = vrot.lane.b32.xlu0 %v454, 64
        %v566 = vpop.permute.xlu0 %565
        %567 = vrot.lane.b32.xlu0 %v466, 64
        %v568 = vpop.permute.xlu0 %567
        %569 = vrot.lane.b32.xlu0 %v478, 64
        %v570 = vpop.permute.xlu0 %569
        %571 = vrot.lane.b32.xlu0 %v490, 64
        %v572 = vpop.permute.xlu0 %571
        %573 = vrot.lane.b32.xlu0 %v502, 64
        %v574 = vpop.permute.xlu0 %573
        %575 = vrot.lane.b32.xlu0 %v514, 64
        %v576 = vpop.permute.xlu0 %575
        %577 = vrot.lane.b32.xlu0 %v526, 64
        %v578 = vpop.permute.xlu0 %577
        %579 = vrot.lane.b32.xlu0 %v538, 64
        %v580 = vpop.permute.xlu0 %579
        %581 = vrot.lane.b32.xlu0 %v550, 64
        %v582 = vpop.permute.xlu0 %581
        %vm583 = vcmask 1046528
        %v584 = vrot.slane %v294, 1
        %v585 = vrot.slane %v342, 1
        %v586 = vsel %vm583, %v584, %v585
        %v587 = vrot.slane %v295, 1
        %v588 = vrot.slane %v343, 1
        %v589 = vsel %vm583, %v587, %v588
        %v590 = vrot.slane %v296, 1
        %v591 = vrot.slane %v344, 1
        %v592 = vsel %vm583, %v590, %v591
        %v593 = vrot.slane %v297, 1
        %v594 = vrot.slane %v345, 1
        %v595 = vsel %vm583, %v593, %v594
        %v596 = vrot.slane %v298, 1
        %v597 = vrot.slane %v346, 1
        %v598 = vsel %vm583, %v596, %v597
        %v599 = vrot.slane %v299, 1
        %v600 = vrot.slane %v347, 1
        %v601 = vsel %vm583, %v599, %v600
        %v602 = vrot.slane %v300, 1
        %v603 = vrot.slane %v348, 1
        %v604 = vsel %vm583, %v602, %v603
        %v605 = vrot.slane %v301, 1
        %v606 = vrot.slane %v349, 1
        %v607 = vsel %vm583, %v605, %v606
        %v608 = vrot.slane %v302, 1
        %v609 = vrot.slane %v350, 1
        %v610 = vsel %vm583, %v608, %v609
        %v611 = vrot.slane %v303, 1
        %v612 = vrot.slane %v351, 1
        %v613 = vsel %vm583, %v611, %v612
        %v614 = vrot.slane %v304, 1
        %v615 = vrot.slane %v352, 1
        %v616 = vsel %vm583, %v614, %v615
        %v617 = vrot.slane %v305, 1
        %v618 = vrot.slane %v353, 1
        %v619 = vsel %vm583, %v617, %v618
        %v620 = vrot.slane %v306, 1
        %v621 = vrot.slane %v354, 1
        %v622 = vsel %vm583, %v620, %v621
        %v623 = vrot.slane %v307, 1
        %v624 = vrot.slane %v355, 1
        %v625 = vsel %vm583, %v623, %v624
        %v626 = vrot.slane %v308, 1
        %v627 = vrot.slane %v356, 1
        %v628 = vsel %vm583, %v626, %v627
        %v629 = vrot.slane %v309, 1
        %v630 = vrot.slane %v357, 1
        %v631 = vsel %vm583, %v629, %v630
        %vm632 = vsmask.f32 6400
        %v633 = vrot.slane %v360, 1
        %v634 = vrot.slane %v362, 2
        %v635 = vor.u32 %v633, %v634
        %v636 = vshrl.u32 %v342, 16
        %v638 = vrot.slane %v636, 1
        %v639 = vrot.slane %v367, 2
        %v640 = vor.u32 %v638, %v639
        %v641 = vsel %vm632, %v635, %v640
        %v642 = vrot.slane %v372, 1
        %v643 = vrot.slane %v374, 2
        %v644 = vor.u32 %v642, %v643
        %v645 = vshrl.u32 %v343, 16
        %v647 = vrot.slane %v645, 1
        %v648 = vrot.slane %v379, 2
        %v649 = vor.u32 %v647, %v648
        %v650 = vsel %vm632, %v644, %v649
        %v651 = vrot.slane %v384, 1
        %v652 = vrot.slane %v386, 2
        %v653 = vor.u32 %v651, %v652
        %v654 = vshrl.u32 %v344, 16
        %v656 = vrot.slane %v654, 1
        %v657 = vrot.slane %v391, 2
        %v658 = vor.u32 %v656, %v657
        %v659 = vsel %vm632, %v653, %v658
        %v660 = vrot.slane %v396, 1
        %v661 = vrot.slane %v398, 2
        %v662 = vor.u32 %v660, %v661
        %v663 = vshrl.u32 %v345, 16
        %v665 = vrot.slane %v663, 1
        %v666 = vrot.slane %v403, 2
        %v667 = vor.u32 %v665, %v666
        %v668 = vsel %vm632, %v662, %v667
        %v669 = vrot.slane %v408, 1
        %v670 = vrot.slane %v410, 2
        %v671 = vor.u32 %v669, %v670
        %v672 = vshrl.u32 %v346, 16
        %v674 = vrot.slane %v672, 1
        %v675 = vrot.slane %v415, 2
        %v676 = vor.u32 %v674, %v675
        %v677 = vsel %vm632, %v671, %v676
        %v678 = vrot.slane %v420, 1
        %v679 = vrot.slane %v422, 2
        %v680 = vor.u32 %v678, %v679
        %v681 = vshrl.u32 %v347, 16
        %v683 = vrot.slane %v681, 1
        %v684 = vrot.slane %v427, 2
        %v685 = vor.u32 %v683, %v684
        %v686 = vsel %vm632, %v680, %v685
        %v687 = vrot.slane %v432, 1
        %v688 = vrot.slane %v434, 2
        %v689 = vor.u32 %v687, %v688
        %v690 = vshrl.u32 %v348, 16
        %v692 = vrot.slane %v690, 1
        %v693 = vrot.slane %v439, 2
        %v694 = vor.u32 %v692, %v693
        %v695 = vsel %vm632, %v689, %v694
        %v696 = vrot.slane %v444, 1
        %v697 = vrot.slane %v446, 2
        %v698 = vor.u32 %v696, %v697
        %v699 = vshrl.u32 %v349, 16
        %v701 = vrot.slane %v699, 1
        %v702 = vrot.slane %v451, 2
        %v703 = vor.u32 %v701, %v702
        %v704 = vsel %vm632, %v698, %v703
        %v705 = vrot.slane %v456, 1
        %v706 = vrot.slane %v458, 2
        %v707 = vor.u32 %v705, %v706
        %v708 = vshrl.u32 %v350, 16
        %v710 = vrot.slane %v708, 1
        %v711 = vrot.slane %v463, 2
        %v712 = vor.u32 %v710, %v711
        %v713 = vsel %vm632, %v707, %v712
        %v714 = vrot.slane %v468, 1
        %v715 = vrot.slane %v470, 2
        %v716 = vor.u32 %v714, %v715
        %v717 = vshrl.u32 %v351, 16
        %v719 = vrot.slane %v717, 1
        %v720 = vrot.slane %v475, 2
        %v721 = vor.u32 %v719, %v720
        %v722 = vsel %vm632, %v716, %v721
        %v723 = vrot.slane %v480, 1
        %v724 = vrot.slane %v482, 2
        %v725 = vor.u32 %v723, %v724
        %v726 = vshrl.u32 %v352, 16
        %v728 = vrot.slane %v726, 1
        %v729 = vrot.slane %v487, 2
        %v730 = vor.u32 %v728, %v729
        %v731 = vsel %vm632, %v725, %v730
        %v732 = vrot.slane %v492, 1
        %v733 = vrot.slane %v494, 2
        %v734 = vor.u32 %v732, %v733
        %v735 = vshrl.u32 %v353, 16
        %v737 = vrot.slane %v735, 1
        %v738 = vrot.slane %v499, 2
        %v739 = vor.u32 %v737, %v738
        %v740 = vsel %vm632, %v734, %v739
        %v741 = vrot.slane %v504, 1
        %v742 = vrot.slane %v506, 2
        %v743 = vor.u32 %v741, %v742
        %v744 = vshrl.u32 %v354, 16
        %v746 = vrot.slane %v744, 1
        %v747 = vrot.slane %v511, 2
        %v748 = vor.u32 %v746, %v747
        %v749 = vsel %vm632, %v743, %v748
        %v750 = vrot.slane %v516, 1
        %v751 = vrot.slane %v518, 2
        %v752 = vor.u32 %v750, %v751
        %v753 = vshrl.u32 %v355, 16
        %v755 = vrot.slane %v753, 1
        %v756 = vrot.slane %v523, 2
        %v757 = vor.u32 %v755, %v756
        %v758 = vsel %vm632, %v752, %v757
        %v759 = vrot.slane %v528, 1
        %v760 = vrot.slane %v530, 2
        %v761 = vor.u32 %v759, %v760
        %v762 = vshrl.u32 %v356, 16
        %v764 = vrot.slane %v762, 1
        %v765 = vrot.slane %v535, 2
        %v766 = vor.u32 %v764, %v765
        %v767 = vsel %vm632, %v761, %v766
        %v768 = vrot.slane %v540, 1
        %v769 = vrot.slane %v542, 2
        %v770 = vor.u32 %v768, %v769
        %v771 = vshrl.u32 %v357, 16
        %v773 = vrot.slane %v771, 1
        %v774 = vrot.slane %v547, 2
        %v775 = vor.u32 %v773, %v774
        %v776 = vsel %vm632, %v770, %v775
        %777 = vrot.lane.b32.xlu0 %v641, 64
        %v778 = vpop.permute.xlu0 %777
        %779 = vrot.lane.b32.xlu0 %v650, 64
        %v780 = vpop.permute.xlu0 %779
        %781 = vrot.lane.b32.xlu0 %v659, 64
        %v782 = vpop.permute.xlu0 %781
        %783 = vrot.lane.b32.xlu0 %v668, 64
        %v784 = vpop.permute.xlu0 %783
        %785 = vrot.lane.b32.xlu0 %v677, 64
        %v786 = vpop.permute.xlu0 %785
        %787 = vrot.lane.b32.xlu0 %v686, 64
        %v788 = vpop.permute.xlu0 %787
        %789 = vrot.lane.b32.xlu0 %v695, 64
        %v790 = vpop.permute.xlu0 %789
        %791 = vrot.lane.b32.xlu0 %v704, 64
        %v792 = vpop.permute.xlu0 %791
        %793 = vrot.lane.b32.xlu0 %v713, 64
        %v794 = vpop.permute.xlu0 %793
        %795 = vrot.lane.b32.xlu0 %v722, 64
        %v796 = vpop.permute.xlu0 %795
        %797 = vrot.lane.b32.xlu0 %v731, 64
        %v798 = vpop.permute.xlu0 %797
        %799 = vrot.lane.b32.xlu0 %v740, 64
        %v800 = vpop.permute.xlu0 %799
        %801 = vrot.lane.b32.xlu0 %v749, 64
        %v802 = vpop.permute.xlu0 %801
        %803 = vrot.lane.b32.xlu0 %v758, 64
        %v804 = vpop.permute.xlu0 %803
        %805 = vrot.lane.b32.xlu0 %v767, 64
        %v806 = vpop.permute.xlu0 %805
        %807 = vrot.lane.b32.xlu0 %v776, 64
        %v808 = vpop.permute.xlu0 %807
        %vm809 = vcmask 1045504
        %v810 = vrot.slane %v294, 2
        %v811 = vrot.slane %v342, 2
        %v812 = vsel %vm809, %v810, %v811
        %v813 = vrot.slane %v295, 2
        %v814 = vrot.slane %v343, 2
        %v815 = vsel %vm809, %v813, %v814
        %v816 = vrot.slane %v296, 2
        %v817 = vrot.slane %v344, 2
        %v818 = vsel %vm809, %v816, %v817
        %v819 = vrot.slane %v297, 2
        %v820 = vrot.slane %v345, 2
        %v821 = vsel %vm809, %v819, %v820
        %v822 = vrot.slane %v298, 2
        %v823 = vrot.slane %v346, 2
        %v824 = vsel %vm809, %v822, %v823
        %v825 = vrot.slane %v299, 2
        %v826 = vrot.slane %v347, 2
        %v827 = vsel %vm809, %v825, %v826
        %v828 = vrot.slane %v300, 2
        %v829 = vrot.slane %v348, 2
        %v830 = vsel %vm809, %v828, %v829
        %v831 = vrot.slane %v301, 2
        %v832 = vrot.slane %v349, 2
        %v833 = vsel %vm809, %v831, %v832
        %v834 = vrot.slane %v302, 2
        %v835 = vrot.slane %v350, 2
        %v836 = vsel %vm809, %v834, %v835
        %v837 = vrot.slane %v303, 2
        %v838 = vrot.slane %v351, 2
        %v839 = vsel %vm809, %v837, %v838
        %v840 = vrot.slane %v304, 2
        %v841 = vrot.slane %v352, 2
        %v842 = vsel %vm809, %v840, %v841
        %v843 = vrot.slane %v305, 2
        %v844 = vrot.slane %v353, 2
        %v845 = vsel %vm809, %v843, %v844
        %v846 = vrot.slane %v306, 2
        %v847 = vrot.slane %v354, 2
        %v848 = vsel %vm809, %v846, %v847
        %v849 = vrot.slane %v307, 2
        %v850 = vrot.slane %v355, 2
        %v851 = vsel %vm809, %v849, %v850
        %v852 = vrot.slane %v308, 2
        %v853 = vrot.slane %v356, 2
        %v854 = vsel %vm809, %v852, %v853
        %v855 = vrot.slane %v309, 2
        %v856 = vrot.slane %v357, 2
        %v857 = vsel %vm809, %v855, %v856
        %v860 = vunpack.c.l.b16 %v218
        %v861 = vunpack.c.l.b16 %v219
        %v862 = vpack.c.b16 %v861, %v860
        %863 = vrot.lane.b32.xlu0 %v295, 64
        %v864 = vpop.permute.xlu0 %863
        %865 = vrot.lane.b32.xlu0 %v296, 64
        %v866 = vpop.permute.xlu0 %865
        %867 = vrot.lane.b32.xlu0 %v297, 64
        %v868 = vpop.permute.xlu0 %867
        %869 = vrot.lane.b32.xlu0 %v298, 64
        %v870 = vpop.permute.xlu0 %869
        %871 = vrot.lane.b32.xlu0 %v299, 64
        %v872 = vpop.permute.xlu0 %871
        %873 = vrot.lane.b32.xlu0 %v300, 64
        %v874 = vpop.permute.xlu0 %873
        %875 = vrot.lane.b32.xlu0 %v301, 64
        %v876 = vpop.permute.xlu0 %875
        %877 = vrot.lane.b32.xlu0 %v302, 64
        %v878 = vpop.permute.xlu0 %877
        %879 = vrot.lane.b32.xlu0 %v303, 64
        %v880 = vpop.permute.xlu0 %879
        %881 = vrot.lane.b32.xlu0 %v304, 64
        %v882 = vpop.permute.xlu0 %881
        %883 = vrot.lane.b32.xlu0 %v305, 64
        %v884 = vpop.permute.xlu0 %883
        %885 = vrot.lane.b32.xlu0 %v306, 64
        %v886 = vpop.permute.xlu0 %885
        %887 = vrot.lane.b32.xlu0 %v307, 64
        %v888 = vpop.permute.xlu0 %887
        %889 = vrot.lane.b32.xlu0 %v308, 64
        %v890 = vpop.permute.xlu0 %889
        %891 = vrot.lane.b32.xlu0 %v309, 64
        %v892 = vpop.permute.xlu0 %891
        %893 = vrot.lane.b32.xlu0 %v862, 64
        %v894 = vpop.permute.xlu0 %893
        %v896 = vunpack.c.l.b16 %v220
        %v897 = vpack.c.b16 %v896, %v896
        %v899 = vshrl.u32 %v862, 16
        %v901 = vshll.u32 %v862, 16
        %v903 = vrot.slane %v901, 1
        %v904 = vor.u32 %v899, %v903
        %v906 = vshll.u32 %v897, 16
        %v908 = vrot.slane %v906, 1
        %v909 = vsel %vm358, %v904, %v908
        %v910 = vrot.slane %v862, 1
        %v911 = vrot.slane %v897, 1
        %v912 = vsel %vm583, %v910, %v911
        %913 = vrot.lane.b32.xlu0 %v589, 64
        %v914 = vpop.permute.xlu0 %913
        %915 = vrot.lane.b32.xlu0 %v592, 64
        %v916 = vpop.permute.xlu0 %915
        %917 = vrot.lane.b32.xlu0 %v595, 64
        %v918 = vpop.permute.xlu0 %917
        %919 = vrot.lane.b32.xlu0 %v598, 64
        %v920 = vpop.permute.xlu0 %919
        %921 = vrot.lane.b32.xlu0 %v601, 64
        %v922 = vpop.permute.xlu0 %921
        %923 = vrot.lane.b32.xlu0 %v604, 64
        %v924 = vpop.permute.xlu0 %923
        %925 = vrot.lane.b32.xlu0 %v607, 64
        %v926 = vpop.permute.xlu0 %925
        %927 = vrot.lane.b32.xlu0 %v610, 64
        %v928 = vpop.permute.xlu0 %927
        %929 = vrot.lane.b32.xlu0 %v613, 64
        %v930 = vpop.permute.xlu0 %929
        %931 = vrot.lane.b32.xlu0 %v616, 64
        %v932 = vpop.permute.xlu0 %931
        %933 = vrot.lane.b32.xlu0 %v619, 64
        %v934 = vpop.permute.xlu0 %933
        %935 = vrot.lane.b32.xlu0 %v622, 64
        %v936 = vpop.permute.xlu0 %935
        %937 = vrot.lane.b32.xlu0 %v625, 64
        %v938 = vpop.permute.xlu0 %937
        %939 = vrot.lane.b32.xlu0 %v628, 64
        %v940 = vpop.permute.xlu0 %939
        %941 = vrot.lane.b32.xlu0 %v631, 64
        %v942 = vpop.permute.xlu0 %941
        %943 = vrot.lane.b32.xlu0 %v912, 64
        %v944 = vpop.permute.xlu0 %943
        %v945 = vrot.slane %v899, 1
        %v946 = vrot.slane %v901, 2
        %v947 = vor.u32 %v945, %v946
        %v948 = vshrl.u32 %v897, 16
        %v950 = vrot.slane %v948, 1
        %v951 = vrot.slane %v906, 2
        %v952 = vor.u32 %v950, %v951
        %v953 = vsel %vm632, %v947, %v952
        %v954 = vrot.slane %v862, 2
        %v955 = vrot.slane %v897, 2
        %v956 = vsel %vm809, %v954, %v955
        %957 = vrot.lane.b32.xlu0 %v815, 64
        %v958 = vpop.permute.xlu0 %957
        %959 = vrot.lane.b32.xlu0 %v818, 64
        %v960 = vpop.permute.xlu0 %959
        %961 = vrot.lane.b32.xlu0 %v821, 64
        %v962 = vpop.permute.xlu0 %961
        %963 = vrot.lane.b32.xlu0 %v824, 64
        %v964 = vpop.permute.xlu0 %963
        %965 = vrot.lane.b32.xlu0 %v827, 64
        %v966 = vpop.permute.xlu0 %965
        %967 = vrot.lane.b32.xlu0 %v830, 64
        %v968 = vpop.permute.xlu0 %967
        %969 = vrot.lane.b32.xlu0 %v833, 64
        %v970 = vpop.permute.xlu0 %969
        %971 = vrot.lane.b32.xlu0 %v836, 64
        %v972 = vpop.permute.xlu0 %971
        %973 = vrot.lane.b32.xlu0 %v839, 64
        %v974 = vpop.permute.xlu0 %973
        %975 = vrot.lane.b32.xlu0 %v842, 64
        %v976 = vpop.permute.xlu0 %975
        %977 = vrot.lane.b32.xlu0 %v845, 64
        %v978 = vpop.permute.xlu0 %977
        %979 = vrot.lane.b32.xlu0 %v848, 64
        %v980 = vpop.permute.xlu0 %979
        %981 = vrot.lane.b32.xlu0 %v851, 64
        %v982 = vpop.permute.xlu0 %981
        %983 = vrot.lane.b32.xlu0 %v854, 64
        %v984 = vpop.permute.xlu0 %983
        %985 = vrot.lane.b32.xlu0 %v857, 64
        %v986 = vpop.permute.xlu0 %985
        %987 = vrot.lane.b32.xlu0 %v956, 64
        %v988 = vpop.permute.xlu0 %987
        %v991 = vunpack.c.l.b16 %v221
        %v992 = vunpack.c.l.b16 %v222
        %v993 = vpack.c.b16 %v992, %v991
        %v995 = vunpack.c.l.b16 %v223
        %v996 = vpack.c.b16 %v995, %v995
        %v998 = vshrl.u32 %v993, 16
        %v1000 = vshll.u32 %v993, 16
        %v1002 = vrot.slane %v1000, 1
        %v1003 = vor.u32 %v998, %v1002
        %v1005 = vshll.u32 %v996, 16
        %v1007 = vrot.slane %v1005, 1
        %v1008 = vsel %vm358, %v1003, %v1007
        %1009 = vrot.lane.b32.xlu0 %v909, 64
        %v1010 = vpop.permute.xlu0 %1009
        %1011 = vrot.lane.b32.xlu0 %v1008, 64
        %v1012 = vpop.permute.xlu0 %1011
        %v1013 = vrot.slane %v993, 1
        %v1014 = vrot.slane %v996, 1
        %v1015 = vsel %vm583, %v1013, %v1014
        %v1016 = vrot.slane %v998, 1
        %v1017 = vrot.slane %v1000, 2
        %v1018 = vor.u32 %v1016, %v1017
        %v1019 = vshrl.u32 %v996, 16
        %v1021 = vrot.slane %v1019, 1
        %v1022 = vrot.slane %v1005, 2
        %v1023 = vor.u32 %v1021, %v1022
        %v1024 = vsel %vm632, %v1018, %v1023
        %1025 = vrot.lane.b32.xlu0 %v953, 64
        %v1026 = vpop.permute.xlu0 %1025
        %1027 = vrot.lane.b32.xlu0 %v1024, 64
        %v1028 = vpop.permute.xlu0 %1027
        %v1029 = vrot.slane %v993, 2
        %v1030 = vrot.slane %v996, 2
        %v1031 = vsel %vm809, %v1029, %v1030
        %v1034 = vunpack.c.l.b16 %v224
        %v1035 = vunpack.c.l.b16 %v225
        %v1036 = vpack.c.b16 %v1035, %v1034
        %1037 = vrot.lane.b32.xlu0 %v993, 64
        %v1038 = vpop.permute.xlu0 %1037
        %1039 = vrot.lane.b32.xlu0 %v1036, 64
        %v1040 = vpop.permute.xlu0 %1039
        %vm1041 = vcmask 523264
        %v1043 = vsel %vm1041, %v294, %v552
        %v1046 = vsel %vm1041, %v295, %v554
        %v1049 = vsel %vm1041, %v296, %v556
        %v1052 = vsel %vm1041, %v297, %v558
        %v1055 = vsel %vm1041, %v298, %v560
        %v1058 = vsel %vm1041, %v299, %v562
        %v1061 = vsel %vm1041, %v300, %v564
        %v1064 = vsel %vm1041, %v301, %v566
        %v1067 = vsel %vm1041, %v302, %v568
        %v1070 = vsel %vm1041, %v303, %v570
        %v1073 = vsel %vm1041, %v304, %v572
        %v1076 = vsel %vm1041, %v305, %v574
        %v1079 = vsel %vm1041, %v306, %v576
        %v1082 = vsel %vm1041, %v307, %v578
        %v1085 = vsel %vm1041, %v308, %v580
        %v1088 = vsel %vm1041, %v309, %v582
        %v1092 = vsel %vm1041, %v586, %v778
        %v1096 = vsel %vm1041, %v589, %v780
        %v1100 = vsel %vm1041, %v592, %v782
        %v1104 = vsel %vm1041, %v595, %v784
        %v1108 = vsel %vm1041, %v598, %v786
        %v1112 = vsel %vm1041, %v601, %v788
        %v1116 = vsel %vm1041, %v604, %v790
        %v1120 = vsel %vm1041, %v607, %v792
        %v1124 = vsel %vm1041, %v610, %v794
        %v1128 = vsel %vm1041, %v613, %v796
        %v1132 = vsel %vm1041, %v616, %v798
        %v1136 = vsel %vm1041, %v619, %v800
        %v1140 = vsel %vm1041, %v622, %v802
        %v1144 = vsel %vm1041, %v625, %v804
        %v1148 = vsel %vm1041, %v628, %v806
        %v1152 = vsel %vm1041, %v631, %v808
        %v1156 = vsel %vm1041, %v812, %v864
        %v1160 = vsel %vm1041, %v815, %v866
        %v1164 = vsel %vm1041, %v818, %v868
        %v1168 = vsel %vm1041, %v821, %v870
        %v1172 = vsel %vm1041, %v824, %v872
        %v1176 = vsel %vm1041, %v827, %v874
        %v1180 = vsel %vm1041, %v830, %v876
        %v1184 = vsel %vm1041, %v833, %v878
        %v1188 = vsel %vm1041, %v836, %v880
        %v1192 = vsel %vm1041, %v839, %v882
        %v1196 = vsel %vm1041, %v842, %v884
        %v1200 = vsel %vm1041, %v845, %v886
        %v1204 = vsel %vm1041, %v848, %v888
        %v1208 = vsel %vm1041, %v851, %v890
        %v1212 = vsel %vm1041, %v854, %v892
        %v1216 = vsel %vm1041, %v857, %v894
        %v1220 = vsel %vm1041, %v382, %v914
        %v1224 = vsel %vm1041, %v394, %v916
        %v1228 = vsel %vm1041, %v406, %v918
        %v1232 = vsel %vm1041, %v418, %v920
        %v1236 = vsel %vm1041, %v430, %v922
        %v1240 = vsel %vm1041, %v442, %v924
        %v1244 = vsel %vm1041, %v454, %v926
        %v1248 = vsel %vm1041, %v466, %v928
        %v1252 = vsel %vm1041, %v478, %v930
        %v1256 = vsel %vm1041, %v490, %v932
        %v1260 = vsel %vm1041, %v502, %v934
        %v1264 = vsel %vm1041, %v514, %v936
        %v1268 = vsel %vm1041, %v526, %v938
        %v1272 = vsel %vm1041, %v538, %v940
        %v1276 = vsel %vm1041, %v550, %v942
        %v1280 = vsel %vm1041, %v909, %v944
        %v1284 = vsel %vm1041, %v650, %v958
        %v1288 = vsel %vm1041, %v659, %v960
        %v1292 = vsel %vm1041, %v668, %v962
        %v1296 = vsel %vm1041, %v677, %v964
        %v1300 = vsel %vm1041, %v686, %v966
        %v1304 = vsel %vm1041, %v695, %v968
        %v1308 = vsel %vm1041, %v704, %v970
        %v1312 = vsel %vm1041, %v713, %v972
        %v1316 = vsel %vm1041, %v722, %v974
        %v1320 = vsel %vm1041, %v731, %v976
        %v1324 = vsel %vm1041, %v740, %v978
        %v1328 = vsel %vm1041, %v749, %v980
        %v1332 = vsel %vm1041, %v758, %v982
        %v1336 = vsel %vm1041, %v767, %v984
        %v1340 = vsel %vm1041, %v776, %v986
        %v1344 = vsel %vm1041, %v953, %v988
        %v1347 = vsel %vm1041, %v862, %v1010
        %v1350 = vsel %vm1041, %v993, %v1012
        %v1354 = vsel %vm1041, %v912, %v1026
        %v1358 = vsel %vm1041, %v1015, %v1028
        %v1362 = vsel %vm1041, %v956, %v1038
        %v1366 = vsel %vm1041, %v1031, %v1040
        %v1369 = vunpack.c.l.b16 %v226
        %v1370 = vpack.c.b16 %v1369, %v1369
        %v1372 = vshrl.u32 %v1036, 16
        %v1374 = vshll.u32 %v1036, 16
        %v1376 = vrot.slane %v1374, 1
        %v1377 = vor.u32 %v1372, %v1376
        %v1379 = vshll.u32 %v1370, 16
        %v1381 = vrot.slane %v1379, 1
        %v1382 = vsel %vm358, %v1377, %v1381
        %v1383 = vshrl.u32 %v1370, 16
        %1385 = vrot.lane.b32.xlu0 %v663, 64
        %v1386 = vpop.permute.xlu0 %1385
        %1387 = vrot.lane.b32.xlu0 %v672, 64
        %v1388 = vpop.permute.xlu0 %1387
        %1389 = vrot.lane.b32.xlu0 %v681, 64
        %v1390 = vpop.permute.xlu0 %1389
        %1391 = vrot.lane.b32.xlu0 %v690, 64
        %v1392 = vpop.permute.xlu0 %1391
        %1393 = vrot.lane.b32.xlu0 %v699, 64
        %v1394 = vpop.permute.xlu0 %1393
        %1395 = vrot.lane.b32.xlu0 %v708, 64
        %v1396 = vpop.permute.xlu0 %1395
        %1397 = vrot.lane.b32.xlu0 %v717, 64
        %v1398 = vpop.permute.xlu0 %1397
        %1399 = vrot.lane.b32.xlu0 %v726, 64
        %v1400 = vpop.permute.xlu0 %1399
        %1401 = vrot.lane.b32.xlu0 %v735, 64
        %v1402 = vpop.permute.xlu0 %1401
        %1403 = vrot.lane.b32.xlu0 %v744, 64
        %v1404 = vpop.permute.xlu0 %1403
        %1405 = vrot.lane.b32.xlu0 %v753, 64
        %v1406 = vpop.permute.xlu0 %1405
        %1407 = vrot.lane.b32.xlu0 %v762, 64
        %v1408 = vpop.permute.xlu0 %1407
        %1409 = vrot.lane.b32.xlu0 %v771, 64
        %v1410 = vpop.permute.xlu0 %1409
        %1411 = vrot.lane.b32.xlu0 %v948, 64
        %v1412 = vpop.permute.xlu0 %1411
        %1413 = vrot.lane.b32.xlu0 %v1019, 64
        %v1414 = vpop.permute.xlu0 %1413
        %1415 = vrot.lane.b32.xlu0 %v1382, 64
        %v1416 = vpop.permute.xlu0 %1415
        %1417 = vrot.lane.b32.xlu0 %v1383, 64
        %v1418 = vpop.permute.xlu0 %1417
        %v1419 = vrot.slane %v1036, 1
        %v1420 = vrot.slane %v1370, 1
        %v1421 = vsel %vm583, %v1419, %v1420
        %v1422 = vrot.slane %v1372, 1
        %v1423 = vrot.slane %v1374, 2
        %v1424 = vor.u32 %v1422, %v1423
        %v1425 = vrot.slane %v1383, 1
        %v1426 = vrot.slane %v1379, 2
        %v1427 = vor.u32 %v1425, %v1426
        %v1428 = vsel %vm632, %v1424, %v1427
        %1429 = vrot.lane.b32.xlu0 %v665, 64
        %v1430 = vpop.permute.xlu0 %1429
        %1431 = vrot.lane.b32.xlu0 %v674, 64
        %v1432 = vpop.permute.xlu0 %1431
        %1433 = vrot.lane.b32.xlu0 %v683, 64
        %v1434 = vpop.permute.xlu0 %1433
        %1435 = vrot.lane.b32.xlu0 %v692, 64
        %v1436 = vpop.permute.xlu0 %1435
        %1437 = vrot.lane.b32.xlu0 %v701, 64
        %v1438 = vpop.permute.xlu0 %1437
        %1439 = vrot.lane.b32.xlu0 %v710, 64
        %v1440 = vpop.permute.xlu0 %1439
        %1441 = vrot.lane.b32.xlu0 %v719, 64
        %v1442 = vpop.permute.xlu0 %1441
        %1443 = vrot.lane.b32.xlu0 %v728, 64
        %v1444 = vpop.permute.xlu0 %1443
        %1445 = vrot.lane.b32.xlu0 %v737, 64
        %v1446 = vpop.permute.xlu0 %1445
        %1447 = vrot.lane.b32.xlu0 %v746, 64
        %v1448 = vpop.permute.xlu0 %1447
        %1449 = vrot.lane.b32.xlu0 %v755, 64
        %v1450 = vpop.permute.xlu0 %1449
        %1451 = vrot.lane.b32.xlu0 %v764, 64
        %v1452 = vpop.permute.xlu0 %1451
        %1453 = vrot.lane.b32.xlu0 %v773, 64
        %v1454 = vpop.permute.xlu0 %1453
        %1455 = vrot.lane.b32.xlu0 %v950, 64
        %v1456 = vpop.permute.xlu0 %1455
        %1457 = vrot.lane.b32.xlu0 %v1021, 64
        %v1458 = vpop.permute.xlu0 %1457
        %1459 = vrot.lane.b32.xlu0 %v1428, 64
        %v1460 = vpop.permute.xlu0 %1459
        %1461 = vrot.lane.b32.xlu0 %v1425, 64
        %v1462 = vpop.permute.xlu0 %1461
        %v1465 = vunpack.c.l.b16 %v227
        %v1466 = vunpack.c.l.b16 %v228
        %v1467 = vpack.c.b16 %v1466, %v1465
        %v1468 = vrot.slane %v408, 7
        %v1469 = vor.u32 %v1468, %v410
        %v1470 = vrot.slane %v420, 7
        %v1471 = vor.u32 %v1470, %v422
        %v1472 = vrot.slane %v432, 7
        %v1473 = vor.u32 %v1472, %v434
        %v1474 = vrot.slane %v444, 7
        %v1475 = vor.u32 %v1474, %v446
        %v1476 = vrot.slane %v456, 7
        %v1477 = vor.u32 %v1476, %v458
        %v1478 = vrot.slane %v468, 7
        %v1479 = vor.u32 %v1478, %v470
        %v1480 = vrot.slane %v480, 7
        %v1481 = vor.u32 %v1480, %v482
        %v1482 = vrot.slane %v492, 7
        %v1483 = vor.u32 %v1482, %v494
        %v1484 = vrot.slane %v504, 7
        %v1485 = vor.u32 %v1484, %v506
        %v1486 = vrot.slane %v516, 7
        %v1487 = vor.u32 %v1486, %v518
        %v1488 = vrot.slane %v528, 7
        %v1489 = vor.u32 %v1488, %v530
        %v1490 = vrot.slane %v540, 7
        %v1491 = vor.u32 %v1490, %v542
        %v1492 = vrot.slane %v899, 7
        %v1493 = vor.u32 %v1492, %v901
        %v1494 = vrot.slane %v998, 7
        %v1495 = vor.u32 %v1494, %v1000
        %v1496 = vrot.slane %v1372, 7
        %v1497 = vor.u32 %v1496, %v1374
        %v1499 = vshrl.u32 %v1467, 16
        %v1501 = vrot.slane %v1499, 7
        %v1502 = vshll.u32 %v1467, 16
        %v1504 = vor.u32 %v1501, %v1502
        %v1506 = vunpack.c.l.b16 %v229
        %v1507 = vpack.c.b16 %v1506, %v1506
        %1508 = vrot.lane.b32.xlu0 %v346, 64
        %v1509 = vpop.permute.xlu0 %1508
        %1510 = vrot.lane.b32.xlu0 %v347, 64
        %v1511 = vpop.permute.xlu0 %1510
        %1512 = vrot.lane.b32.xlu0 %v348, 64
        %v1513 = vpop.permute.xlu0 %1512
        %1514 = vrot.lane.b32.xlu0 %v349, 64
        %v1515 = vpop.permute.xlu0 %1514
        %1516 = vrot.lane.b32.xlu0 %v350, 64
        %v1517 = vpop.permute.xlu0 %1516
        %1518 = vrot.lane.b32.xlu0 %v351, 64
        %v1519 = vpop.permute.xlu0 %1518
        %1520 = vrot.lane.b32.xlu0 %v352, 64
        %v1521 = vpop.permute.xlu0 %1520
        %1522 = vrot.lane.b32.xlu0 %v353, 64
        %v1523 = vpop.permute.xlu0 %1522
        %1524 = vrot.lane.b32.xlu0 %v354, 64
        %v1525 = vpop.permute.xlu0 %1524
        %1526 = vrot.lane.b32.xlu0 %v355, 64
        %v1527 = vpop.permute.xlu0 %1526
        %1528 = vrot.lane.b32.xlu0 %v356, 64
        %v1529 = vpop.permute.xlu0 %1528
        %1530 = vrot.lane.b32.xlu0 %v357, 64
        %v1531 = vpop.permute.xlu0 %1530
        %1532 = vrot.lane.b32.xlu0 %v897, 64
        %v1533 = vpop.permute.xlu0 %1532
        %1534 = vrot.lane.b32.xlu0 %v996, 64
        %v1535 = vpop.permute.xlu0 %1534
        %1536 = vrot.lane.b32.xlu0 %v1370, 64
        %v1537 = vpop.permute.xlu0 %1536
        %1538 = vrot.lane.b32.xlu0 %v1467, 64
        %v1539 = vpop.permute.xlu0 %1538
        %1540 = vrot.lane.b32.xlu0 %v1507, 64
        %v1541 = vpop.permute.xlu0 %1540
        %v1542 = vrot.slane %v1502, 1
        %v1543 = vor.u32 %v1499, %v1542
        %v1545 = vshll.u32 %v1507, 16
        %v1547 = vrot.slane %v1545, 1
        %v1548 = vsel %vm358, %v1543, %v1547
        %v1549 = vshrl.u32 %v1507, 16
        %v1551 = vrot.slane %v1467, 1
        %v1552 = vrot.slane %v1507, 1
        %v1553 = vsel %vm583, %v1551, %v1552
        %1554 = vrot.lane.b32.xlu0 %v597, 64
        %v1555 = vpop.permute.xlu0 %1554
        %1556 = vrot.lane.b32.xlu0 %v600, 64
        %v1557 = vpop.permute.xlu0 %1556
        %1558 = vrot.lane.b32.xlu0 %v603, 64
        %v1559 = vpop.permute.xlu0 %1558
        %1560 = vrot.lane.b32.xlu0 %v606, 64
        %v1561 = vpop.permute.xlu0 %1560
        %1562 = vrot.lane.b32.xlu0 %v609, 64
        %v1563 = vpop.permute.xlu0 %1562
        %1564 = vrot.lane.b32.xlu0 %v612, 64
        %v1565 = vpop.permute.xlu0 %1564
        %1566 = vrot.lane.b32.xlu0 %v615, 64
        %v1567 = vpop.permute.xlu0 %1566
        %1568 = vrot.lane.b32.xlu0 %v618, 64
        %v1569 = vpop.permute.xlu0 %1568
        %1570 = vrot.lane.b32.xlu0 %v621, 64
        %v1571 = vpop.permute.xlu0 %1570
        %1572 = vrot.lane.b32.xlu0 %v624, 64
        %v1573 = vpop.permute.xlu0 %1572
        %1574 = vrot.lane.b32.xlu0 %v627, 64
        %v1575 = vpop.permute.xlu0 %1574
        %1576 = vrot.lane.b32.xlu0 %v630, 64
        %v1577 = vpop.permute.xlu0 %1576
        %1578 = vrot.lane.b32.xlu0 %v911, 64
        %v1579 = vpop.permute.xlu0 %1578
        %1580 = vrot.lane.b32.xlu0 %v1015, 64
        %v1581 = vpop.permute.xlu0 %1580
        %1582 = vrot.lane.b32.xlu0 %v1014, 64
        %v1583 = vpop.permute.xlu0 %1582
        %1584 = vrot.lane.b32.xlu0 %v1421, 64
        %v1585 = vpop.permute.xlu0 %1584
        %1586 = vrot.lane.b32.xlu0 %v1420, 64
        %v1587 = vpop.permute.xlu0 %1586
        %1588 = vrot.lane.b32.xlu0 %v1553, 64
        %v1589 = vpop.permute.xlu0 %1588
        %1590 = vrot.lane.b32.xlu0 %v1552, 64
        %v1591 = vpop.permute.xlu0 %1590
        %v1592 = vrot.slane %v1499, 1
        %v1593 = vrot.slane %v1502, 2
        %v1594 = vor.u32 %v1592, %v1593
        %v1595 = vrot.slane %v1549, 1
        %v1596 = vrot.slane %v1545, 2
        %v1597 = vor.u32 %v1595, %v1596
        %v1598 = vsel %vm632, %v1594, %v1597
        %v1600 = vsel %vm1041, %v345, %v1386
        %v1602 = vsel %vm1041, %v346, %v1388
        %v1604 = vsel %vm1041, %v347, %v1390
        %v1606 = vsel %vm1041, %v348, %v1392
        %v1608 = vsel %vm1041, %v349, %v1394
        %v1610 = vsel %vm1041, %v350, %v1396
        %v1612 = vsel %vm1041, %v351, %v1398
        %v1614 = vsel %vm1041, %v352, %v1400
        %v1616 = vsel %vm1041, %v353, %v1402
        %v1618 = vsel %vm1041, %v354, %v1404
        %v1620 = vsel %vm1041, %v355, %v1406
        %v1622 = vsel %vm1041, %v356, %v1408
        %v1624 = vsel %vm1041, %v357, %v1410
        %v1626 = vsel %vm1041, %v897, %v1412
        %v1628 = vsel %vm1041, %v996, %v1414
        %v1630 = vsel %vm1041, %v1036, %v1416
        %v1632 = vsel %vm1041, %v1370, %v1418
        %v1635 = vsel %vm1041, %v594, %v1430
        %v1638 = vsel %vm1041, %v597, %v1432
        %v1641 = vsel %vm1041, %v600, %v1434
        %v1644 = vsel %vm1041, %v603, %v1436
        %v1647 = vsel %vm1041, %v606, %v1438
        %v1650 = vsel %vm1041, %v609, %v1440
        %v1653 = vsel %vm1041, %v612, %v1442
        %v1656 = vsel %vm1041, %v615, %v1444
        %v1659 = vsel %vm1041, %v618, %v1446
        %v1662 = vsel %vm1041, %v621, %v1448
        %v1665 = vsel %vm1041, %v624, %v1450
        %v1668 = vsel %vm1041, %v627, %v1452
        %v1671 = vsel %vm1041, %v630, %v1454
        %v1674 = vsel %vm1041, %v911, %v1456
        %v1677 = vsel %vm1041, %v1014, %v1458
        %v1680 = vsel %vm1041, %v1421, %v1460
        %v1683 = vsel %vm1041, %v1420, %v1462
        %v1685 = vsel %vm1041, %v1469, %v870
        %v1688 = vsel %vm1041, %v1468, %v1509
        %v1690 = vsel %vm1041, %v1471, %v872
        %v1693 = vsel %vm1041, %v1470, %v1511
        %v1695 = vsel %vm1041, %v1473, %v874
        %v1698 = vsel %vm1041, %v1472, %v1513
        %v1700 = vsel %vm1041, %v1475, %v876
        %v1703 = vsel %vm1041, %v1474, %v1515
        %v1705 = vsel %vm1041, %v1477, %v878
        %v1708 = vsel %vm1041, %v1476, %v1517
        %v1710 = vsel %vm1041, %v1479, %v880
        %v1713 = vsel %vm1041, %v1478, %v1519
        %v1715 = vsel %vm1041, %v1481, %v882
        %v1718 = vsel %vm1041, %v1480, %v1521
        %v1720 = vsel %vm1041, %v1483, %v884
        %v1723 = vsel %vm1041, %v1482, %v1523
        %v1725 = vsel %vm1041, %v1485, %v886
        %v1728 = vsel %vm1041, %v1484, %v1525
        %v1730 = vsel %vm1041, %v1487, %v888
        %v1733 = vsel %vm1041, %v1486, %v1527
        %v1735 = vsel %vm1041, %v1489, %v890
        %v1738 = vsel %vm1041, %v1488, %v1529
        %v1740 = vsel %vm1041, %v1491, %v892
        %v1743 = vsel %vm1041, %v1490, %v1531
        %v1745 = vsel %vm1041, %v1493, %v894
        %v1748 = vsel %vm1041, %v1492, %v1533
        %v1750 = vsel %vm1041, %v1495, %v1038
        %v1753 = vsel %vm1041, %v1494, %v1535
        %v1755 = vsel %vm1041, %v1497, %v1040
        %v1758 = vsel %vm1041, %v1496, %v1537
        %v1761 = vsel %vm1041, %v1504, %v1539
        %v1764 = vsel %vm1041, %v1501, %v1541
        %v1767 = vsel %vm1041, %v672, %v1555
        %v1770 = vsel %vm1041, %v681, %v1557
        %v1773 = vsel %vm1041, %v690, %v1559
        %v1776 = vsel %vm1041, %v699, %v1561
        %v1779 = vsel %vm1041, %v708, %v1563
        %v1782 = vsel %vm1041, %v717, %v1565
        %v1785 = vsel %vm1041, %v726, %v1567
        %v1788 = vsel %vm1041, %v735, %v1569
        %v1791 = vsel %vm1041, %v744, %v1571
        %v1794 = vsel %vm1041, %v753, %v1573
        %v1797 = vsel %vm1041, %v762, %v1575
        %v1800 = vsel %vm1041, %v771, %v1577
        %v1803 = vsel %vm1041, %v948, %v1579
        %v1806 = vsel %vm1041, %v1008, %v1581
        %v1809 = vsel %vm1041, %v1019, %v1583
        %v1812 = vsel %vm1041, %v1382, %v1585
        %v1815 = vsel %vm1041, %v1383, %v1587
        %v1818 = vsel %vm1041, %v1548, %v1589
        %v1821 = vsel %vm1041, %v1549, %v1591
        %v1822 = vshrl.u32 %v1052, 16
        %v1824 = vshll.u32 %v1052, 16
        %v1826 = vrot.slane %v1824, 1
        %v1827 = vor.u32 %v1822, %v1826
        %v1828 = vshll.u32 %v1600, 16
        %v1830 = vrot.slane %v1828, 1
        %v1831 = vsel %vm358, %v1827, %v1830
        %v1832 = vshrl.u32 %v1104, 16
        %v1834 = vshll.u32 %v1104, 16
        %v1836 = vrot.slane %v1834, 1
        %v1837 = vor.u32 %v1832, %v1836
        %v1838 = vshll.u32 %v1635, 16
        %v1840 = vrot.slane %v1838, 1
        %v1841 = vsel %vm358, %v1837, %v1840
        %v1842 = vshrl.u32 %v1685, 16
        %v1844 = vshll.u32 %v1685, 16
        %v1846 = vrot.slane %v1844, 1
        %v1847 = vor.u32 %v1842, %v1846
        %v1848 = vshll.u32 %v1688, 16
        %v1850 = vrot.slane %v1848, 1
        %v1851 = vsel %vm358, %v1847, %v1850
        %v1852 = vshrl.u32 %v1232, 16
        %v1854 = vshll.u32 %v1232, 16
        %v1856 = vrot.slane %v1854, 1
        %v1857 = vor.u32 %v1852, %v1856
        %v1858 = vshll.u32 %v1767, 16
        %v1860 = vrot.slane %v1858, 1
        %v1861 = vsel %vm358, %v1857, %v1860
        %v1862 = vshrl.u32 %v677, 16
        %v1864 = vshll.u32 %v677, 16
        %v1866 = vrot.slane %v1864, 1
        %v1867 = vor.u32 %v1862, %v1866
        %v1869 = vshll.u32 %v674, 16
        %v1871 = vrot.slane %v1869, 1
        %v1872 = vsel %vm358, %v1867, %v1871
        %v1873 = vshrl.u32 %v1055, 16
        %v1875 = vshll.u32 %v1055, 16
        %v1877 = vrot.slane %v1875, 1
        %v1878 = vor.u32 %v1873, %v1877
        %v1879 = vshll.u32 %v1602, 16
        %v1881 = vrot.slane %v1879, 1
        %v1882 = vsel %vm358, %v1878, %v1881
        %v1883 = vshrl.u32 %v1108, 16
        %v1885 = vshll.u32 %v1108, 16
        %v1887 = vrot.slane %v1885, 1
        %v1888 = vor.u32 %v1883, %v1887
        %v1889 = vshll.u32 %v1638, 16
        %v1891 = vrot.slane %v1889, 1
        %v1892 = vsel %vm358, %v1888, %v1891
        %v1893 = vshrl.u32 %v1690, 16
        %v1895 = vshll.u32 %v1690, 16
        %v1897 = vrot.slane %v1895, 1
        %v1898 = vor.u32 %v1893, %v1897
        %v1899 = vshll.u32 %v1693, 16
        %v1901 = vrot.slane %v1899, 1
        %v1902 = vsel %vm358, %v1898, %v1901
        %v1903 = vshrl.u32 %v1236, 16
        %v1905 = vshll.u32 %v1236, 16
        %v1907 = vrot.slane %v1905, 1
        %v1908 = vor.u32 %v1903, %v1907
        %v1909 = vshll.u32 %v1770, 16
        %v1911 = vrot.slane %v1909, 1
        %v1912 = vsel %vm358, %v1908, %v1911
        %v1913 = vshrl.u32 %v686, 16
        %v1915 = vshll.u32 %v686, 16
        %v1917 = vrot.slane %v1915, 1
        %v1918 = vor.u32 %v1913, %v1917
        %v1920 = vshll.u32 %v683, 16
        %v1922 = vrot.slane %v1920, 1
        %v1923 = vsel %vm358, %v1918, %v1922
        %v1924 = vshrl.u32 %v1058, 16
        %v1926 = vshll.u32 %v1058, 16
        %v1928 = vrot.slane %v1926, 1
        %v1929 = vor.u32 %v1924, %v1928
        %v1930 = vshll.u32 %v1604, 16
        %v1932 = vrot.slane %v1930, 1
        %v1933 = vsel %vm358, %v1929, %v1932
        %v1934 = vshrl.u32 %v1112, 16
        %v1936 = vshll.u32 %v1112, 16
        %v1938 = vrot.slane %v1936, 1
        %v1939 = vor.u32 %v1934, %v1938
        %v1940 = vshll.u32 %v1641, 16
        %v1942 = vrot.slane %v1940, 1
        %v1943 = vsel %vm358, %v1939, %v1942
        %v1944 = vshrl.u32 %v1695, 16
        %v1946 = vshll.u32 %v1695, 16
        %v1948 = vrot.slane %v1946, 1
        %v1949 = vor.u32 %v1944, %v1948
        %v1950 = vshll.u32 %v1698, 16
        %v1952 = vrot.slane %v1950, 1
        %v1953 = vsel %vm358, %v1949, %v1952
        %v1954 = vshrl.u32 %v1240, 16
        %v1956 = vshll.u32 %v1240, 16
        %v1958 = vrot.slane %v1956, 1
        %v1959 = vor.u32 %v1954, %v1958
        %v1960 = vshll.u32 %v1773, 16
        %v1962 = vrot.slane %v1960, 1
        %v1963 = vsel %vm358, %v1959, %v1962
        %v1964 = vshrl.u32 %v695, 16
        %v1966 = vshll.u32 %v695, 16
        %v1968 = vrot.slane %v1966, 1
        %v1969 = vor.u32 %v1964, %v1968
        %v1971 = vshll.u32 %v692, 16
        %v1973 = vrot.slane %v1971, 1
        %v1974 = vsel %vm358, %v1969, %v1973
        %v1975 = vshrl.u32 %v1061, 16
        %v1977 = vshll.u32 %v1061, 16
        %v1979 = vrot.slane %v1977, 1
        %v1980 = vor.u32 %v1975, %v1979
        %v1981 = vshll.u32 %v1606, 16
        %v1983 = vrot.slane %v1981, 1
        %v1984 = vsel %vm358, %v1980, %v1983
        %v1985 = vshrl.u32 %v1116, 16
        %v1987 = vshll.u32 %v1116, 16
        %v1989 = vrot.slane %v1987, 1
        %v1990 = vor.u32 %v1985, %v1989
        %v1991 = vshll.u32 %v1644, 16
        %v1993 = vrot.slane %v1991, 1
        %v1994 = vsel %vm358, %v1990, %v1993
        %v1995 = vshrl.u32 %v1700, 16
        %v1997 = vshll.u32 %v1700, 16
        %v1999 = vrot.slane %v1997, 1
        %v2000 = vor.u32 %v1995, %v1999
        %v2001 = vshll.u32 %v1703, 16
        %v2003 = vrot.slane %v2001, 1
        %v2004 = vsel %vm358, %v2000, %v2003
        %v2005 = vshrl.u32 %v1244, 16
        %v2007 = vshll.u32 %v1244, 16
        %v2009 = vrot.slane %v2007, 1
        %v2010 = vor.u32 %v2005, %v2009
        %v2011 = vshll.u32 %v1776, 16
        %v2013 = vrot.slane %v2011, 1
        %v2014 = vsel %vm358, %v2010, %v2013
        %v2015 = vshrl.u32 %v704, 16
        %v2017 = vshll.u32 %v704, 16
        %v2019 = vrot.slane %v2017, 1
        %v2020 = vor.u32 %v2015, %v2019
        %v2022 = vshll.u32 %v701, 16
        %v2024 = vrot.slane %v2022, 1
        %v2025 = vsel %vm358, %v2020, %v2024
        %v2026 = vshrl.u32 %v1064, 16
        %v2028 = vshll.u32 %v1064, 16
        %v2030 = vrot.slane %v2028, 1
        %v2031 = vor.u32 %v2026, %v2030
        %v2032 = vshll.u32 %v1608, 16
        %v2034 = vrot.slane %v2032, 1
        %v2035 = vsel %vm358, %v2031, %v2034
        %v2036 = vshrl.u32 %v1120, 16
        %v2038 = vshll.u32 %v1120, 16
        %v2040 = vrot.slane %v2038, 1
        %v2041 = vor.u32 %v2036, %v2040
        %v2042 = vshll.u32 %v1647, 16
        %v2044 = vrot.slane %v2042, 1
        %v2045 = vsel %vm358, %v2041, %v2044
        %v2046 = vshrl.u32 %v1705, 16
        %v2048 = vshll.u32 %v1705, 16
        %v2050 = vrot.slane %v2048, 1
        %v2051 = vor.u32 %v2046, %v2050
        %v2052 = vshll.u32 %v1708, 16
        %v2054 = vrot.slane %v2052, 1
        %v2055 = vsel %vm358, %v2051, %v2054
        %v2056 = vshrl.u32 %v1248, 16
        %v2058 = vshll.u32 %v1248, 16
        %v2060 = vrot.slane %v2058, 1
        %v2061 = vor.u32 %v2056, %v2060
        %v2062 = vshll.u32 %v1779, 16
        %v2064 = vrot.slane %v2062, 1
        %v2065 = vsel %vm358, %v2061, %v2064
        %v2066 = vshrl.u32 %v713, 16
        %v2068 = vshll.u32 %v713, 16
        %v2070 = vrot.slane %v2068, 1
        %v2071 = vor.u32 %v2066, %v2070
        %v2073 = vshll.u32 %v710, 16
        %v2075 = vrot.slane %v2073, 1
        %v2076 = vsel %vm358, %v2071, %v2075
        %v2077 = vshrl.u32 %v1067, 16
        %v2079 = vshll.u32 %v1067, 16
        %v2081 = vrot.slane %v2079, 1
        %v2082 = vor.u32 %v2077, %v2081
        %v2083 = vshll.u32 %v1610, 16
        %v2085 = vrot.slane %v2083, 1
        %v2086 = vsel %vm358, %v2082, %v2085
        %v2087 = vshrl.u32 %v1124, 16
        %v2089 = vshll.u32 %v1124, 16
        %v2091 = vrot.slane %v2089, 1
        %v2092 = vor.u32 %v2087, %v2091
        %v2093 = vshll.u32 %v1650, 16
        %v2095 = vrot.slane %v2093, 1
        %v2096 = vsel %vm358, %v2092, %v2095
        %v2097 = vshrl.u32 %v1710, 16
        %v2099 = vshll.u32 %v1710, 16
        %v2101 = vrot.slane %v2099, 1
        %v2102 = vor.u32 %v2097, %v2101
        %v2103 = vshll.u32 %v1713, 16
        %v2105 = vrot.slane %v2103, 1
        %v2106 = vsel %vm358, %v2102, %v2105
        %v2107 = vshrl.u32 %v1252, 16
        %v2109 = vshll.u32 %v1252, 16
        %v2111 = vrot.slane %v2109, 1
        %v2112 = vor.u32 %v2107, %v2111
        %v2113 = vshll.u32 %v1782, 16
        %v2115 = vrot.slane %v2113, 1
        %v2116 = vsel %vm358, %v2112, %v2115
        %v2117 = vshrl.u32 %v722, 16
        %v2119 = vshll.u32 %v722, 16
        %v2121 = vrot.slane %v2119, 1
        %v2122 = vor.u32 %v2117, %v2121
        %v2124 = vshll.u32 %v719, 16
        %v2126 = vrot.slane %v2124, 1
        %v2127 = vsel %vm358, %v2122, %v2126
        %v2128 = vshrl.u32 %v1070, 16
        %v2130 = vshll.u32 %v1070, 16
        %v2132 = vrot.slane %v2130, 1
        %v2133 = vor.u32 %v2128, %v2132
        %v2134 = vshll.u32 %v1612, 16
        %v2136 = vrot.slane %v2134, 1
        %v2137 = vsel %vm358, %v2133, %v2136
        %v2138 = vshrl.u32 %v1128, 16
        %v2140 = vshll.u32 %v1128, 16
        %v2142 = vrot.slane %v2140, 1
        %v2143 = vor.u32 %v2138, %v2142
        %v2144 = vshll.u32 %v1653, 16
        %v2146 = vrot.slane %v2144, 1
        %v2147 = vsel %vm358, %v2143, %v2146
        %v2148 = vshrl.u32 %v1715, 16
        %v2150 = vshll.u32 %v1715, 16
        %v2152 = vrot.slane %v2150, 1
        %v2153 = vor.u32 %v2148, %v2152
        %v2154 = vshll.u32 %v1718, 16
        %v2156 = vrot.slane %v2154, 1
        %v2157 = vsel %vm358, %v2153, %v2156
        %v2158 = vshrl.u32 %v1256, 16
        %v2160 = vshll.u32 %v1256, 16
        %v2162 = vrot.slane %v2160, 1
        %v2163 = vor.u32 %v2158, %v2162
        %v2164 = vshll.u32 %v1785, 16
        %v2166 = vrot.slane %v2164, 1
        %v2167 = vsel %vm358, %v2163, %v2166
        %v2168 = vshrl.u32 %v731, 16
        %v2170 = vshll.u32 %v731, 16
        %v2172 = vrot.slane %v2170, 1
        %v2173 = vor.u32 %v2168, %v2172
        %v2175 = vshll.u32 %v728, 16
        %v2177 = vrot.slane %v2175, 1
        %v2178 = vsel %vm358, %v2173, %v2177
        %v2179 = vshrl.u32 %v1073, 16
        %v2181 = vshll.u32 %v1073, 16
        %v2183 = vrot.slane %v2181, 1
        %v2184 = vor.u32 %v2179, %v2183
        %v2185 = vshll.u32 %v1614, 16
        %v2187 = vrot.slane %v2185, 1
        %v2188 = vsel %vm358, %v2184, %v2187
        %v2189 = vshrl.u32 %v1132, 16
        %v2191 = vshll.u32 %v1132, 16
        %v2193 = vrot.slane %v2191, 1
        %v2194 = vor.u32 %v2189, %v2193
        %v2195 = vshll.u32 %v1656, 16
        %v2197 = vrot.slane %v2195, 1
        %v2198 = vsel %vm358, %v2194, %v2197
        %v2199 = vshrl.u32 %v1720, 16
        %v2201 = vshll.u32 %v1720, 16
        %v2203 = vrot.slane %v2201, 1
        %v2204 = vor.u32 %v2199, %v2203
        %v2205 = vshll.u32 %v1723, 16
        %v2207 = vrot.slane %v2205, 1
        %v2208 = vsel %vm358, %v2204, %v2207
        %v2209 = vshrl.u32 %v1260, 16
        %v2211 = vshll.u32 %v1260, 16
        %v2213 = vrot.slane %v2211, 1
        %v2214 = vor.u32 %v2209, %v2213
        %v2215 = vshll.u32 %v1788, 16
        %v2217 = vrot.slane %v2215, 1
        %v2218 = vsel %vm358, %v2214, %v2217
        %v2219 = vshrl.u32 %v740, 16
        %v2221 = vshll.u32 %v740, 16
        %v2223 = vrot.slane %v2221, 1
        %v2224 = vor.u32 %v2219, %v2223
        %v2226 = vshll.u32 %v737, 16
        %v2228 = vrot.slane %v2226, 1
        %v2229 = vsel %vm358, %v2224, %v2228
        %v2230 = vshrl.u32 %v1076, 16
        %v2232 = vshll.u32 %v1076, 16
        %v2234 = vrot.slane %v2232, 1
        %v2235 = vor.u32 %v2230, %v2234
        %v2236 = vshll.u32 %v1616, 16
        %v2238 = vrot.slane %v2236, 1
        %v2239 = vsel %vm358, %v2235, %v2238
        %v2240 = vshrl.u32 %v1136, 16
        %v2242 = vshll.u32 %v1136, 16
        %v2244 = vrot.slane %v2242, 1
        %v2245 = vor.u32 %v2240, %v2244
        %v2246 = vshll.u32 %v1659, 16
        %v2248 = vrot.slane %v2246, 1
        %v2249 = vsel %vm358, %v2245, %v2248
        %v2250 = vshrl.u32 %v1725, 16
        %v2252 = vshll.u32 %v1725, 16
        %v2254 = vrot.slane %v2252, 1
        %v2255 = vor.u32 %v2250, %v2254
        %v2256 = vshll.u32 %v1728, 16
        %v2258 = vrot.slane %v2256, 1
        %v2259 = vsel %vm358, %v2255, %v2258
        %v2260 = vshrl.u32 %v1264, 16
        %v2262 = vshll.u32 %v1264, 16
        %v2264 = vrot.slane %v2262, 1
        %v2265 = vor.u32 %v2260, %v2264
        %v2266 = vshll.u32 %v1791, 16
        %v2268 = vrot.slane %v2266, 1
        %v2269 = vsel %vm358, %v2265, %v2268
        %v2270 = vshrl.u32 %v749, 16
        %v2272 = vshll.u32 %v749, 16
        %v2274 = vrot.slane %v2272, 1
        %v2275 = vor.u32 %v2270, %v2274
        %v2277 = vshll.u32 %v746, 16
        %v2279 = vrot.slane %v2277, 1
        %v2280 = vsel %vm358, %v2275, %v2279
        %v2281 = vshrl.u32 %v1079, 16
        %v2283 = vshll.u32 %v1079, 16
        %v2285 = vrot.slane %v2283, 1
        %v2286 = vor.u32 %v2281, %v2285
        %v2287 = vshll.u32 %v1618, 16
        %v2289 = vrot.slane %v2287, 1
        %v2290 = vsel %vm358, %v2286, %v2289
        %v2291 = vshrl.u32 %v1140, 16
        %v2293 = vshll.u32 %v1140, 16
        %v2295 = vrot.slane %v2293, 1
        %v2296 = vor.u32 %v2291, %v2295
        %v2297 = vshll.u32 %v1662, 16
        %v2299 = vrot.slane %v2297, 1
        %v2300 = vsel %vm358, %v2296, %v2299
        %v2301 = vshrl.u32 %v1730, 16
        %v2303 = vshll.u32 %v1730, 16
        %v2305 = vrot.slane %v2303, 1
        %v2306 = vor.u32 %v2301, %v2305
        %v2307 = vshll.u32 %v1733, 16
        %v2309 = vrot.slane %v2307, 1
        %v2310 = vsel %vm358, %v2306, %v2309
        %v2311 = vshrl.u32 %v1268, 16
        %v2313 = vshll.u32 %v1268, 16
        %v2315 = vrot.slane %v2313, 1
        %v2316 = vor.u32 %v2311, %v2315
        %v2317 = vshll.u32 %v1794, 16
        %v2319 = vrot.slane %v2317, 1
        %v2320 = vsel %vm358, %v2316, %v2319
        %v2321 = vshrl.u32 %v758, 16
        %v2323 = vshll.u32 %v758, 16
        %v2325 = vrot.slane %v2323, 1
        %v2326 = vor.u32 %v2321, %v2325
        %v2328 = vshll.u32 %v755, 16
        %v2330 = vrot.slane %v2328, 1
        %v2331 = vsel %vm358, %v2326, %v2330
        %v2332 = vshrl.u32 %v1082, 16
        %v2334 = vshll.u32 %v1082, 16
        %v2336 = vrot.slane %v2334, 1
        %v2337 = vor.u32 %v2332, %v2336
        %v2338 = vshll.u32 %v1620, 16
        %v2340 = vrot.slane %v2338, 1
        %v2341 = vsel %vm358, %v2337, %v2340
        %v2342 = vshrl.u32 %v1144, 16
        %v2344 = vshll.u32 %v1144, 16
        %v2346 = vrot.slane %v2344, 1
        %v2347 = vor.u32 %v2342, %v2346
        %v2348 = vshll.u32 %v1665, 16
        %v2350 = vrot.slane %v2348, 1
        %v2351 = vsel %vm358, %v2347, %v2350
        %v2352 = vshrl.u32 %v1735, 16
        %v2354 = vshll.u32 %v1735, 16
        %v2356 = vrot.slane %v2354, 1
        %v2357 = vor.u32 %v2352, %v2356
        %v2358 = vshll.u32 %v1738, 16
        %v2360 = vrot.slane %v2358, 1
        %v2361 = vsel %vm358, %v2357, %v2360
        %v2362 = vshrl.u32 %v1272, 16
        %v2364 = vshll.u32 %v1272, 16
        %v2366 = vrot.slane %v2364, 1
        %v2367 = vor.u32 %v2362, %v2366
        %v2368 = vshll.u32 %v1797, 16
        %v2370 = vrot.slane %v2368, 1
        %v2371 = vsel %vm358, %v2367, %v2370
        %v2372 = vshrl.u32 %v767, 16
        %v2374 = vshll.u32 %v767, 16
        %v2376 = vrot.slane %v2374, 1
        %v2377 = vor.u32 %v2372, %v2376
        %v2379 = vshll.u32 %v764, 16
        %v2381 = vrot.slane %v2379, 1
        %v2382 = vsel %vm358, %v2377, %v2381
        %v2383 = vshrl.u32 %v1085, 16
        %v2385 = vshll.u32 %v1085, 16
        %v2387 = vrot.slane %v2385, 1
        %v2388 = vor.u32 %v2383, %v2387
        %v2389 = vshll.u32 %v1622, 16
        %v2391 = vrot.slane %v2389, 1
        %v2392 = vsel %vm358, %v2388, %v2391
        %v2393 = vshrl.u32 %v1148, 16
        %v2395 = vshll.u32 %v1148, 16
        %v2397 = vrot.slane %v2395, 1
        %v2398 = vor.u32 %v2393, %v2397
        %v2399 = vshll.u32 %v1668, 16
        %v2401 = vrot.slane %v2399, 1
        %v2402 = vsel %vm358, %v2398, %v2401
        %v2403 = vshrl.u32 %v1740, 16
        %v2405 = vshll.u32 %v1740, 16
        %v2407 = vrot.slane %v2405, 1
        %v2408 = vor.u32 %v2403, %v2407
        %v2409 = vshll.u32 %v1743, 16
        %v2411 = vrot.slane %v2409, 1
        %v2412 = vsel %vm358, %v2408, %v2411
        %v2413 = vshrl.u32 %v1276, 16
        %v2415 = vshll.u32 %v1276, 16
        %v2417 = vrot.slane %v2415, 1
        %v2418 = vor.u32 %v2413, %v2417
        %v2419 = vshll.u32 %v1800, 16
        %v2421 = vrot.slane %v2419, 1
        %v2422 = vsel %vm358, %v2418, %v2421
        %v2423 = vshrl.u32 %v776, 16
        %v2425 = vshll.u32 %v776, 16
        %v2427 = vrot.slane %v2425, 1
        %v2428 = vor.u32 %v2423, %v2427
        %v2430 = vshll.u32 %v773, 16
        %v2432 = vrot.slane %v2430, 1
        %v2433 = vsel %vm358, %v2428, %v2432
        %v2434 = vshrl.u32 %v1088, 16
        %v2436 = vshll.u32 %v1088, 16
        %v2438 = vrot.slane %v2436, 1
        %v2439 = vor.u32 %v2434, %v2438
        %v2440 = vshll.u32 %v1624, 16
        %v2442 = vrot.slane %v2440, 1
        %v2443 = vsel %vm358, %v2439, %v2442
        %v2444 = vshrl.u32 %v1152, 16
        %v2446 = vshll.u32 %v1152, 16
        %v2448 = vrot.slane %v2446, 1
        %v2449 = vor.u32 %v2444, %v2448
        %v2450 = vshll.u32 %v1671, 16
        %v2452 = vrot.slane %v2450, 1
        %v2453 = vsel %vm358, %v2449, %v2452
        %v2454 = vshrl.u32 %v1745, 16
        %v2456 = vshll.u32 %v1745, 16
        %v2458 = vrot.slane %v2456, 1
        %v2459 = vor.u32 %v2454, %v2458
        %v2460 = vshll.u32 %v1748, 16
        %v2462 = vrot.slane %v2460, 1
        %v2463 = vsel %vm358, %v2459, %v2462
        %v2464 = vshrl.u32 %v1280, 16
        %v2466 = vshll.u32 %v1280, 16
        %v2468 = vrot.slane %v2466, 1
        %v2469 = vor.u32 %v2464, %v2468
        %v2470 = vshll.u32 %v1803, 16
        %v2472 = vrot.slane %v2470, 1
        %v2473 = vsel %vm358, %v2469, %v2472
        %v2474 = vshrl.u32 %v953, 16
        %v2476 = vshll.u32 %v953, 16
        %v2478 = vrot.slane %v2476, 1
        %v2479 = vor.u32 %v2474, %v2478
        %v2481 = vshll.u32 %v950, 16
        %v2483 = vrot.slane %v2481, 1
        %v2484 = vsel %vm358, %v2479, %v2483
        %v2485 = vshrl.u32 %v1347, 16
        %v2487 = vshll.u32 %v1347, 16
        %v2489 = vrot.slane %v2487, 1
        %v2490 = vor.u32 %v2485, %v2489
        %v2491 = vshll.u32 %v1626, 16
        %v2493 = vrot.slane %v2491, 1
        %v2494 = vsel %vm358, %v2490, %v2493
        %v2495 = vshrl.u32 %v1354, 16
        %v2497 = vshll.u32 %v1354, 16
        %v2499 = vrot.slane %v2497, 1
        %v2500 = vor.u32 %v2495, %v2499
        %v2501 = vshll.u32 %v1674, 16
        %v2503 = vrot.slane %v2501, 1
        %v2504 = vsel %vm358, %v2500, %v2503
        %v2505 = vshrl.u32 %v1750, 16
        %v2507 = vshll.u32 %v1750, 16
        %v2509 = vrot.slane %v2507, 1
        %v2510 = vor.u32 %v2505, %v2509
        %v2511 = vshll.u32 %v1753, 16
        %v2513 = vrot.slane %v2511, 1
        %v2514 = vsel %vm358, %v2510, %v2513
        %v2515 = vshrl.u32 %v1806, 16
        %v2517 = vshll.u32 %v1806, 16
        %v2519 = vrot.slane %v2517, 1
        %v2520 = vor.u32 %v2515, %v2519
        %v2521 = vshll.u32 %v1809, 16
        %v2523 = vrot.slane %v2521, 1
        %v2524 = vsel %vm358, %v2520, %v2523
        %v2526 = vshrl.u32 %v1024, 16
        %v2528 = vshll.u32 %v1024, 16
        %v2530 = vrot.slane %v2528, 1
        %v2531 = vor.u32 %v2526, %v2530
        %v2533 = vshll.u32 %v1021, 16
        %v2535 = vrot.slane %v2533, 1
        %v2536 = vsel %vm358, %v2531, %v2535
        %v2537 = vshrl.u32 %v1350, 16
        %v2539 = vshll.u32 %v1350, 16
        %v2541 = vrot.slane %v2539, 1
        %v2542 = vor.u32 %v2537, %v2541
        %v2543 = vshll.u32 %v1628, 16
        %v2545 = vrot.slane %v2543, 1
        %v2546 = vsel %vm358, %v2542, %v2545
        %v2547 = vshrl.u32 %v1358, 16
        %v2549 = vshll.u32 %v1358, 16
        %v2551 = vrot.slane %v2549, 1
        %v2552 = vor.u32 %v2547, %v2551
        %v2553 = vshll.u32 %v1677, 16
        %v2555 = vrot.slane %v2553, 1
        %v2556 = vsel %vm358, %v2552, %v2555
        %v2557 = vshrl.u32 %v1755, 16
        %v2559 = vshll.u32 %v1755, 16
        %v2561 = vrot.slane %v2559, 1
        %v2562 = vor.u32 %v2557, %v2561
        %v2563 = vshll.u32 %v1758, 16
        %v2565 = vrot.slane %v2563, 1
        %v2566 = vsel %vm358, %v2562, %v2565
        %v2567 = vshrl.u32 %v1812, 16
        %v2569 = vshll.u32 %v1812, 16
        %v2571 = vrot.slane %v2569, 1
        %v2572 = vor.u32 %v2567, %v2571
        %v2573 = vshll.u32 %v1815, 16
        %v2575 = vrot.slane %v2573, 1
        %v2576 = vsel %vm358, %v2572, %v2575
        %v2578 = vshrl.u32 %v1428, 16
        %v2580 = vshll.u32 %v1428, 16
        %v2582 = vrot.slane %v2580, 1
        %v2583 = vor.u32 %v2578, %v2582
        %v2585 = vshll.u32 %v1425, 16
        %v2587 = vrot.slane %v2585, 1
        %v2588 = vsel %vm358, %v2583, %v2587
        %v2589 = vshrl.u32 %v1630, 16
        %v2591 = vshll.u32 %v1630, 16
        %v2593 = vrot.slane %v2591, 1
        %v2594 = vor.u32 %v2589, %v2593
        %v2595 = vshll.u32 %v1632, 16
        %v2597 = vrot.slane %v2595, 1
        %v2598 = vsel %vm358, %v2594, %v2597
        %v2599 = vshrl.u32 %v1680, 16
        %v2601 = vshll.u32 %v1680, 16
        %v2603 = vrot.slane %v2601, 1
        %v2604 = vor.u32 %v2599, %v2603
        %v2605 = vshll.u32 %v1683, 16
        %v2607 = vrot.slane %v2605, 1
        %v2608 = vsel %vm358, %v2604, %v2607
        %v2609 = vshrl.u32 %v1761, 16
        %v2611 = vshll.u32 %v1761, 16
        %v2613 = vrot.slane %v2611, 1
        %v2614 = vor.u32 %v2609, %v2613
        %v2615 = vshll.u32 %v1764, 16
        %v2617 = vrot.slane %v2615, 1
        %v2618 = vsel %vm358, %v2614, %v2617
        %v2619 = vshrl.u32 %v1818, 16
        %v2621 = vshll.u32 %v1818, 16
        %v2623 = vrot.slane %v2621, 1
        %v2624 = vor.u32 %v2619, %v2623
        %v2625 = vshll.u32 %v1821, 16
        %v2627 = vrot.slane %v2625, 1
        %v2628 = vsel %vm358, %v2624, %v2627
        %v2630 = vshrl.u32 %v1598, 16
        %v2632 = vshll.u32 %v1598, 16
        %v2634 = vrot.slane %v2632, 1
        %v2635 = vor.u32 %v2630, %v2634
        %v2637 = vshll.u32 %v1595, 16
        %v2639 = vrot.slane %v2637, 1
        %v2640 = vsel %vm358, %v2635, %v2639
        %v2705 = vld [vmem:[%s1] sm:$0xf]
        %v2706 = vld [vmem:[%s1 + $0x4] sm:$0xf]
        %v2707 = vld [vmem:[%s1 + $0x8] sm:$0xf]
        %v2708 = vld [vmem:[%s1 + $0xc] sm:$0xf]
        %v2709 = vld [vmem:[%s1 + $0x10] sm:$0xf]
        %v2710 = vld [vmem:[%s1 + $0x14] sm:$0xf]
        %v2711 = vld [vmem:[%s1 + $0x18] sm:$0xf]
        %v2712 = vld [vmem:[%s1 + $0x1c] sm:$0xf]
        %v2713 = vld [vmem:[%s1 + $0x20] sm:$0xf]
        %v2714 = vld [vmem:[%s1 + $0x24] sm:$0xf]
        %v2715 = vld [vmem:[%s1 + $0x28] sm:$0xf]
        %v2716 = vld [vmem:[%s1 + $0x2c] sm:$0xf]
        %v2717 = vld [vmem:[%s1 + $0x30] sm:$0xf]
        %v2718 = vld [vmem:[%s1 + $0x34] sm:$0xf]
        %v2719 = vld [vmem:[%s1 + $0x38] sm:$0xf]
        %v2720 = vld [vmem:[%s1 + $0x3c] sm:$0xf]
        %v2721 = vld [vmem:[%s1 + $0x40] sm:$0xf]
        %v2722 = vld [vmem:[%s1 + $0x44] sm:$0xf]
        %v2723 = vld [vmem:[%s1 + $0x48] sm:$0xf]
        %v2724 = vld [vmem:[%s1 + $0x4c] sm:$0xf]
        %v2725 = vld [vmem:[%s1 + $0x50] sm:$0xf]
        %v2726 = vld [vmem:[%s1 + $0x54] sm:$0xf]
        %v2727 = vld [vmem:[%s1 + $0x58] sm:$0xf]
        %v2728 = vld [vmem:[%s1 + $0x5c] sm:$0xf]
        %v2729 = vld [vmem:[%s1 + $0x60] sm:$0xf]
        %v2730 = vld [vmem:[%s1 + $0x64] sm:$0xf]
        %v2731 = vld [vmem:[%s1 + $0x68] sm:$0xf]
        %v2732 = vld [vmem:[%s1 + $0x6c] sm:$0xf]
        %v2733 = vld [vmem:[%s1 + $0x70] sm:$0xf]
        %v2734 = vld [vmem:[%s1 + $0x74] sm:$0xf]
        %v2735 = vld [vmem:[%s1 + $0x78] sm:$0xf]
        %v2736 = vld [vmem:[%s1 + $0x7c] sm:$0xf]
        %v2737 = vld [vmem:[%s1 + $0x80] sm:$0xf]
        %v2738 = vld [vmem:[%s1 + $0x84] sm:$0xf]
        %v2739 = vld [vmem:[%s1 + $0x88] sm:$0xf]
        %v2740 = vld [vmem:[%s1 + $0x8c] sm:$0xf]
        %v2741 = vld [vmem:[%s1 + $0x90] sm:$0xf]
        %v2742 = vld [vmem:[%s1 + $0x94] sm:$0xf]
        %v2743 = vld [vmem:[%s1 + $0x98] sm:$0xf]
        %v2744 = vld [vmem:[%s1 + $0x9c] sm:$0xf]
        %v2745 = vld [vmem:[%s1 + $0xa0] sm:$0xf]
        %v2746 = vld [vmem:[%s1 + $0xa4] sm:$0xf]
        %v2747 = vld [vmem:[%s1 + $0xa8] sm:$0xf]
        %v2748 = vld [vmem:[%s1 + $0xac] sm:$0xf]
        %v2749 = vld [vmem:[%s1 + $0xb0] sm:$0xf]
        %v2750 = vld [vmem:[%s1 + $0xb4] sm:$0xf]
        %v2751 = vld [vmem:[%s1 + $0xb8] sm:$0xf]
        %v2752 = vld [vmem:[%s1 + $0xbc] sm:$0xf]
        %v2753 = vld [vmem:[%s1 + $0xc0] sm:$0xf]
        %v2754 = vld [vmem:[%s1 + $0xc4] sm:$0xf]
        %v2755 = vld [vmem:[%s1 + $0xc8] sm:$0xf]
        %v2756 = vld [vmem:[%s1 + $0xcc] sm:$0xf]
        %v2757 = vld [vmem:[%s1 + $0xd0] sm:$0xf]
        %v2758 = vld [vmem:[%s1 + $0xd4] sm:$0xf]
        %v2759 = vld [vmem:[%s1 + $0xd8] sm:$0xf]
        %v2760 = vld [vmem:[%s1 + $0xdc] sm:$0xf]
        %v2761 = vld [vmem:[%s1 + $0xe0] sm:$0xf]
        %v2762 = vld [vmem:[%s1 + $0xe4] sm:$0xf]
        %v2763 = vld [vmem:[%s1 + $0xe8] sm:$0xf]
        %v2764 = vld [vmem:[%s1 + $0xec] sm:$0xf]
        %v2765 = vld [vmem:[%s1 + $0xf0] sm:$0xf]
        %v2766 = vld [vmem:[%s1 + $0xf4] sm:$0xf]
        %v2767 = vld [vmem:[%s1 + $0xf8] sm:$0xf]
        %v2768 = vld [vmem:[%s1 + $0xfc] sm:$0xf]
        %v2769 = vld [vmem:[%s1 + $0x100] sm:$0xf]
        %v2770 = vld [vmem:[%s1 + $0x104] sm:$0xf]
        %v2771 = vld [vmem:[%s1 + $0x108] sm:$0xf]
        %v2772 = vld [vmem:[%s1 + $0x10c] sm:$0xf]
        %v2773 = vld [vmem:[%s1 + $0x110] sm:$0xf]
        %v2774 = vld [vmem:[%s1 + $0x114] sm:$0xf]
        %v2775 = vld [vmem:[%s1 + $0x118] sm:$0xf]
        %v2776 = vld [vmem:[%s1 + $0x11c] sm:$0xf]
        %v2777 = vld [vmem:[%s1 + $0x120] sm:$0xf]
        %v2778 = vld [vmem:[%s1 + $0x124] sm:$0xf]
        %v2779 = vld [vmem:[%s1 + $0x128] sm:$0xf]
        %v2780 = vld [vmem:[%s1 + $0x12c] sm:$0xf]
        %v2781 = vld [vmem:[%s1 + $0x130] sm:$0xf]
        %v2782 = vld [vmem:[%s1 + $0x134] sm:$0xf]
        %v2783 = vld [vmem:[%s1 + $0x138] sm:$0xf]
        %v2784 = vld [vmem:[%s1 + $0x13c] sm:$0xf]
        %v2785 = vld [vmem:[%s1 + $0x140] sm:$0xf]
        %v2786 = vld [vmem:[%s1 + $0x144] sm:$0xf]
        %v2787 = vld [vmem:[%s1 + $0x148] sm:$0xf]
        %v2788 = vld [vmem:[%s1 + $0x14c] sm:$0xf]
        %v2789 = vld [vmem:[%s1 + $0x150] sm:$0xf]
        %v2790 = vld [vmem:[%s1 + $0x154] sm:$0xf]
        %v2791 = vld [vmem:[%s1 + $0x158] sm:$0xf]
        %v2792 = vld [vmem:[%s1 + $0x15c] sm:$0xf]
        %v2793 = vld [vmem:[%s1 + $0x160] sm:$0xf]
        %v2794 = vld [vmem:[%s1 + $0x164] sm:$0xf]
        %v2795 = vld [vmem:[%s1 + $0x168] sm:$0xf]
        %v2796 = vld [vmem:[%s1 + $0x16c] sm:$0xf]
        %v2797 = vld [vmem:[%s1 + $0x170] sm:$0xf]
        %v2798 = vld [vmem:[%s1 + $0x174] sm:$0xf]
        %v2799 = vld [vmem:[%s1 + $0x178] sm:$0xf]
        %v2800 = vld [vmem:[%s1 + $0x17c] sm:$0xf]
        %v2801 = vld [vmem:[%s1 + $0x180] sm:$0xf]
        %v2802 = vld [vmem:[%s1 + $0x184] sm:$0xf]
        %v2803 = vld [vmem:[%s1 + $0x188] sm:$0xf]
        %v2804 = vld [vmem:[%s1 + $0x18c] sm:$0xf]
        %v2805 = vld [vmem:[%s1 + $0x190] sm:$0xf]
        %v2806 = vld [vmem:[%s1 + $0x194] sm:$0xf]
        %v2807 = vld [vmem:[%s1 + $0x198] sm:$0xf]
        %v2808 = vld [vmem:[%s1 + $0x19c] sm:$0xf]
        %v2809 = vld [vmem:[%s1 + $0x1a0] sm:$0xf]
        %v2810 = vld [vmem:[%s1 + $0x1a4] sm:$0xf]
        %v2811 = vld [vmem:[%s1 + $0x1a8] sm:$0xf]
        %v2812 = vld [vmem:[%s1 + $0x1ac] sm:$0xf]
        %v2813 = vld [vmem:[%s1 + $0x1b0] sm:$0xf]
        %v2814 = vld [vmem:[%s1 + $0x1b4] sm:$0xf]
        %v2815 = vld [vmem:[%s1 + $0x1b8] sm:$0xf]
        %v2816 = vld [vmem:[%s1 + $0x1bc] sm:$0xf]
        %v2817 = vld [vmem:[%s1 + $0x1c0] sm:$0xf]
        %v2818 = vld [vmem:[%s1 + $0x1c4] sm:$0xf]
        %v2819 = vld [vmem:[%s1 + $0x1c8] sm:$0xf]
        %v2820 = vld [vmem:[%s1 + $0x1cc] sm:$0xf]
        %v2821 = vld [vmem:[%s1 + $0x1d0] sm:$0xf]
        %v2822 = vld [vmem:[%s1 + $0x1d4] sm:$0xf]
        %v2823 = vld [vmem:[%s1 + $0x1d8] sm:$0xf]
        %v2824 = vld [vmem:[%s1 + $0x1dc] sm:$0xf]
        %v2825 = vld [vmem:[%s1 + $0x1e0] sm:$0xf]
        %v2826 = vld [vmem:[%s1 + $0x1e4] sm:$0xf]
        %v2827 = vld [vmem:[%s1 + $0x1e8] sm:$0xf]
        %v2828 = vld [vmem:[%s1 + $0x1ec] sm:$0xf]
        %v2829 = vld [vmem:[%s1 + $0x1f0] sm:$0xf]
        %v2830 = vld [vmem:[%s1 + $0x1f4] sm:$0xf]
        %v2831 = vld [vmem:[%s1 + $0x1f8] sm:$0xf]
        %v2832 = vld [vmem:[%s1 + $0x1fc] sm:$0xf]
        %v2833 = vld [vmem:[%s1 + $0x200] sm:$0xf]
        %v2834 = vld [vmem:[%s1 + $0x204] sm:$0xf]
        %v2835 = vld [vmem:[%s1 + $0x208] sm:$0xf]
        %v2836 = vld [vmem:[%s1 + $0x20c] sm:$0xf]
        %v2837 = vld [vmem:[%s1 + $0x210] sm:$0xf]
        %v2838 = vld [vmem:[%s1 + $0x214] sm:$0xf]
        %v2839 = vld [vmem:[%s1 + $0x218] sm:$0xf]
        %v2840 = vld [vmem:[%s1 + $0x21c] sm:$0xf]
        %v2841 = vld [vmem:[%s1 + $0x220] sm:$0xf]
        %v2842 = vld [vmem:[%s1 + $0x224] sm:$0xf]
        %v2843 = vld [vmem:[%s1 + $0x228] sm:$0xf]
        %v2844 = vld [vmem:[%s1 + $0x22c] sm:$0xf]
        %v2845 = vld [vmem:[%s1 + $0x230] sm:$0xf]
        %v2846 = vld [vmem:[%s1 + $0x234] sm:$0xf]
        %v2847 = vld [vmem:[%s1 + $0x238] sm:$0xf]
        %v2848 = vld [vmem:[%s1 + $0x23c] sm:$0xf]
        %v2849 = vld [vmem:[%s1 + $0x240] sm:$0xf]
        %v2850 = vld [vmem:[%s1 + $0x244] sm:$0xf]
        %v2851 = vld [vmem:[%s1 + $0x248] sm:$0xf]
        %v2852 = vld [vmem:[%s1 + $0x24c] sm:$0xf]
        %v2853 = vld [vmem:[%s1 + $0x250] sm:$0xf]
        %v2854 = vld [vmem:[%s1 + $0x254] sm:$0xf]
        %v2855 = vld [vmem:[%s1 + $0x258] sm:$0xf]
        %v2856 = vld [vmem:[%s1 + $0x25c] sm:$0xf]
        %v2857 = vld [vmem:[%s1 + $0x260] sm:$0xf]
        %v2858 = vld [vmem:[%s1 + $0x264] sm:$0xf]
        %v2859 = vld [vmem:[%s1 + $0x268] sm:$0xf]
        %v2860 = vld [vmem:[%s1 + $0x26c] sm:$0xf]
        %v2861 = vld [vmem:[%s1 + $0x270] sm:$0xf]
        %v2862 = vld [vmem:[%s1 + $0x274] sm:$0xf]
        %v2863 = vld [vmem:[%s1 + $0x278] sm:$0xf]
        %v2864 = vld [vmem:[%s1 + $0x27c] sm:$0xf]
        %v2865 = vld [vmem:[%s1 + $0x280] sm:$0xf]
        %v2866 = vld [vmem:[%s1 + $0x284] sm:$0xf]
        %v2867 = vld [vmem:[%s1 + $0x288] sm:$0xf]
        %v2868 = vld [vmem:[%s1 + $0x28c] sm:$0xf]
        %v2869 = vld [vmem:[%s1 + $0x290] sm:$0xf]
        %v2870 = vld [vmem:[%s1 + $0x294] sm:$0xf]
        %v2871 = vld [vmem:[%s1 + $0x298] sm:$0xf]
        %v2872 = vld [vmem:[%s1 + $0x29c] sm:$0xf]
        %v2873 = vld [vmem:[%s1 + $0x2a0] sm:$0xf]
        %v2874 = vld [vmem:[%s1 + $0x2a4] sm:$0xf]
        %v2875 = vld [vmem:[%s1 + $0x2a8] sm:$0xf]
        %v2876 = vld [vmem:[%s1 + $0x2ac] sm:$0xf]
        %v2877 = vld [vmem:[%s1 + $0x2b0] sm:$0xf]
        %v2878 = vld [vmem:[%s1 + $0x2b4] sm:$0xf]
        %v2879 = vld [vmem:[%s1 + $0x2b8] sm:$0xf]
        %v2880 = vld [vmem:[%s1 + $0x2bc] sm:$0xf]
        %v2881 = vld [vmem:[%s1 + $0x2c0] sm:$0xf]
        %v2882 = vld [vmem:[%s1 + $0x2c4] sm:$0xf]
        %v2883 = vld [vmem:[%s1 + $0x2c8] sm:$0xf]
        %v2884 = vld [vmem:[%s1 + $0x2cc] sm:$0xf]
        %v2885 = vld [vmem:[%s1 + $0x2d0] sm:$0xf]
        %v2886 = vld [vmem:[%s1 + $0x2d4] sm:$0xf]
        %v2887 = vld [vmem:[%s1 + $0x2d8] sm:$0xf]
        %v2888 = vld [vmem:[%s1 + $0x2dc] sm:$0xf]
        %v2889 = vld [vmem:[%s1 + $0x2e0] sm:$0xf]
        %v2890 = vld [vmem:[%s1 + $0x2e4] sm:$0xf]
        %v2891 = vld [vmem:[%s1 + $0x2e8] sm:$0xf]
        %v2892 = vld [vmem:[%s1 + $0x2ec] sm:$0xf]
        %v2893 = vld [vmem:[%s1 + $0x2f0] sm:$0xf]
        %v2894 = vld [vmem:[%s1 + $0x2f4] sm:$0xf]
        %v2895 = vld [vmem:[%s1 + $0x2f8] sm:$0xf]
        %v2896 = vld [vmem:[%s1 + $0x2fc] sm:$0xf]
        %v2897 = vld [vmem:[%s1 + $0x300] sm:$0xf]
        %v2898 = vld [vmem:[%s1 + $0x304] sm:$0xf]
        %v2899 = vld [vmem:[%s1 + $0x308] sm:$0xf]
        %v2900 = vld [vmem:[%s1 + $0x30c] sm:$0xf]
        %v2901 = vld [vmem:[%s1 + $0x310] sm:$0xf]
        %v2902 = vld [vmem:[%s1 + $0x314] sm:$0xf]
        %v2903 = vld [vmem:[%s1 + $0x318] sm:$0xf]
        %v2904 = vld [vmem:[%s1 + $0x31c] sm:$0xf]
        %v2905 = vld [vmem:[%s2] sm:$0x1]
        %v2907 = vlaneseq
        %v2908 = vshrl.u32 %v2907, 7
        %v2909 = vsub.s32 0, %v2908
        %v2910 = vrot.slane %v2905, %v2909
        %v3112 = vunpack.c.l.b16 %v2705
        %v3113 = vunpack.c.l.b16 %v2706
        %v3114 = vunpack.c.l.b16 %v2707
        %v3115 = vunpack.c.l.b16 %v2708
        %v3116 = vunpack.c.l.b16 %v2709
        %v3117 = vunpack.c.l.b16 %v2710
        %v3118 = vunpack.c.l.b16 %v2711
        %v3119 = vunpack.c.l.b16 %v2712
        %v3120 = vunpack.c.l.b16 %v2713
        %v3121 = vunpack.c.l.b16 %v2714
        %v3122 = vunpack.c.l.b16 %v2715
        %v3123 = vunpack.c.l.b16 %v2716
        %v3124 = vunpack.c.l.b16 %v2717
        %v3125 = vunpack.c.l.b16 %v2718
        %v3126 = vunpack.c.l.b16 %v2719
        %v3127 = vunpack.c.l.b16 %v2720
        %v3128 = vunpack.c.l.b16 %v2721
        %v3129 = vunpack.c.l.b16 %v2722
        %v3130 = vunpack.c.l.b16 %v2723
        %v3131 = vunpack.c.l.b16 %v2724
        %v3132 = vunpack.c.l.b16 %v2725
        %v3133 = vunpack.c.l.b16 %v2726
        %v3134 = vunpack.c.l.b16 %v2727
        %v3135 = vunpack.c.l.b16 %v2728
        %v3136 = vunpack.c.l.b16 %v2729
        %v3137 = vunpack.c.l.b16 %v2730
        %v3138 = vunpack.c.l.b16 %v2731
        %v3139 = vunpack.c.l.b16 %v2732
        %v3140 = vunpack.c.l.b16 %v2733
        %v3141 = vunpack.c.l.b16 %v2734
        %v3142 = vunpack.c.l.b16 %v2735
        %v3143 = vunpack.c.l.b16 %v2736
        %v3144 = vunpack.c.l.b16 %v2737
        %v3145 = vunpack.c.l.b16 %v2738
        %v3146 = vunpack.c.l.b16 %v2739
        %v3147 = vunpack.c.l.b16 %v2740
        %v3148 = vunpack.c.l.b16 %v2741
        %v3149 = vunpack.c.l.b16 %v2742
        %v3150 = vunpack.c.l.b16 %v2743
        %v3151 = vunpack.c.l.b16 %v2744
        %v3152 = vunpack.c.l.b16 %v2745
        %v3153 = vunpack.c.l.b16 %v2746
        %v3154 = vunpack.c.l.b16 %v2747
        %v3155 = vunpack.c.l.b16 %v2748
        %v3156 = vunpack.c.l.b16 %v2749
        %v3157 = vunpack.c.l.b16 %v2750
        %v3158 = vunpack.c.l.b16 %v2751
        %v3159 = vunpack.c.l.b16 %v2752
        %v3160 = vunpack.c.l.b16 %v2753
        %v3161 = vunpack.c.l.b16 %v2754
        %v3162 = vunpack.c.l.b16 %v2755
        %v3163 = vunpack.c.l.b16 %v2756
        %v3164 = vunpack.c.l.b16 %v2757
        %v3165 = vunpack.c.l.b16 %v2758
        %v3166 = vunpack.c.l.b16 %v2759
        %v3167 = vunpack.c.l.b16 %v2760
        %v3168 = vunpack.c.l.b16 %v2761
        %v3169 = vunpack.c.l.b16 %v2762
        %v3170 = vunpack.c.l.b16 %v2763
        %v3171 = vunpack.c.l.b16 %v2764
        %v3172 = vunpack.c.l.b16 %v2765
        %v3173 = vunpack.c.l.b16 %v2766
        %v3174 = vunpack.c.l.b16 %v2767
        %v3175 = vunpack.c.l.b16 %v2768
        %v3176 = vunpack.c.l.b16 %v2769
        %v3177 = vunpack.c.l.b16 %v2770
        %v3178 = vunpack.c.l.b16 %v2771
        %v3179 = vunpack.c.l.b16 %v2772
        %v3180 = vunpack.c.l.b16 %v2773
        %v3181 = vunpack.c.l.b16 %v2774
        %v3182 = vunpack.c.l.b16 %v2775
        %v3183 = vunpack.c.l.b16 %v2776
        %v3184 = vunpack.c.l.b16 %v2777
        %v3185 = vunpack.c.l.b16 %v2778
        %v3186 = vunpack.c.l.b16 %v2779
        %v3187 = vunpack.c.l.b16 %v2780
        %v3188 = vunpack.c.l.b16 %v2781
        %v3189 = vunpack.c.l.b16 %v2782
        %v3190 = vunpack.c.l.b16 %v2783
        %v3191 = vunpack.c.l.b16 %v2784
        %v3192 = vunpack.c.l.b16 %v2785
        %v3193 = vunpack.c.l.b16 %v2786
        %v3194 = vunpack.c.l.b16 %v2787
        %v3195 = vunpack.c.l.b16 %v2788
        %v3196 = vunpack.c.l.b16 %v2789
        %v3197 = vunpack.c.l.b16 %v2790
        %v3198 = vunpack.c.l.b16 %v2791
        %v3199 = vunpack.c.l.b16 %v2792
        %v3200 = vunpack.c.l.b16 %v2793
        %v3201 = vunpack.c.l.b16 %v2794
        %v3202 = vunpack.c.l.b16 %v2795
        %v3203 = vunpack.c.l.b16 %v2796
        %v3204 = vunpack.c.l.b16 %v2797
        %v3205 = vunpack.c.l.b16 %v2798
        %v3206 = vunpack.c.l.b16 %v2799
        %v3207 = vunpack.c.l.b16 %v2800
        %v3208 = vunpack.c.l.b16 %v2801
        %v3209 = vunpack.c.l.b16 %v2802
        %v3210 = vunpack.c.l.b16 %v2803
        %v3211 = vunpack.c.l.b16 %v2804
        %v3212 = vunpack.c.l.b16 %v2805
        %v3213 = vunpack.c.l.b16 %v2806
        %v3214 = vunpack.c.l.b16 %v2807
        %v3215 = vunpack.c.l.b16 %v2808
        %v3216 = vunpack.c.l.b16 %v2809
        %v3217 = vunpack.c.l.b16 %v2810
        %v3218 = vunpack.c.l.b16 %v2811
        %v3219 = vunpack.c.l.b16 %v2812
        %v3220 = vunpack.c.l.b16 %v2813
        %v3221 = vunpack.c.l.b16 %v2814
        %v3222 = vunpack.c.l.b16 %v2815
        %v3223 = vunpack.c.l.b16 %v2816
        %v3224 = vunpack.c.l.b16 %v2817
        %v3225 = vunpack.c.l.b16 %v2818
        %v3226 = vunpack.c.l.b16 %v2819
        %v3227 = vunpack.c.l.b16 %v2820
        %v3228 = vunpack.c.l.b16 %v2821
        %v3229 = vunpack.c.l.b16 %v2822
        %v3230 = vunpack.c.l.b16 %v2823
        %v3231 = vunpack.c.l.b16 %v2824
        %v3232 = vunpack.c.l.b16 %v2825
        %v3233 = vunpack.c.l.b16 %v2826
        %v3234 = vunpack.c.l.b16 %v2827
        %v3235 = vunpack.c.l.b16 %v2828
        %v3236 = vunpack.c.l.b16 %v2829
        %v3237 = vunpack.c.l.b16 %v2830
        %v3238 = vunpack.c.l.b16 %v2831
        %v3239 = vunpack.c.l.b16 %v2832
        %v3240 = vunpack.c.l.b16 %v2833
        %v3241 = vunpack.c.l.b16 %v2834
        %v3242 = vunpack.c.l.b16 %v2835
        %v3243 = vunpack.c.l.b16 %v2836
        %v3244 = vunpack.c.l.b16 %v2837
        %v3245 = vunpack.c.l.b16 %v2838
        %v3246 = vunpack.c.l.b16 %v2839
        %v3247 = vunpack.c.l.b16 %v2840
        %v3248 = vunpack.c.l.b16 %v2841
        %v3249 = vunpack.c.l.b16 %v2842
        %v3250 = vunpack.c.l.b16 %v2843
        %v3251 = vunpack.c.l.b16 %v2844
        %v3252 = vunpack.c.l.b16 %v2845
        %v3253 = vunpack.c.l.b16 %v2846
        %v3254 = vunpack.c.l.b16 %v2847
        %v3255 = vunpack.c.l.b16 %v2848
        %v3256 = vunpack.c.l.b16 %v2849
        %v3257 = vunpack.c.l.b16 %v2850
        %v3258 = vunpack.c.l.b16 %v2851
        %v3259 = vunpack.c.l.b16 %v2852
        %v3260 = vunpack.c.l.b16 %v2853
        %v3261 = vunpack.c.l.b16 %v2854
        %v3262 = vunpack.c.l.b16 %v2855
        %v3263 = vunpack.c.l.b16 %v2856
        %v3264 = vunpack.c.l.b16 %v2857
        %v3265 = vunpack.c.l.b16 %v2858
        %v3266 = vunpack.c.l.b16 %v2859
        %v3267 = vunpack.c.l.b16 %v2860
        %v3268 = vunpack.c.l.b16 %v2861
        %v3269 = vunpack.c.l.b16 %v2862
        %v3270 = vunpack.c.l.b16 %v2863
        %v3271 = vunpack.c.l.b16 %v2864
        %v3272 = vunpack.c.l.b16 %v2865
        %v3273 = vunpack.c.l.b16 %v2866
        %v3274 = vunpack.c.l.b16 %v2867
        %v3275 = vunpack.c.l.b16 %v2868
        %v3276 = vunpack.c.l.b16 %v2869
        %v3277 = vunpack.c.l.b16 %v2870
        %v3278 = vunpack.c.l.b16 %v2871
        %v3279 = vunpack.c.l.b16 %v2872
        %v3280 = vunpack.c.l.b16 %v2873
        %v3281 = vunpack.c.l.b16 %v2874
        %v3282 = vunpack.c.l.b16 %v2875
        %v3283 = vunpack.c.l.b16 %v2876
        %v3284 = vunpack.c.l.b16 %v2877
        %v3285 = vunpack.c.l.b16 %v2878
        %v3286 = vunpack.c.l.b16 %v2879
        %v3287 = vunpack.c.l.b16 %v2880
        %v3288 = vunpack.c.l.b16 %v2881
        %v3289 = vunpack.c.l.b16 %v2882
        %v3290 = vunpack.c.l.b16 %v2883
        %v3291 = vunpack.c.l.b16 %v2884
        %v3292 = vunpack.c.l.b16 %v2885
        %v3293 = vunpack.c.l.b16 %v2886
        %v3294 = vunpack.c.l.b16 %v2887
        %v3295 = vunpack.c.l.b16 %v2888
        %v3296 = vunpack.c.l.b16 %v2889
        %v3297 = vunpack.c.l.b16 %v2890
        %v3298 = vunpack.c.l.b16 %v2891
        %v3299 = vunpack.c.l.b16 %v2892
        %v3300 = vunpack.c.l.b16 %v2893
        %v3301 = vunpack.c.l.b16 %v2894
        %v3302 = vunpack.c.l.b16 %v2895
        %v3303 = vunpack.c.l.b16 %v2896
        %v3304 = vunpack.c.l.b16 %v2897
        %v3305 = vunpack.c.l.b16 %v2898
        %v3306 = vunpack.c.l.b16 %v2899
        %v3307 = vunpack.c.l.b16 %v2900
        %v3308 = vunpack.c.l.b16 %v2901
        %v3309 = vunpack.c.l.b16 %v2902
        %v3310 = vunpack.c.l.b16 %v2903
        %v3311 = vunpack.c.l.b16 %v2904
        %v3312 = vpack.c.b16 %v3113, %v3112
        %v3313 = vpack.c.b16 %v3115, %v3114
        %v3314 = vpack.c.b16 %v3117, %v3116
        %v3315 = vpack.c.b16 %v3119, %v3118
        %v3316 = vpack.c.b16 %v3121, %v3120
        %v3317 = vpack.c.b16 %v3123, %v3122
        %v3318 = vpack.c.b16 %v3125, %v3124
        %v3319 = vpack.c.b16 %v3127, %v3126
        %v3320 = vpack.c.b16 %v3129, %v3128
        %v3321 = vpack.c.b16 %v3131, %v3130
        %v3322 = vpack.c.b16 %v3133, %v3132
        %v3323 = vpack.c.b16 %v3135, %v3134
        %v3324 = vpack.c.b16 %v3137, %v3136
        %v3325 = vpack.c.b16 %v3139, %v3138
        %v3326 = vpack.c.b16 %v3141, %v3140
        %v3327 = vpack.c.b16 %v3143, %v3142
        %v3328 = vpack.c.b16 %v3145, %v3144
        %v3329 = vpack.c.b16 %v3147, %v3146
        %v3330 = vpack.c.b16 %v3149, %v3148
        %v3331 = vpack.c.b16 %v3151, %v3150
        %v3332 = vpack.c.b16 %v3153, %v3152
        %v3333 = vpack.c.b16 %v3155, %v3154
        %v3334 = vpack.c.b16 %v3157, %v3156
        %v3335 = vpack.c.b16 %v3159, %v3158
        %v3336 = vpack.c.b16 %v3161, %v3160
        %v3337 = vpack.c.b16 %v3163, %v3162
        %v3338 = vpack.c.b16 %v3165, %v3164
        %v3339 = vpack.c.b16 %v3167, %v3166
        %v3340 = vpack.c.b16 %v3169, %v3168
        %v3341 = vpack.c.b16 %v3171, %v3170
        %v3342 = vpack.c.b16 %v3173, %v3172
        %v3343 = vpack.c.b16 %v3175, %v3174
        %v3344 = vpack.c.b16 %v3177, %v3176
        %v3345 = vpack.c.b16 %v3179, %v3178
        %v3346 = vpack.c.b16 %v3181, %v3180
        %v3347 = vpack.c.b16 %v3183, %v3182
        %v3348 = vpack.c.b16 %v3185, %v3184
        %v3349 = vpack.c.b16 %v3187, %v3186
        %v3350 = vpack.c.b16 %v3189, %v3188
        %v3351 = vpack.c.b16 %v3191, %v3190
        %v3352 = vpack.c.b16 %v3193, %v3192
        %v3353 = vpack.c.b16 %v3195, %v3194
        %v3354 = vpack.c.b16 %v3197, %v3196
        %v3355 = vpack.c.b16 %v3199, %v3198
        %v3356 = vpack.c.b16 %v3201, %v3200
        %v3357 = vpack.c.b16 %v3203, %v3202
        %v3358 = vpack.c.b16 %v3205, %v3204
        %v3359 = vpack.c.b16 %v3207, %v3206
        %v3360 = vpack.c.b16 %v3209, %v3208
        %v3361 = vpack.c.b16 %v3211, %v3210
        %v3362 = vpack.c.b16 %v3213, %v3212
        %v3363 = vpack.c.b16 %v3215, %v3214
        %v3364 = vpack.c.b16 %v3217, %v3216
        %v3365 = vpack.c.b16 %v3219, %v3218
        %v3366 = vpack.c.b16 %v3221, %v3220
        %v3367 = vpack.c.b16 %v3223, %v3222
        %v3368 = vpack.c.b16 %v3225, %v3224
        %v3369 = vpack.c.b16 %v3227, %v3226
        %v3370 = vpack.c.b16 %v3229, %v3228
        %v3371 = vpack.c.b16 %v3231, %v3230
        %v3372 = vpack.c.b16 %v3233, %v3232
        %v3373 = vpack.c.b16 %v3235, %v3234
        %v3374 = vpack.c.b16 %v3237, %v3236
        %v3375 = vpack.c.b16 %v3239, %v3238
        %v3376 = vpack.c.b16 %v3241, %v3240
        %v3377 = vpack.c.b16 %v3243, %v3242
        %v3378 = vpack.c.b16 %v3245, %v3244
        %v3379 = vpack.c.b16 %v3247, %v3246
        %v3380 = vpack.c.b16 %v3249, %v3248
        %v3381 = vpack.c.b16 %v3251, %v3250
        %v3382 = vpack.c.b16 %v3253, %v3252
        %v3383 = vpack.c.b16 %v3255, %v3254
        %v3384 = vpack.c.b16 %v3257, %v3256
        %v3385 = vpack.c.b16 %v3259, %v3258
        %v3386 = vpack.c.b16 %v3261, %v3260
        %v3387 = vpack.c.b16 %v3263, %v3262
        %v3388 = vpack.c.b16 %v3265, %v3264
        %v3389 = vpack.c.b16 %v3267, %v3266
        %v3390 = vpack.c.b16 %v3269, %v3268
        %v3391 = vpack.c.b16 %v3271, %v3270
        %v3392 = vpack.c.b16 %v3273, %v3272
        %v3393 = vpack.c.b16 %v3275, %v3274
        %v3394 = vpack.c.b16 %v3277, %v3276
        %v3395 = vpack.c.b16 %v3279, %v3278
        %v3396 = vpack.c.b16 %v3281, %v3280
        %v3397 = vpack.c.b16 %v3283, %v3282
        %v3398 = vpack.c.b16 %v3285, %v3284
        %v3399 = vpack.c.b16 %v3287, %v3286
        %v3400 = vpack.c.b16 %v3289, %v3288
        %v3401 = vpack.c.b16 %v3291, %v3290
        %v3402 = vpack.c.b16 %v3293, %v3292
        %v3403 = vpack.c.b16 %v3295, %v3294
        %v3404 = vpack.c.b16 %v3297, %v3296
        %v3405 = vpack.c.b16 %v3299, %v3298
        %v3406 = vpack.c.b16 %v3301, %v3300
        %v3407 = vpack.c.b16 %v3303, %v3302
        %v3408 = vpack.c.b16 %v3305, %v3304
        %v3409 = vpack.c.b16 %v3307, %v3306
        %v3410 = vpack.c.b16 %v3309, %v3308
        %v3411 = vpack.c.b16 %v3311, %v3310
        %v3513 = vsel %vm1041, %v1872, 0
        %v3516 = vsel %vm1041, %v1923, 0
        %v3519 = vsel %vm1041, %v1974, 0
        %v3522 = vsel %vm1041, %v2025, 0
        %v3525 = vsel %vm1041, %v2076, 0
        %v3528 = vsel %vm1041, %v2127, 0
        %v3531 = vsel %vm1041, %v2178, 0
        %v3534 = vsel %vm1041, %v2229, 0
        %v3537 = vsel %vm1041, %v2280, 0
        %v3540 = vsel %vm1041, %v2331, 0
        %v3543 = vsel %vm1041, %v2382, 0
        %v3546 = vsel %vm1041, %v2433, 0
        %v3549 = vsel %vm1041, %v2484, 0
        %v3552 = vsel %vm1041, %v2536, 0
        %v3555 = vsel %vm1041, %v2588, 0
        %v3558 = vsel %vm1041, %v2640, 0
        %3560 = vmatprep.subr.bf16.mxu0 0
        %3561 = vmatpush1.bf16.msra.mxu0 %v3312
        %3562 = vmatprep.subr.bf16.mxu0 0
        %3563 = vmatpush1.bf16.msra.mxu0 %v3313
        %3564 = vmatprep.subr.bf16.mxu0 0
        %3565 = vmatpush1.bf16.msra.mxu0 %v3314
        %3566 = vmatprep.subr.bf16.mxu0 0
        %3567 = vmatpush1.bf16.msra.mxu0 %v3315
        %3568 = vmatprep.subr.bf16.mxu0 0
        %3569 = vmatpush1.bf16.msra.mxu0 %v3316
        %3570 = vmatprep.subr.bf16.mxu0 0
        %3571 = vmatpush1.bf16.msra.mxu0 %v3317
        %3572 = vmatprep.subr.bf16.mxu0 0
        %3573 = vmatpush1.bf16.msra.mxu0 %v3318
        %3574 = vmatprep.subr.bf16.mxu0 0
        %3575 = vmatpush1.bf16.msra.mxu0 %v3319
        %3576 = vmatprep.subr.bf16.mxu0 0
        %3577 = vmatpush1.bf16.msra.mxu0 %v3320
        %3578 = vmatprep.subr.bf16.mxu0 0
        %3579 = vmatpush1.bf16.msra.mxu0 %v3321
        %3580 = vmatprep.subr.bf16.mxu0 0
        %3581 = vmatpush1.bf16.msra.mxu0 %v3322
        %3582 = vmatprep.subr.bf16.mxu0 0
        %3583 = vmatpush1.bf16.msra.mxu0 %v3323
        %3584 = vmatprep.subr.bf16.mxu0 0
        %3585 = vmatpush1.bf16.msra.mxu0 %v3324
        %3586 = vmatprep.subr.bf16.mxu0 0
        %3587 = vmatpush1.bf16.msra.mxu0 %v3325
        %3588 = vmatprep.subr.bf16.mxu0 0
        %3589 = vmatpush1.bf16.msra.mxu0 %v3326
        %3590 = vmatprep.subr.bf16.mxu0 0
        %3591 = vmatpush1.bf16.msra.mxu0 %v3327
        %3592 = vmatprep.mubr.bf16.mxu0 %v1092
        %3593 = vmatmul.mubr.bf16.gmra.mrb[0].mxu0 %v1043
        %v3594 = vpop.f32.mrb[0].mxu0
        %v3595 = vadd.f32 %v2910, %v3594
        %v3596 = vpop.f32.mrb[0].mxu0
        %v3597 = vpop.f32.mrb[0].mxu0
        %v3598 = vadd.f32 %v2910, %v3597
        %v3599 = vpop.f32.mrb[0].mxu0
        %3600 = vmatprep.mubr.bf16.mxu0 %v1096
        %3601 = vmatmul.mubr.bf16.gmra.mrb[0].mxu0 %v1046
        %v3602 = vpop.f32.mrb[0].mxu0
        %v3603 = vadd.f32 %v2910, %v3602
        %v3604 = vpop.f32.mrb[0].mxu0
        %v3605 = vpop.f32.mrb[0].mxu0
        %v3606 = vadd.f32 %v2910, %v3605
        %v3607 = vpop.f32.mrb[0].mxu0
        %3608 = vmatprep.mubr.bf16.mxu0 %v1100
        %3609 = vmatmul.mubr.bf16.gmra.mrb[0].mxu0 %v1049
        %v3610 = vpop.f32.mrb[0].mxu0
        %v3611 = vadd.f32 %v2910, %v3610
        %v3612 = vpop.f32.mrb[0].mxu0
        %v3613 = vpop.f32.mrb[0].mxu0
        %v3614 = vadd.f32 %v2910, %v3613
        %v3615 = vpop.f32.mrb[0].mxu0
        %3616 = vmatprep.mubr.bf16.mxu0 %v1104
        %3617 = vmatmul.mubr.bf16.gmra.mrb[0].mxu0 %v1052
        %v3618 = vpop.f32.mrb[0].mxu0
        %v3619 = vadd.f32 %v2910, %v3618
        %v3620 = vpop.f32.mrb[0].mxu0
        %v3621 = vpop.f32.mrb[0].mxu0
        %v3622 = vadd.f32 %v2910, %v3621
        %v3623 = vpop.f32.mrb[0].mxu0
        %3624 = vmatprep.mubr.bf16.mxu0 %v1108
        %3625 = vmatmul.mubr.bf16.gmra.mrb[0].mxu0 %v1055
        %v3626 = vpop.f32.mrb[0].mxu0
        %v3627 = vadd.f32 %v2910, %v3626
        %v3628 = vpop.f32.mrb[0].mxu0
        %v3629 = vpop.f32.mrb[0].mxu0
        %v3630 = vadd.f32 %v2910, %v3629
        %v3631 = vpop.f32.mrb[0].mxu0
        %3632 = vmatprep.mubr.bf16.mxu0 %v1112
        %3633 = vmatmul.mubr.bf16.gmra.mrb[0].mxu0 %v1058
        %v3634 = vpop.f32.mrb[0].mxu0
        %v3635 = vadd.f32 %v2910, %v3634
        %v3636 = vpop.f32.mrb[0].mxu0
        %v3637 = vpop.f32.mrb[0].mxu0
        %v3638 = vadd.f32 %v2910, %v3637
        %v3639 = vpop.f32.mrb[0].mxu0
        %3640 = vmatprep.mubr.bf16.mxu0 %v1116
        %3641 = vmatmul.mubr.bf16.gmra.mrb[0].mxu0 %v1061
        %v3642 = vpop.f32.mrb[0].mxu0
        %v3643 = vadd.f32 %v2910, %v3642
        %v3644 = vpop.f32.mrb[0].mxu0
        %v3645 = vpop.f32.mrb[0].mxu0
        %v3646 = vadd.f32 %v2910, %v3645
        %v3647 = vpop.f32.mrb[0].mxu0
        %3648 = vmatprep.mubr.bf16.mxu0 %v1120
        %3649 = vmatmul.mubr.bf16.gmra.mrb[0].mxu0 %v1064
        %v3650 = vpop.f32.mrb[0].mxu0
        %v3651 = vadd.f32 %v2910, %v3650
        %v3652 = vpop.f32.mrb[0].mxu0
        %v3653 = vpop.f32.mrb[0].mxu0
        %v3654 = vadd.f32 %v2910, %v3653
        %v3655 = vpop.f32.mrb[0].mxu0
        %3656 = vmatprep.mubr.bf16.mxu0 %v1124
        %3657 = vmatmul.mubr.bf16.gmra.mrb[0].mxu0 %v1067
        %v3658 = vpop.f32.mrb[0].mxu0
        %v3659 = vadd.f32 %v2910, %v3658
        %v3660 = vpop.f32.mrb[0].mxu0
        %v3661 = vpop.f32.mrb[0].mxu0
        %v3662 = vadd.f32 %v2910, %v3661
        %v3663 = vpop.f32.mrb[0].mxu0
        %3664 = vmatprep.mubr.bf16.mxu0 %v1128
        %3665 = vmatmul.mubr.bf16.gmra.mrb[0].mxu0 %v1070
        %v3666 = vpop.f32.mrb[0].mxu0
        %v3667 = vadd.f32 %v2910, %v3666
        %v3668 = vpop.f32.mrb[0].mxu0
        %v3669 = vpop.f32.mrb[0].mxu0
        %v3670 = vadd.f32 %v2910, %v3669
        %v3671 = vpop.f32.mrb[0].mxu0
        %3672 = vmatprep.mubr.bf16.mxu0 %v1132
        %3673 = vmatmul.mubr.bf16.gmra.mrb[0].mxu0 %v1073
        %v3674 = vpop.f32.mrb[0].mxu0
        %v3675 = vadd.f32 %v2910, %v3674
        %v3676 = vpop.f32.mrb[0].mxu0
        %v3677 = vpop.f32.mrb[0].mxu0
        %v3678 = vadd.f32 %v2910, %v3677
        %v3679 = vpop.f32.mrb[0].mxu0
        %3680 = vmatprep.mubr.bf16.mxu0 %v1136
        %3681 = vmatmul.mubr.bf16.gmra.mrb[0].mxu0 %v1076
        %v3682 = vpop.f32.mrb[0].mxu0
        %v3683 = vadd.f32 %v2910, %v3682
        %v3684 = vpop.f32.mrb[0].mxu0
        %v3685 = vpop.f32.mrb[0].mxu0
        %v3686 = vadd.f32 %v2910, %v3685
        %v3687 = vpop.f32.mrb[0].mxu0
        %3688 = vmatprep.mubr.bf16.mxu0 %v1140
        %3689 = vmatmul.mubr.bf16.gmra.mrb[0].mxu0 %v1079
        %v3690 = vpop.f32.mrb[0].mxu0
        %v3691 = vadd.f32 %v2910, %v3690
        %v3692 = vpop.f32.mrb[0].mxu0
        %v3693 = vpop.f32.mrb[0].mxu0
        %v3694 = vadd.f32 %v2910, %v3693
        %v3695 = vpop.f32.mrb[0].mxu0
        %3696 = vmatprep.mubr.bf16.mxu0 %v1144
        %3697 = vmatmul.mubr.bf16.gmra.mrb[0].mxu0 %v1082
        %v3698 = vpop.f32.mrb[0].mxu0
        %v3699 = vadd.f32 %v2910, %v3698
        %v3700 = vpop.f32.mrb[0].mxu0
        %v3701 = vpop.f32.mrb[0].mxu0
        %v3702 = vadd.f32 %v2910, %v3701
        %v3703 = vpop.f32.mrb[0].mxu0
        %3704 = vmatprep.mubr.bf16.mxu0 %v1148
        %3705 = vmatmul.mubr.bf16.gmra.mrb[0].mxu0 %v1085
        %v3706 = vpop.f32.mrb[0].mxu0
        %v3707 = vadd.f32 %v2910, %v3706
        %v3708 = vpop.f32.mrb[0].mxu0
        %v3709 = vpop.f32.mrb[0].mxu0
        %v3710 = vadd.f32 %v2910, %v3709
        %v3711 = vpop.f32.mrb[0].mxu0
        %3712 = vmatprep.mubr.bf16.mxu0 %v1152
        %3713 = vmatmul.mubr.bf16.gmra.mrb[0].mxu0 %v1088
        %v3714 = vpop.f32.mrb[0].mxu0
        %v3715 = vadd.f32 %v2910, %v3714
        %v3716 = vpop.f32.mrb[0].mxu0
        %v3717 = vpop.f32.mrb[0].mxu0
        %v3718 = vadd.f32 %v2910, %v3717
        %v3719 = vpop.f32.mrb[0].mxu0
        %3720 = vdwg.mxu0
        %3721 = vmatprep.subr.bf16.mxu0 0
        %3722 = vmatpush1.bf16.msra.mxu0 %v3328
        %3723 = vmatprep.subr.bf16.mxu0 0
        %3724 = vmatpush1.bf16.msra.mxu0 %v3329
        %3725 = vmatprep.subr.bf16.mxu0 0
        %3726 = vmatpush1.bf16.msra.mxu0 %v3330
        %3727 = vmatprep.subr.bf16.mxu0 0
        %3728 = vmatpush1.bf16.msra.mxu0 %v3331
        %3729 = vmatprep.subr.bf16.mxu0 0
        %3730 = vmatpush1.bf16.msra.mxu0 %v3332
        %3731 = vmatprep.subr.bf16.mxu0 0
        %3732 = vmatpush1.bf16.msra.mxu0 %v3333
        %3733 = vmatprep.subr.bf16.mxu0 0
        %3734 = vmatpush1.bf16.msra.mxu0 %v3334
        %3735 = vmatprep.subr.bf16.mxu0 0
        %3736 = vmatpush1.bf16.msra.mxu0 %v3335
        %3737 = vmatprep.subr.bf16.mxu0 0
        %3738 = vmatpush1.bf16.msra.mxu0 %v3336
        %3739 = vmatprep.subr.bf16.mxu0 0
        %3740 = vmatpush1.bf16.msra.mxu0 %v3337
        %3741 = vmatprep.subr.bf16.mxu0 0
        %3742 = vmatpush1.bf16.msra.mxu0 %v3338
        %3743 = vmatprep.subr.bf16.mxu0 0
        %3744 = vmatpush1.bf16.msra.mxu0 %v3339
        %3745 = vmatprep.subr.bf16.mxu0 0
        %3746 = vmatpush1.bf16.msra.mxu0 %v3340
        %3747 = vmatprep.subr.bf16.mxu0 0
        %3748 = vmatpush1.bf16.msra.mxu0 %v3341
        %3749 = vmatprep.subr.bf16.mxu0 0
        %3750 = vmatpush1.bf16.msra.mxu0 %v3342
        %3751 = vmatprep.subr.bf16.mxu0 0
        %3752 = vmatpush1.bf16.msra.mxu0 %v3343
        %3753 = vmatprep.mubr.bf16.mxu0 %v1220
        %3754 = vmatmul.mubr.bf16.gmra.mrb[0].mxu0 %v1156
        %v3755 = vpop.f32.mrb[0].mxu0
        %v3756 = vadd.f32 %v3595, %v3755
        %v3757 = vpop.f32.mrb[0].mxu0
        %v3758 = vpop.f32.mrb[0].mxu0
        %v3759 = vadd.f32 %v3598, %v3758
        %v3760 = vpop.f32.mrb[0].mxu0
        %3761 = vmatprep.mubr.bf16.mxu0 %v1224
        %3762 = vmatmul.mubr.bf16.gmra.mrb[0].mxu0 %v1160
        %v3763 = vpop.f32.mrb[0].mxu0
        %v3764 = vadd.f32 %v3603, %v3763
        %v3765 = vpop.f32.mrb[0].mxu0
        %v3766 = vpop.f32.mrb[0].mxu0
        %v3767 = vadd.f32 %v3606, %v3766
        %v3768 = vpop.f32.mrb[0].mxu0
        %3769 = vmatprep.mubr.bf16.mxu0 %v1228
        %3770 = vmatmul.mubr.bf16.gmra.mrb[0].mxu0 %v1164
        %v3771 = vpop.f32.mrb[0].mxu0
        %v3772 = vadd.f32 %v3611, %v3771
        %v3773 = vpop.f32.mrb[0].mxu0
        %v3774 = vpop.f32.mrb[0].mxu0
        %v3775 = vadd.f32 %v3614, %v3774
        %v3776 = vpop.f32.mrb[0].mxu0
        %3777 = vmatprep.mubr.bf16.mxu0 %v1232
        %3778 = vmatmul.mubr.bf16.gmra.mrb[0].mxu0 %v1168
        %v3779 = vpop.f32.mrb[0].mxu0
        %v3780 = vadd.f32 %v3619, %v3779
        %v3781 = vpop.f32.mrb[0].mxu0
        %v3782 = vpop.f32.mrb[0].mxu0
        %v3783 = vadd.f32 %v3622, %v3782
        %v3784 = vpop.f32.mrb[0].mxu0
        %3785 = vmatprep.mubr.bf16.mxu0 %v1236
        %3786 = vmatmul.mubr.bf16.gmra.mrb[0].mxu0 %v1172
        %v3787 = vpop.f32.mrb[0].mxu0
        %v3788 = vadd.f32 %v3627, %v3787
        %v3789 = vpop.f32.mrb[0].mxu0
        %v3790 = vpop.f32.mrb[0].mxu0
        %v3791 = vadd.f32 %v3630, %v3790
        %v3792 = vpop.f32.mrb[0].mxu0
        %3793 = vmatprep.mubr.bf16.mxu0 %v1240
        %3794 = vmatmul.mubr.bf16.gmra.mrb[0].mxu0 %v1176
        %v3795 = vpop.f32.mrb[0].mxu0
        %v3796 = vadd.f32 %v3635, %v3795
        %v3797 = vpop.f32.mrb[0].mxu0
        %v3798 = vpop.f32.mrb[0].mxu0
        %v3799 = vadd.f32 %v3638, %v3798
        %v3800 = vpop.f32.mrb[0].mxu0
        %3801 = vmatprep.mubr.bf16.mxu0 %v1244
        %3802 = vmatmul.mubr.bf16.gmra.mrb[0].mxu0 %v1180
        %v3803 = vpop.f32.mrb[0].mxu0
        %v3804 = vadd.f32 %v3643, %v3803
        %v3805 = vpop.f32.mrb[0].mxu0
        %v3806 = vpop.f32.mrb[0].mxu0
        %v3807 = vadd.f32 %v3646, %v3806
        %v3808 = vpop.f32.mrb[0].mxu0
        %3809 = vmatprep.mubr.bf16.mxu0 %v1248
        %3810 = vmatmul.mubr.bf16.gmra.mrb[0].mxu0 %v1184
        %v3811 = vpop.f32.mrb[0].mxu0
        %v3812 = vadd.f32 %v3651, %v3811
        %v3813 = vpop.f32.mrb[0].mxu0
        %v3814 = vpop.f32.mrb[0].mxu0
        %v3815 = vadd.f32 %v3654, %v3814
        %v3816 = vpop.f32.mrb[0].mxu0
        %3817 = vmatprep.mubr.bf16.mxu0 %v1252
        %3818 = vmatmul.mubr.bf16.gmra.mrb[0].mxu0 %v1188
        %v3819 = vpop.f32.mrb[0].mxu0
        %v3820 = vadd.f32 %v3659, %v3819
        %v3821 = vpop.f32.mrb[0].mxu0
        %v3822 = vpop.f32.mrb[0].mxu0
        %v3823 = vadd.f32 %v3662, %v3822
        %v3824 = vpop.f32.mrb[0].mxu0
        %3825 = vmatprep.mubr.bf16.mxu0 %v1256
        %3826 = vmatmul.mubr.bf16.gmra.mrb[0].mxu0 %v1192
        %v3827 = vpop.f32.mrb[0].mxu0
        %v3828 = vadd.f32 %v3667, %v3827
        %v3829 = vpop.f32.mrb[0].mxu0
        %v3830 = vpop.f32.mrb[0].mxu0
        %v3831 = vadd.f32 %v3670, %v3830
        %v3832 = vpop.f32.mrb[0].mxu0
        %3833 = vmatprep.mubr.bf16.mxu0 %v1260
        %3834 = vmatmul.mubr.bf16.gmra.mrb[0].mxu0 %v1196
        %v3835 = vpop.f32.mrb[0].mxu0
        %v3836 = vadd.f32 %v3675, %v3835
        %v3837 = vpop.f32.mrb[0].mxu0
        %v3838 = vpop.f32.mrb[0].mxu0
        %v3839 = vadd.f32 %v3678, %v3838
        %v3840 = vpop.f32.mrb[0].mxu0
        %3841 = vmatprep.mubr.bf16.mxu0 %v1264
        %3842 = vmatmul.mubr.bf16.gmra.mrb[0].mxu0 %v1200
        %v3843 = vpop.f32.mrb[0].mxu0
        %v3844 = vadd.f32 %v3683, %v3843
        %v3845 = vpop.f32.mrb[0].mxu0
        %v3846 = vpop.f32.mrb[0].mxu0
        %v3847 = vadd.f32 %v3686, %v3846
        %v3848 = vpop.f32.mrb[0].mxu0
        %3849 = vmatprep.mubr.bf16.mxu0 %v1268
        %3850 = vmatmul.mubr.bf16.gmra.mrb[0].mxu0 %v1204
        %v3851 = vpop.f32.mrb[0].mxu0
        %v3852 = vadd.f32 %v3691, %v3851
        %v3853 = vpop.f32.mrb[0].mxu0
        %v3854 = vpop.f32.mrb[0].mxu0
        %v3855 = vadd.f32 %v3694, %v3854
        %v3856 = vpop.f32.mrb[0].mxu0
        %3857 = vmatprep.mubr.bf16.mxu0 %v1272
        %3858 = vmatmul.mubr.bf16.gmra.mrb[0].mxu0 %v1208
        %v3859 = vpop.f32.mrb[0].mxu0
        %v3860 = vadd.f32 %v3699, %v3859
        %v3861 = vpop.f32.mrb[0].mxu0
        %v3862 = vpop.f32.mrb[0].mxu0
        %v3863 = vadd.f32 %v3702, %v3862
        %v3864 = vpop.f32.mrb[0].mxu0
        %3865 = vmatprep.mubr.bf16.mxu0 %v1276
        %3866 = vmatmul.mubr.bf16.gmra.mrb[0].mxu0 %v1212
        %v3867 = vpop.f32.mrb[0].mxu0
        %v3868 = vadd.f32 %v3707, %v3867
        %v3869 = vpop.f32.mrb[0].mxu0
        %v3870 = vpop.f32.mrb[0].mxu0
        %v3871 = vadd.f32 %v3710, %v3870
        %v3872 = vpop.f32.mrb[0].mxu0
        %3873 = vmatprep.mubr.bf16.mxu0 %v1280
        %3874 = vmatmul.mubr.bf16.gmra.mrb[0].mxu0 %v1216
        %v3875 = vpop.f32.mrb[0].mxu0
        %v3876 = vadd.f32 %v3715, %v3875
        %v3877 = vpop.f32.mrb[0].mxu0
        %v3878 = vpop.f32.mrb[0].mxu0
        %v3879 = vadd.f32 %v3718, %v3878
        %v3880 = vpop.f32.mrb[0].mxu0
        %3881 = vdwg.mxu0
        %3882 = vmatprep.subr.bf16.mxu0 0
        %3883 = vmatpush1.bf16.msra.mxu0 %v3344
        %3884 = vmatprep.subr.bf16.mxu0 0
        %3885 = vmatpush1.bf16.msra.mxu0 %v3345
        %3886 = vmatprep.subr.bf16.mxu0 0
        %3887 = vmatpush1.bf16.msra.mxu0 %v3346
        %3888 = vmatprep.subr.bf16.mxu0 0
        %3889 = vmatpush1.bf16.msra.mxu0 %v3347
        %3890 = vmatprep.subr.bf16.mxu0 0
        %3891 = vmatpush1.bf16.msra.mxu0 %v3348
        %3892 = vmatprep.subr.bf16.mxu0 0
        %3893 = vmatpush1.bf16.msra.mxu0 %v3349
        %3894 = vmatprep.subr.bf16.mxu0 0
        %3895 = vmatpush1.bf16.msra.mxu0 %v3350
        %3896 = vmatprep.subr.bf16.mxu0 0
        %3897 = vmatpush1.bf16.msra.mxu0 %v3351
        %3898 = vmatprep.subr.bf16.mxu0 0
        %3899 = vmatpush1.bf16.msra.mxu0 %v3352
        %3900 = vmatprep.subr.bf16.mxu0 0
        %3901 = vmatpush1.bf16.msra.mxu0 %v3353
        %3902 = vmatprep.subr.bf16.mxu0 0
        %3903 = vmatpush1.bf16.msra.mxu0 %v3354
        %3904 = vmatprep.subr.bf16.mxu0 0
        %3905 = vmatpush1.bf16.msra.mxu0 %v3355
        %3906 = vmatprep.subr.bf16.mxu0 0
        %3907 = vmatpush1.bf16.msra.mxu0 %v3356
        %3908 = vmatprep.subr.bf16.mxu0 0
        %3909 = vmatpush1.bf16.msra.mxu0 %v3357
        %3910 = vmatprep.subr.bf16.mxu0 0
        %3911 = vmatpush1.bf16.msra.mxu0 %v3358
        %3912 = vmatprep.subr.bf16.mxu0 0
        %3913 = vmatpush1.bf16.msra.mxu0 %v3359
        %3914 = vmatprep.mubr.bf16.mxu0 %v1049
        %3915 = vmatmul.mubr.bf16.gmra.mrb[0].mxu0 %v1284
        %v3916 = vpop.f32.mrb[0].mxu0
        %v3917 = vadd.f32 %v3756, %v3916
        %v3918 = vpop.f32.mrb[0].mxu0
        %v3919 = vpop.f32.mrb[0].mxu0
        %v3920 = vadd.f32 %v3759, %v3919
        %v3921 = vpop.f32.mrb[0].mxu0
        %3922 = vmatprep.mubr.bf16.mxu0 %v1052
        %3923 = vmatmul.mubr.bf16.gmra.mrb[0].mxu0 %v1288
        %v3924 = vpop.f32.mrb[0].mxu0
        %v3925 = vadd.f32 %v3764, %v3924
        %v3926 = vpop.f32.mrb[0].mxu0
        %v3927 = vpop.f32.mrb[0].mxu0
        %v3928 = vadd.f32 %v3767, %v3927
        %v3929 = vpop.f32.mrb[0].mxu0
        %3930 = vmatprep.mubr.bf16.mxu0 %v1055
        %3931 = vmatmul.mubr.bf16.gmra.mrb[0].mxu0 %v1292
        %v3932 = vpop.f32.mrb[0].mxu0
        %v3933 = vadd.f32 %v3772, %v3932
        %v3934 = vpop.f32.mrb[0].mxu0
        %v3935 = vpop.f32.mrb[0].mxu0
        %v3936 = vadd.f32 %v3775, %v3935
        %v3937 = vpop.f32.mrb[0].mxu0
        %3938 = vmatprep.mubr.bf16.mxu0 %v1058
        %3939 = vmatmul.mubr.bf16.gmra.mrb[0].mxu0 %v1296
        %v3940 = vpop.f32.mrb[0].mxu0
        %v3941 = vadd.f32 %v3780, %v3940
        %v3942 = vpop.f32.mrb[0].mxu0
        %v3943 = vpop.f32.mrb[0].mxu0
        %v3944 = vadd.f32 %v3783, %v3943
        %v3945 = vpop.f32.mrb[0].mxu0
        %3946 = vmatprep.mubr.bf16.mxu0 %v1061
        %3947 = vmatmul.mubr.bf16.gmra.mrb[0].mxu0 %v1300
        %v3948 = vpop.f32.mrb[0].mxu0
        %v3949 = vadd.f32 %v3788, %v3948
        %v3950 = vpop.f32.mrb[0].mxu0
        %v3951 = vpop.f32.mrb[0].mxu0
        %v3952 = vadd.f32 %v3791, %v3951
        %v3953 = vpop.f32.mrb[0].mxu0
        %3954 = vmatprep.mubr.bf16.mxu0 %v1064
        %3955 = vmatmul.mubr.bf16.gmra.mrb[0].mxu0 %v1304
        %v3956 = vpop.f32.mrb[0].mxu0
        %v3957 = vadd.f32 %v3796, %v3956
        %v3958 = vpop.f32.mrb[0].mxu0
        %v3959 = vpop.f32.mrb[0].mxu0
        %v3960 = vadd.f32 %v3799, %v3959
        %v3961 = vpop.f32.mrb[0].mxu0
        %3962 = vmatprep.mubr.bf16.mxu0 %v1067
        %3963 = vmatmul.mubr.bf16.gmra.mrb[0].mxu0 %v1308
        %v3964 = vpop.f32.mrb[0].mxu0
        %v3965 = vadd.f32 %v3804, %v3964
        %v3966 = vpop.f32.mrb[0].mxu0
        %v3967 = vpop.f32.mrb[0].mxu0
        %v3968 = vadd.f32 %v3807, %v3967
        %v3969 = vpop.f32.mrb[0].mxu0
        %3970 = vmatprep.mubr.bf16.mxu0 %v1070
        %3971 = vmatmul.mubr.bf16.gmra.mrb[0].mxu0 %v1312
        %v3972 = vpop.f32.mrb[0].mxu0
        %v3973 = vadd.f32 %v3812, %v3972
        %v3974 = vpop.f32.mrb[0].mxu0
        %v3975 = vpop.f32.mrb[0].mxu0
        %v3976 = vadd.f32 %v3815, %v3975
        %v3977 = vpop.f32.mrb[0].mxu0
        %3978 = vmatprep.mubr.bf16.mxu0 %v1073
        %3979 = vmatmul.mubr.bf16.gmra.mrb[0].mxu0 %v1316
        %v3980 = vpop.f32.mrb[0].mxu0
        %v3981 = vadd.f32 %v3820, %v3980
        %v3982 = vpop.f32.mrb[0].mxu0
        %v3983 = vpop.f32.mrb[0].mxu0
        %v3984 = vadd.f32 %v3823, %v3983
        %v3985 = vpop.f32.mrb[0].mxu0
        %3986 = vmatprep.mubr.bf16.mxu0 %v1076
        %3987 = vmatmul.mubr.bf16.gmra.mrb[0].mxu0 %v1320
        %v3988 = vpop.f32.mrb[0].mxu0
        %v3989 = vadd.f32 %v3828, %v3988
        %v3990 = vpop.f32.mrb[0].mxu0
        %v3991 = vpop.f32.mrb[0].mxu0
        %v3992 = vadd.f32 %v3831, %v3991
        %v3993 = vpop.f32.mrb[0].mxu0
        %3994 = vmatprep.mubr.bf16.mxu0 %v1079
        %3995 = vmatmul.mubr.bf16.gmra.mrb[0].mxu0 %v1324
        %v3996 = vpop.f32.mrb[0].mxu0
        %v3997 = vadd.f32 %v3836, %v3996
        %v3998 = vpop.f32.mrb[0].mxu0
        %v3999 = vpop.f32.mrb[0].mxu0
        %v4000 = vadd.f32 %v3839, %v3999
        %v4001 = vpop.f32.mrb[0].mxu0
        %4002 = vmatprep.mubr.bf16.mxu0 %v1082
        %4003 = vmatmul.mubr.bf16.gmra.mrb[0].mxu0 %v1328
        %v4004 = vpop.f32.mrb[0].mxu0
        %v4005 = vadd.f32 %v3844, %v4004
        %v4006 = vpop.f32.mrb[0].mxu0
        %v4007 = vpop.f32.mrb[0].mxu0
        %v4008 = vadd.f32 %v3847, %v4007
        %v4009 = vpop.f32.mrb[0].mxu0
        %4010 = vmatprep.mubr.bf16.mxu0 %v1085
        %4011 = vmatmul.mubr.bf16.gmra.mrb[0].mxu0 %v1332
        %v4012 = vpop.f32.mrb[0].mxu0
        %v4013 = vadd.f32 %v3852, %v4012
        %v4014 = vpop.f32.mrb[0].mxu0
        %v4015 = vpop.f32.mrb[0].mxu0
        %v4016 = vadd.f32 %v3855, %v4015
        %v4017 = vpop.f32.mrb[0].mxu0
        %4018 = vmatprep.mubr.bf16.mxu0 %v1088
        %4019 = vmatmul.mubr.bf16.gmra.mrb[0].mxu0 %v1336
        %v4020 = vpop.f32.mrb[0].mxu0
        %v4021 = vadd.f32 %v3860, %v4020
        %v4022 = vpop.f32.mrb[0].mxu0
        %v4023 = vpop.f32.mrb[0].mxu0
        %v4024 = vadd.f32 %v3863, %v4023
        %v4025 = vpop.f32.mrb[0].mxu0
        %4026 = vmatprep.mubr.bf16.mxu0 %v1347
        %4027 = vmatmul.mubr.bf16.gmra.mrb[0].mxu0 %v1340
        %v4028 = vpop.f32.mrb[0].mxu0
        %v4029 = vadd.f32 %v3868, %v4028
        %v4030 = vpop.f32.mrb[0].mxu0
        %v4031 = vpop.f32.mrb[0].mxu0
        %v4032 = vadd.f32 %v3871, %v4031
        %v4033 = vpop.f32.mrb[0].mxu0
        %4034 = vmatprep.mubr.bf16.mxu0 %v1350
        %4035 = vmatmul.mubr.bf16.gmra.mrb[0].mxu0 %v1344
        %v4036 = vpop.f32.mrb[0].mxu0
        %v4037 = vadd.f32 %v3876, %v4036
        %v4038 = vpop.f32.mrb[0].mxu0
        %v4039 = vpop.f32.mrb[0].mxu0
        %v4040 = vadd.f32 %v3879, %v4039
        %v4041 = vpop.f32.mrb[0].mxu0
        %4042 = vdwg.mxu0
        %4043 = vmatprep.subr.bf16.mxu0 0
        %4044 = vmatpush1.bf16.msra.mxu0 %v3360
        %4045 = vmatprep.subr.bf16.mxu0 0
        %4046 = vmatpush1.bf16.msra.mxu0 %v3361
        %4047 = vmatprep.subr.bf16.mxu0 0
        %4048 = vmatpush1.bf16.msra.mxu0 %v3362
        %4049 = vmatprep.subr.bf16.mxu0 0
        %4050 = vmatpush1.bf16.msra.mxu0 %v3363
        %4051 = vmatprep.subr.bf16.mxu0 0
        %4052 = vmatpush1.bf16.msra.mxu0 %v3364
        %4053 = vmatprep.subr.bf16.mxu0 0
        %4054 = vmatpush1.bf16.msra.mxu0 %v3365
        %4055 = vmatprep.subr.bf16.mxu0 0
        %4056 = vmatpush1.bf16.msra.mxu0 %v3366
        %4057 = vmatprep.subr.bf16.mxu0 0
        %4058 = vmatpush1.bf16.msra.mxu0 %v3367
        %4059 = vmatprep.subr.bf16.mxu0 0
        %4060 = vmatpush1.bf16.msra.mxu0 %v3368
        %4061 = vmatprep.subr.bf16.mxu0 0
        %4062 = vmatpush1.bf16.msra.mxu0 %v3369
        %4063 = vmatprep.subr.bf16.mxu0 0
        %4064 = vmatpush1.bf16.msra.mxu0 %v3370
        %4065 = vmatprep.subr.bf16.mxu0 0
        %4066 = vmatpush1.bf16.msra.mxu0 %v3371
        %4067 = vmatprep.subr.bf16.mxu0 0
        %4068 = vmatpush1.bf16.msra.mxu0 %v3372
        %4069 = vmatprep.subr.bf16.mxu0 0
        %4070 = vmatpush1.bf16.msra.mxu0 %v3373
        %4071 = vmatprep.subr.bf16.mxu0 0
        %4072 = vmatpush1.bf16.msra.mxu0 %v3374
        %4073 = vmatprep.subr.bf16.mxu0 0
        %4074 = vmatpush1.bf16.msra.mxu0 %v3375
        %4075 = vmatprep.mubr.bf16.mxu0 %v1164
        %4076 = vmatmul.mubr.bf16.gmra.mrb[0].mxu0 %v1100
        %v4077 = vpop.f32.mrb[0].mxu0
        %v4078 = vadd.f32 %v3917, %v4077
        %v4079 = vpop.f32.mrb[0].mxu0
        %v4080 = vpop.f32.mrb[0].mxu0
        %v4081 = vadd.f32 %v3920, %v4080
        %v4082 = vpop.f32.mrb[0].mxu0
        %4083 = vmatprep.mubr.bf16.mxu0 %v1168
        %4084 = vmatmul.mubr.bf16.gmra.mrb[0].mxu0 %v1104
        %v4085 = vpop.f32.mrb[0].mxu0
        %v4086 = vadd.f32 %v3925, %v4085
        %v4087 = vpop.f32.mrb[0].mxu0
        %v4088 = vpop.f32.mrb[0].mxu0
        %v4089 = vadd.f32 %v3928, %v4088
        %v4090 = vpop.f32.mrb[0].mxu0
        %4091 = vmatprep.mubr.bf16.mxu0 %v1172
        %4092 = vmatmul.mubr.bf16.gmra.mrb[0].mxu0 %v1108
        %v4093 = vpop.f32.mrb[0].mxu0
        %v4094 = vadd.f32 %v3933, %v4093
        %v4095 = vpop.f32.mrb[0].mxu0
        %v4096 = vpop.f32.mrb[0].mxu0
        %v4097 = vadd.f32 %v3936, %v4096
        %v4098 = vpop.f32.mrb[0].mxu0
        %4099 = vmatprep.mubr.bf16.mxu0 %v1176
        %4100 = vmatmul.mubr.bf16.gmra.mrb[0].mxu0 %v1112
        %v4101 = vpop.f32.mrb[0].mxu0
        %v4102 = vadd.f32 %v3941, %v4101
        %v4103 = vpop.f32.mrb[0].mxu0
        %v4104 = vpop.f32.mrb[0].mxu0
        %v4105 = vadd.f32 %v3944, %v4104
        %v4106 = vpop.f32.mrb[0].mxu0
        %4107 = vmatprep.mubr.bf16.mxu0 %v1180
        %4108 = vmatmul.mubr.bf16.gmra.mrb[0].mxu0 %v1116
        %v4109 = vpop.f32.mrb[0].mxu0
        %v4110 = vadd.f32 %v3949, %v4109
        %v4111 = vpop.f32.mrb[0].mxu0
        %v4112 = vpop.f32.mrb[0].mxu0
        %v4113 = vadd.f32 %v3952, %v4112
        %v4114 = vpop.f32.mrb[0].mxu0
        %4115 = vmatprep.mubr.bf16.mxu0 %v1184
        %4116 = vmatmul.mubr.bf16.gmra.mrb[0].mxu0 %v1120
        %v4117 = vpop.f32.mrb[0].mxu0
        %v4118 = vadd.f32 %v3957, %v4117
        %v4119 = vpop.f32.mrb[0].mxu0
        %v4120 = vpop.f32.mrb[0].mxu0
        %v4121 = vadd.f32 %v3960, %v4120
        %v4122 = vpop.f32.mrb[0].mxu0
        %4123 = vmatprep.mubr.bf16.mxu0 %v1188
        %4124 = vmatmul.mubr.bf16.gmra.mrb[0].mxu0 %v1124
        %v4125 = vpop.f32.mrb[0].mxu0
        %v4126 = vadd.f32 %v3965, %v4125
        %v4127 = vpop.f32.mrb[0].mxu0
        %v4128 = vpop.f32.mrb[0].mxu0
        %v4129 = vadd.f32 %v3968, %v4128
        %v4130 = vpop.f32.mrb[0].mxu0
        %4131 = vmatprep.mubr.bf16.mxu0 %v1192
        %4132 = vmatmul.mubr.bf16.gmra.mrb[0].mxu0 %v1128
        %v4133 = vpop.f32.mrb[0].mxu0
        %v4134 = vadd.f32 %v3973, %v4133
        %v4135 = vpop.f32.mrb[0].mxu0
        %v4136 = vpop.f32.mrb[0].mxu0
        %v4137 = vadd.f32 %v3976, %v4136
        %v4138 = vpop.f32.mrb[0].mxu0
        %4139 = vmatprep.mubr.bf16.mxu0 %v1196
        %4140 = vmatmul.mubr.bf16.gmra.mrb[0].mxu0 %v1132
        %v4141 = vpop.f32.mrb[0].mxu0
        %v4142 = vadd.f32 %v3981, %v4141
        %v4143 = vpop.f32.mrb[0].mxu0
        %v4144 = vpop.f32.mrb[0].mxu0
        %v4145 = vadd.f32 %v3984, %v4144
        %v4146 = vpop.f32.mrb[0].mxu0
        %4147 = vmatprep.mubr.bf16.mxu0 %v1200
        %4148 = vmatmul.mubr.bf16.gmra.mrb[0].mxu0 %v1136
        %v4149 = vpop.f32.mrb[0].mxu0
        %v4150 = vadd.f32 %v3989, %v4149
        %v4151 = vpop.f32.mrb[0].mxu0
        %v4152 = vpop.f32.mrb[0].mxu0
        %v4153 = vadd.f32 %v3992, %v4152
        %v4154 = vpop.f32.mrb[0].mxu0
        %4155 = vmatprep.mubr.bf16.mxu0 %v1204
        %4156 = vmatmul.mubr.bf16.gmra.mrb[0].mxu0 %v1140
        %v4157 = vpop.f32.mrb[0].mxu0
        %v4158 = vadd.f32 %v3997, %v4157
        %v4159 = vpop.f32.mrb[0].mxu0
        %v4160 = vpop.f32.mrb[0].mxu0
        %v4161 = vadd.f32 %v4000, %v4160
        %v4162 = vpop.f32.mrb[0].mxu0
        %4163 = vmatprep.mubr.bf16.mxu0 %v1208
        %4164 = vmatmul.mubr.bf16.gmra.mrb[0].mxu0 %v1144
        %v4165 = vpop.f32.mrb[0].mxu0
        %v4166 = vadd.f32 %v4005, %v4165
        %v4167 = vpop.f32.mrb[0].mxu0
        %v4168 = vpop.f32.mrb[0].mxu0
        %v4169 = vadd.f32 %v4008, %v4168
        %v4170 = vpop.f32.mrb[0].mxu0
        %4171 = vmatprep.mubr.bf16.mxu0 %v1212
        %4172 = vmatmul.mubr.bf16.gmra.mrb[0].mxu0 %v1148
        %v4173 = vpop.f32.mrb[0].mxu0
        %v4174 = vadd.f32 %v4013, %v4173
        %v4175 = vpop.f32.mrb[0].mxu0
        %v4176 = vpop.f32.mrb[0].mxu0
        %v4177 = vadd.f32 %v4016, %v4176
        %v4178 = vpop.f32.mrb[0].mxu0
        %4179 = vmatprep.mubr.bf16.mxu0 %v1216
        %4180 = vmatmul.mubr.bf16.gmra.mrb[0].mxu0 %v1152
        %v4181 = vpop.f32.mrb[0].mxu0
        %v4182 = vadd.f32 %v4021, %v4181
        %v4183 = vpop.f32.mrb[0].mxu0
        %v4184 = vpop.f32.mrb[0].mxu0
        %v4185 = vadd.f32 %v4024, %v4184
        %v4186 = vpop.f32.mrb[0].mxu0
        %4187 = vmatprep.mubr.bf16.mxu0 %v1362
        %4188 = vmatmul.mubr.bf16.gmra.mrb[0].mxu0 %v1354
        %v4189 = vpop.f32.mrb[0].mxu0
        %v4190 = vadd.f32 %v4029, %v4189
        %v4191 = vpop.f32.mrb[0].mxu0
        %v4192 = vpop.f32.mrb[0].mxu0
        %v4193 = vadd.f32 %v4032, %v4192
        %v4194 = vpop.f32.mrb[0].mxu0
        %4195 = vmatprep.mubr.bf16.mxu0 %v1366
        %4196 = vmatmul.mubr.bf16.gmra.mrb[0].mxu0 %v1358
        %v4197 = vpop.f32.mrb[0].mxu0
        %v4198 = vadd.f32 %v4037, %v4197
        %v4199 = vpop.f32.mrb[0].mxu0
        %v4200 = vpop.f32.mrb[0].mxu0
        %v4201 = vadd.f32 %v4040, %v4200
        %v4202 = vpop.f32.mrb[0].mxu0
        %4203 = vdwg.mxu0
        %4204 = vmatprep.subr.bf16.mxu0 0
        %4205 = vmatpush1.bf16.msra.mxu0 %v3376
        %4206 = vmatprep.subr.bf16.mxu0 0
        %4207 = vmatpush1.bf16.msra.mxu0 %v3377
        %4208 = vmatprep.subr.bf16.mxu0 0
        %4209 = vmatpush1.bf16.msra.mxu0 %v3378
        %4210 = vmatprep.subr.bf16.mxu0 0
        %4211 = vmatpush1.bf16.msra.mxu0 %v3379
        %4212 = vmatprep.subr.bf16.mxu0 0
        %4213 = vmatpush1.bf16.msra.mxu0 %v3380
        %4214 = vmatprep.subr.bf16.mxu0 0
        %4215 = vmatpush1.bf16.msra.mxu0 %v3381
        %4216 = vmatprep.subr.bf16.mxu0 0
        %4217 = vmatpush1.bf16.msra.mxu0 %v3382
        %4218 = vmatprep.subr.bf16.mxu0 0
        %4219 = vmatpush1.bf16.msra.mxu0 %v3383
        %4220 = vmatprep.subr.bf16.mxu0 0
        %4221 = vmatpush1.bf16.msra.mxu0 %v3384
        %4222 = vmatprep.subr.bf16.mxu0 0
        %4223 = vmatpush1.bf16.msra.mxu0 %v3385
        %4224 = vmatprep.subr.bf16.mxu0 0
        %4225 = vmatpush1.bf16.msra.mxu0 %v3386
        %4226 = vmatprep.subr.bf16.mxu0 0
        %4227 = vmatpush1.bf16.msra.mxu0 %v3387
        %4228 = vmatprep.subr.bf16.mxu0 0
        %4229 = vmatpush1.bf16.msra.mxu0 %v3388
        %4230 = vmatprep.subr.bf16.mxu0 0
        %4231 = vmatpush1.bf16.msra.mxu0 %v3389
        %4232 = vmatprep.subr.bf16.mxu0 0
        %4233 = vmatpush1.bf16.msra.mxu0 %v3390
        %4234 = vmatprep.subr.bf16.mxu0 0
        %4235 = vmatpush1.bf16.msra.mxu0 %v3391
        %4236 = vmatprep.mubr.bf16.mxu0 %v1841
        %4237 = vmatmul.mubr.bf16.gmra.mrb[0].mxu0 %v1831
        %v4238 = vpop.f32.mrb[0].mxu0
        %v4239 = vadd.f32 %v4078, %v4238
        %v4240 = vpop.f32.mrb[0].mxu0
        %v4241 = vpop.f32.mrb[0].mxu0
        %v4242 = vadd.f32 %v4081, %v4241
        %v4243 = vpop.f32.mrb[0].mxu0
        %4244 = vmatprep.mubr.bf16.mxu0 %v1892
        %4245 = vmatmul.mubr.bf16.gmra.mrb[0].mxu0 %v1882
        %v4246 = vpop.f32.mrb[0].mxu0
        %v4247 = vadd.f32 %v4086, %v4246
        %v4248 = vpop.f32.mrb[0].mxu0
        %v4249 = vpop.f32.mrb[0].mxu0
        %v4250 = vadd.f32 %v4089, %v4249
        %v4251 = vpop.f32.mrb[0].mxu0
        %4252 = vmatprep.mubr.bf16.mxu0 %v1943
        %4253 = vmatmul.mubr.bf16.gmra.mrb[0].mxu0 %v1933
        %v4254 = vpop.f32.mrb[0].mxu0
        %v4255 = vadd.f32 %v4094, %v4254
        %v4256 = vpop.f32.mrb[0].mxu0
        %v4257 = vpop.f32.mrb[0].mxu0
        %v4258 = vadd.f32 %v4097, %v4257
        %v4259 = vpop.f32.mrb[0].mxu0
        %4260 = vmatprep.mubr.bf16.mxu0 %v1994
        %4261 = vmatmul.mubr.bf16.gmra.mrb[0].mxu0 %v1984
        %v4262 = vpop.f32.mrb[0].mxu0
        %v4263 = vadd.f32 %v4102, %v4262
        %v4264 = vpop.f32.mrb[0].mxu0
        %v4265 = vpop.f32.mrb[0].mxu0
        %v4266 = vadd.f32 %v4105, %v4265
        %v4267 = vpop.f32.mrb[0].mxu0
        %4268 = vmatprep.mubr.bf16.mxu0 %v2045
        %4269 = vmatmul.mubr.bf16.gmra.mrb[0].mxu0 %v2035
        %v4270 = vpop.f32.mrb[0].mxu0
        %v4271 = vadd.f32 %v4110, %v4270
        %v4272 = vpop.f32.mrb[0].mxu0
        %v4273 = vpop.f32.mrb[0].mxu0
        %v4274 = vadd.f32 %v4113, %v4273
        %v4275 = vpop.f32.mrb[0].mxu0
        %4276 = vmatprep.mubr.bf16.mxu0 %v2096
        %4277 = vmatmul.mubr.bf16.gmra.mrb[0].mxu0 %v2086
        %v4278 = vpop.f32.mrb[0].mxu0
        %v4279 = vadd.f32 %v4118, %v4278
        %v4280 = vpop.f32.mrb[0].mxu0
        %v4281 = vpop.f32.mrb[0].mxu0
        %v4282 = vadd.f32 %v4121, %v4281
        %v4283 = vpop.f32.mrb[0].mxu0
        %4284 = vmatprep.mubr.bf16.mxu0 %v2147
        %4285 = vmatmul.mubr.bf16.gmra.mrb[0].mxu0 %v2137
        %v4286 = vpop.f32.mrb[0].mxu0
        %v4287 = vadd.f32 %v4126, %v4286
        %v4288 = vpop.f32.mrb[0].mxu0
        %v4289 = vpop.f32.mrb[0].mxu0
        %v4290 = vadd.f32 %v4129, %v4289
        %v4291 = vpop.f32.mrb[0].mxu0
        %4292 = vmatprep.mubr.bf16.mxu0 %v2198
        %4293 = vmatmul.mubr.bf16.gmra.mrb[0].mxu0 %v2188
        %v4294 = vpop.f32.mrb[0].mxu0
        %v4295 = vadd.f32 %v4134, %v4294
        %v4296 = vpop.f32.mrb[0].mxu0
        %v4297 = vpop.f32.mrb[0].mxu0
        %v4298 = vadd.f32 %v4137, %v4297
        %v4299 = vpop.f32.mrb[0].mxu0
        %4300 = vmatprep.mubr.bf16.mxu0 %v2249
        %4301 = vmatmul.mubr.bf16.gmra.mrb[0].mxu0 %v2239
        %v4302 = vpop.f32.mrb[0].mxu0
        %v4303 = vadd.f32 %v4142, %v4302
        %v4304 = vpop.f32.mrb[0].mxu0
        %v4305 = vpop.f32.mrb[0].mxu0
        %v4306 = vadd.f32 %v4145, %v4305
        %v4307 = vpop.f32.mrb[0].mxu0
        %4308 = vmatprep.mubr.bf16.mxu0 %v2300
        %4309 = vmatmul.mubr.bf16.gmra.mrb[0].mxu0 %v2290
        %v4310 = vpop.f32.mrb[0].mxu0
        %v4311 = vadd.f32 %v4150, %v4310
        %v4312 = vpop.f32.mrb[0].mxu0
        %v4313 = vpop.f32.mrb[0].mxu0
        %v4314 = vadd.f32 %v4153, %v4313
        %v4315 = vpop.f32.mrb[0].mxu0
        %4316 = vmatprep.mubr.bf16.mxu0 %v2351
        %4317 = vmatmul.mubr.bf16.gmra.mrb[0].mxu0 %v2341
        %v4318 = vpop.f32.mrb[0].mxu0
        %v4319 = vadd.f32 %v4158, %v4318
        %v4320 = vpop.f32.mrb[0].mxu0
        %v4321 = vpop.f32.mrb[0].mxu0
        %v4322 = vadd.f32 %v4161, %v4321
        %v4323 = vpop.f32.mrb[0].mxu0
        %4324 = vmatprep.mubr.bf16.mxu0 %v2402
        %4325 = vmatmul.mubr.bf16.gmra.mrb[0].mxu0 %v2392
        %v4326 = vpop.f32.mrb[0].mxu0
        %v4327 = vadd.f32 %v4166, %v4326
        %v4328 = vpop.f32.mrb[0].mxu0
        %v4329 = vpop.f32.mrb[0].mxu0
        %v4330 = vadd.f32 %v4169, %v4329
        %v4331 = vpop.f32.mrb[0].mxu0
        %4332 = vmatprep.mubr.bf16.mxu0 %v2453
        %4333 = vmatmul.mubr.bf16.gmra.mrb[0].mxu0 %v2443
        %v4334 = vpop.f32.mrb[0].mxu0
        %v4335 = vadd.f32 %v4174, %v4334
        %v4336 = vpop.f32.mrb[0].mxu0
        %v4337 = vpop.f32.mrb[0].mxu0
        %v4338 = vadd.f32 %v4177, %v4337
        %v4339 = vpop.f32.mrb[0].mxu0
        %4340 = vmatprep.mubr.bf16.mxu0 %v2504
        %4341 = vmatmul.mubr.bf16.gmra.mrb[0].mxu0 %v2494
        %v4342 = vpop.f32.mrb[0].mxu0
        %v4343 = vadd.f32 %v4182, %v4342
        %v4344 = vpop.f32.mrb[0].mxu0
        %v4345 = vpop.f32.mrb[0].mxu0
        %v4346 = vadd.f32 %v4185, %v4345
        %v4347 = vpop.f32.mrb[0].mxu0
        %4348 = vmatprep.mubr.bf16.mxu0 %v2556
        %4349 = vmatmul.mubr.bf16.gmra.mrb[0].mxu0 %v2546
        %v4350 = vpop.f32.mrb[0].mxu0
        %v4351 = vadd.f32 %v4190, %v4350
        %v4352 = vpop.f32.mrb[0].mxu0
        %v4353 = vpop.f32.mrb[0].mxu0
        %v4354 = vadd.f32 %v4193, %v4353
        %v4355 = vpop.f32.mrb[0].mxu0
        %4356 = vmatprep.mubr.bf16.mxu0 %v2608
        %4357 = vmatmul.mubr.bf16.gmra.mrb[0].mxu0 %v2598
        %v4358 = vpop.f32.mrb[0].mxu0
        %v4359 = vadd.f32 %v4198, %v4358
        %v4360 = vpop.f32.mrb[0].mxu0
        %v4361 = vpop.f32.mrb[0].mxu0
        %v4362 = vadd.f32 %v4201, %v4361
        %v4363 = vpop.f32.mrb[0].mxu0
        %4364 = vdwg.mxu0
        %4365 = vmatprep.subr.bf16.mxu0 0
        %4366 = vmatpush1.bf16.msra.mxu0 %v3392
        %4367 = vmatprep.subr.bf16.mxu0 0
        %4368 = vmatpush1.bf16.msra.mxu0 %v3393
        %4369 = vmatprep.subr.bf16.mxu0 0
        %4370 = vmatpush1.bf16.msra.mxu0 %v3394
        %4371 = vmatprep.subr.bf16.mxu0 0
        %4372 = vmatpush1.bf16.msra.mxu0 %v3395
        %4373 = vmatprep.subr.bf16.mxu0 0
        %4374 = vmatpush1.bf16.msra.mxu0 %v3396
        %4375 = vmatprep.subr.bf16.mxu0 0
        %4376 = vmatpush1.bf16.msra.mxu0 %v3397
        %4377 = vmatprep.subr.bf16.mxu0 0
        %4378 = vmatpush1.bf16.msra.mxu0 %v3398
        %4379 = vmatprep.subr.bf16.mxu0 0
        %4380 = vmatpush1.bf16.msra.mxu0 %v3399
        %4381 = vmatprep.subr.bf16.mxu0 0
        %4382 = vmatpush1.bf16.msra.mxu0 %v3400
        %4383 = vmatprep.subr.bf16.mxu0 0
        %4384 = vmatpush1.bf16.msra.mxu0 %v3401
        %4385 = vmatprep.subr.bf16.mxu0 0
        %4386 = vmatpush1.bf16.msra.mxu0 %v3402
        %4387 = vmatprep.subr.bf16.mxu0 0
        %4388 = vmatpush1.bf16.msra.mxu0 %v3403
        %4389 = vmatprep.subr.bf16.mxu0 0
        %4390 = vmatpush1.bf16.msra.mxu0 %v3404
        %4391 = vmatprep.subr.bf16.mxu0 0
        %4392 = vmatpush1.bf16.msra.mxu0 %v3405
        %4393 = vmatprep.subr.bf16.mxu0 0
        %4394 = vmatpush1.bf16.msra.mxu0 %v3406
        %4395 = vmatprep.subr.bf16.mxu0 0
        %4396 = vmatpush1.bf16.msra.mxu0 %v3407
        %4397 = vmatprep.mubr.bf16.mxu0 %v1861
        %4398 = vmatmul.mubr.bf16.gmra.mrb[0].mxu0 %v1851
        %v4399 = vpop.f32.mrb[0].mxu0
        %v4400 = vadd.f32 %v4239, %v4399
        %v4401 = vpop.f32.mrb[0].mxu0
        %v4402 = vpop.f32.mrb[0].mxu0
        %v4403 = vadd.f32 %v4242, %v4402
        %v4404 = vpop.f32.mrb[0].mxu0
        %4405 = vmatprep.mubr.bf16.mxu0 %v1912
        %4406 = vmatmul.mubr.bf16.gmra.mrb[0].mxu0 %v1902
        %v4407 = vpop.f32.mrb[0].mxu0
        %v4408 = vadd.f32 %v4247, %v4407
        %v4409 = vpop.f32.mrb[0].mxu0
        %v4410 = vpop.f32.mrb[0].mxu0
        %v4411 = vadd.f32 %v4250, %v4410
        %v4412 = vpop.f32.mrb[0].mxu0
        %4413 = vmatprep.mubr.bf16.mxu0 %v1963
        %4414 = vmatmul.mubr.bf16.gmra.mrb[0].mxu0 %v1953
        %v4415 = vpop.f32.mrb[0].mxu0
        %v4416 = vadd.f32 %v4255, %v4415
        %v4417 = vpop.f32.mrb[0].mxu0
        %v4418 = vpop.f32.mrb[0].mxu0
        %v4419 = vadd.f32 %v4258, %v4418
        %v4420 = vpop.f32.mrb[0].mxu0
        %4421 = vmatprep.mubr.bf16.mxu0 %v2014
        %4422 = vmatmul.mubr.bf16.gmra.mrb[0].mxu0 %v2004
        %v4423 = vpop.f32.mrb[0].mxu0
        %v4424 = vadd.f32 %v4263, %v4423
        %v4425 = vpop.f32.mrb[0].mxu0
        %v4426 = vpop.f32.mrb[0].mxu0
        %v4427 = vadd.f32 %v4266, %v4426
        %v4428 = vpop.f32.mrb[0].mxu0
        %4429 = vmatprep.mubr.bf16.mxu0 %v2065
        %4430 = vmatmul.mubr.bf16.gmra.mrb[0].mxu0 %v2055
        %v4431 = vpop.f32.mrb[0].mxu0
        %v4432 = vadd.f32 %v4271, %v4431
        %v4433 = vpop.f32.mrb[0].mxu0
        %v4434 = vpop.f32.mrb[0].mxu0
        %v4435 = vadd.f32 %v4274, %v4434
        %v4436 = vpop.f32.mrb[0].mxu0
        %4437 = vmatprep.mubr.bf16.mxu0 %v2116
        %4438 = vmatmul.mubr.bf16.gmra.mrb[0].mxu0 %v2106
        %v4439 = vpop.f32.mrb[0].mxu0
        %v4440 = vadd.f32 %v4279, %v4439
        %v4441 = vpop.f32.mrb[0].mxu0
        %v4442 = vpop.f32.mrb[0].mxu0
        %v4443 = vadd.f32 %v4282, %v4442
        %v4444 = vpop.f32.mrb[0].mxu0
        %4445 = vmatprep.mubr.bf16.mxu0 %v2167
        %4446 = vmatmul.mubr.bf16.gmra.mrb[0].mxu0 %v2157
        %v4447 = vpop.f32.mrb[0].mxu0
        %v4448 = vadd.f32 %v4287, %v4447
        %v4449 = vpop.f32.mrb[0].mxu0
        %v4450 = vpop.f32.mrb[0].mxu0
        %v4451 = vadd.f32 %v4290, %v4450
        %v4452 = vpop.f32.mrb[0].mxu0
        %4453 = vmatprep.mubr.bf16.mxu0 %v2218
        %4454 = vmatmul.mubr.bf16.gmra.mrb[0].mxu0 %v2208
        %v4455 = vpop.f32.mrb[0].mxu0
        %v4456 = vadd.f32 %v4295, %v4455
        %v4457 = vpop.f32.mrb[0].mxu0
        %v4458 = vpop.f32.mrb[0].mxu0
        %v4459 = vadd.f32 %v4298, %v4458
        %v4460 = vpop.f32.mrb[0].mxu0
        %4461 = vmatprep.mubr.bf16.mxu0 %v2269
        %4462 = vmatmul.mubr.bf16.gmra.mrb[0].mxu0 %v2259
        %v4463 = vpop.f32.mrb[0].mxu0
        %v4464 = vadd.f32 %v4303, %v4463
        %v4465 = vpop.f32.mrb[0].mxu0
        %v4466 = vpop.f32.mrb[0].mxu0
        %v4467 = vadd.f32 %v4306, %v4466
        %v4468 = vpop.f32.mrb[0].mxu0
        %4469 = vmatprep.mubr.bf16.mxu0 %v2320
        %4470 = vmatmul.mubr.bf16.gmra.mrb[0].mxu0 %v2310
        %v4471 = vpop.f32.mrb[0].mxu0
        %v4472 = vadd.f32 %v4311, %v4471
        %v4473 = vpop.f32.mrb[0].mxu0
        %v4474 = vpop.f32.mrb[0].mxu0
        %v4475 = vadd.f32 %v4314, %v4474
        %v4476 = vpop.f32.mrb[0].mxu0
        %4477 = vmatprep.mubr.bf16.mxu0 %v2371
        %4478 = vmatmul.mubr.bf16.gmra.mrb[0].mxu0 %v2361
        %v4479 = vpop.f32.mrb[0].mxu0
        %v4480 = vadd.f32 %v4319, %v4479
        %v4481 = vpop.f32.mrb[0].mxu0
        %v4482 = vpop.f32.mrb[0].mxu0
        %v4483 = vadd.f32 %v4322, %v4482
        %v4484 = vpop.f32.mrb[0].mxu0
        %4485 = vmatprep.mubr.bf16.mxu0 %v2422
        %4486 = vmatmul.mubr.bf16.gmra.mrb[0].mxu0 %v2412
        %v4487 = vpop.f32.mrb[0].mxu0
        %v4488 = vadd.f32 %v4327, %v4487
        %v4489 = vpop.f32.mrb[0].mxu0
        %v4490 = vpop.f32.mrb[0].mxu0
        %v4491 = vadd.f32 %v4330, %v4490
        %v4492 = vpop.f32.mrb[0].mxu0
        %4493 = vmatprep.mubr.bf16.mxu0 %v2473
        %4494 = vmatmul.mubr.bf16.gmra.mrb[0].mxu0 %v2463
        %v4495 = vpop.f32.mrb[0].mxu0
        %v4496 = vadd.f32 %v4335, %v4495
        %v4497 = vpop.f32.mrb[0].mxu0
        %v4498 = vpop.f32.mrb[0].mxu0
        %v4499 = vadd.f32 %v4338, %v4498
        %v4500 = vpop.f32.mrb[0].mxu0
        %4501 = vmatprep.mubr.bf16.mxu0 %v2524
        %4502 = vmatmul.mubr.bf16.gmra.mrb[0].mxu0 %v2514
        %v4503 = vpop.f32.mrb[0].mxu0
        %v4504 = vadd.f32 %v4343, %v4503
        %v4505 = vpop.f32.mrb[0].mxu0
        %v4506 = vpop.f32.mrb[0].mxu0
        %v4507 = vadd.f32 %v4346, %v4506
        %v4508 = vpop.f32.mrb[0].mxu0
        %4509 = vmatprep.mubr.bf16.mxu0 %v2576
        %4510 = vmatmul.mubr.bf16.gmra.mrb[0].mxu0 %v2566
        %v4511 = vpop.f32.mrb[0].mxu0
        %v4512 = vadd.f32 %v4351, %v4511
        %v4513 = vpop.f32.mrb[0].mxu0
        %v4514 = vpop.f32.mrb[0].mxu0
        %v4515 = vadd.f32 %v4354, %v4514
        %v4516 = vpop.f32.mrb[0].mxu0
        %4517 = vmatprep.mubr.bf16.mxu0 %v2628
        %4518 = vmatmul.mubr.bf16.gmra.mrb[0].mxu0 %v2618
        %v4519 = vpop.f32.mrb[0].mxu0
        %v4520 = vadd.f32 %v4359, %v4519
        %v4521 = vpop.f32.mrb[0].mxu0
        %v4522 = vpop.f32.mrb[0].mxu0
        %v4523 = vadd.f32 %v4362, %v4522
        %v4524 = vpop.f32.mrb[0].mxu0
        %4525 = vdwg.mxu0
        %4526 = vmatprep.subr.bf16.mxu0 0
        %4527 = vmatpush1.bf16.msra.mxu0 %v3408
        %4528 = vmatprep.subr.bf16.mxu0 0
        %4529 = vmatpush1.bf16.msra.mxu0 %v3409
        %4530 = vmatprep.subr.bf16.mxu0 0
        %4531 = vmatpush1.bf16.msra.mxu0 %v3410
        %4532 = vmatprep.subr.bf16.mxu0 0
        %4533 = vmatpush1.bf16.msra.mxu0 %v3411
        %4534 = vmatprep.subr.bf16.mxu0 0
        %4535 = vmatpush1.bf16.msra.mxu0 0
        %4536 = vmatprep.subr.bf16.mxu0 0
        %4537 = vmatpush1.bf16.msra.mxu0 0
        %4538 = vmatprep.subr.bf16.mxu0 0
        %4539 = vmatpush1.bf16.msra.mxu0 0
        %4540 = vmatprep.subr.bf16.mxu0 0
        %4541 = vmatpush1.bf16.msra.mxu0 0
        %4542 = vmatprep.subr.bf16.mxu0 0
        %4543 = vmatpush1.bf16.msra.mxu0 0
        %4544 = vmatprep.subr.bf16.mxu0 0
        %4545 = vmatpush1.bf16.msra.mxu0 0
        %4546 = vmatprep.subr.bf16.mxu0 0
        %4547 = vmatpush1.bf16.msra.mxu0 0
        %4548 = vmatprep.subr.bf16.mxu0 0
        %4549 = vmatpush1.bf16.msra.mxu0 0
        %4550 = vmatprep.subr.bf16.mxu0 0
        %4551 = vmatpush1.bf16.msra.mxu0 0
        %4552 = vmatprep.subr.bf16.mxu0 0
        %4553 = vmatpush1.bf16.msra.mxu0 0
        %4554 = vmatprep.subr.bf16.mxu0 0
        %4555 = vmatpush1.bf16.msra.mxu0 0
        %4556 = vmatprep.subr.bf16.mxu0 0
        %4557 = vmatpush1.bf16.msra.mxu0 0
        %4558 = vmatprep.mubr.bf16.mxu0 0
        %4559 = vmatmul.mubr.bf16.gmra.mrb[0].mxu0 %v3513
        %v4560 = vpop.f32.mrb[0].mxu0
        %v4561 = vadd.f32 %v4400, %v4560
        %v4562 = vpop.f32.mrb[0].mxu0
        %v4563 = vpop.f32.mrb[0].mxu0
        %v4564 = vadd.f32 %v4403, %v4563
        %v4565 = vpop.f32.mrb[0].mxu0
        %4566 = vmatprep.mubr.bf16.mxu0 0
        %4567 = vmatmul.mubr.bf16.gmra.mrb[0].mxu0 %v3516
        %v4568 = vpop.f32.mrb[0].mxu0
        %v4569 = vadd.f32 %v4408, %v4568
        %v4570 = vpop.f32.mrb[0].mxu0
        %v4571 = vpop.f32.mrb[0].mxu0
        %v4572 = vadd.f32 %v4411, %v4571
        %v4573 = vpop.f32.mrb[0].mxu0
        %4574 = vmatprep.mubr.bf16.mxu0 0
        %4575 = vmatmul.mubr.bf16.gmra.mrb[0].mxu0 %v3519
        %v4576 = vpop.f32.mrb[0].mxu0
        %v4577 = vadd.f32 %v4416, %v4576
        %v4578 = vpop.f32.mrb[0].mxu0
        %v4579 = vpop.f32.mrb[0].mxu0
        %v4580 = vadd.f32 %v4419, %v4579
        %v4581 = vpop.f32.mrb[0].mxu0
        %4582 = vmatprep.mubr.bf16.mxu0 0
        %4583 = vmatmul.mubr.bf16.gmra.mrb[0].mxu0 %v3522
        %v4584 = vpop.f32.mrb[0].mxu0
        %v4585 = vadd.f32 %v4424, %v4584
        %v4586 = vpop.f32.mrb[0].mxu0
        %v4587 = vpop.f32.mrb[0].mxu0
        %v4588 = vadd.f32 %v4427, %v4587
        %v4589 = vpop.f32.mrb[0].mxu0
        %4590 = vmatprep.mubr.bf16.mxu0 0
        %4591 = vmatmul.mubr.bf16.gmra.mrb[0].mxu0 %v3525
        %v4592 = vpop.f32.mrb[0].mxu0
        %v4593 = vadd.f32 %v4432, %v4592
        %v4594 = vpop.f32.mrb[0].mxu0
        %v4595 = vpop.f32.mrb[0].mxu0
        %v4596 = vadd.f32 %v4435, %v4595
        %v4597 = vpop.f32.mrb[0].mxu0
        %4598 = vmatprep.mubr.bf16.mxu0 0
        %4599 = vmatmul.mubr.bf16.gmra.mrb[0].mxu0 %v3528
        %v4600 = vpop.f32.mrb[0].mxu0
        %v4601 = vadd.f32 %v4440, %v4600
        %v4602 = vpop.f32.mrb[0].mxu0
        %v4603 = vpop.f32.mrb[0].mxu0
        %v4604 = vadd.f32 %v4443, %v4603
        %v4605 = vpop.f32.mrb[0].mxu0
        %4606 = vmatprep.mubr.bf16.mxu0 0
        %4607 = vmatmul.mubr.bf16.gmra.mrb[0].mxu0 %v3531
        %v4608 = vpop.f32.mrb[0].mxu0
        %v4609 = vadd.f32 %v4448, %v4608
        %v4610 = vpop.f32.mrb[0].mxu0
        %v4611 = vpop.f32.mrb[0].mxu0
        %v4612 = vadd.f32 %v4451, %v4611
        %v4613 = vpop.f32.mrb[0].mxu0
        %4614 = vmatprep.mubr.bf16.mxu0 0
        %4615 = vmatmul.mubr.bf16.gmra.mrb[0].mxu0 %v3534
        %v4616 = vpop.f32.mrb[0].mxu0
        %v4617 = vadd.f32 %v4456, %v4616
        %v4618 = vpop.f32.mrb[0].mxu0
        %v4619 = vpop.f32.mrb[0].mxu0
        %v4620 = vadd.f32 %v4459, %v4619
        %v4621 = vpop.f32.mrb[0].mxu0
        %4622 = vmatprep.mubr.bf16.mxu0 0
        %4623 = vmatmul.mubr.bf16.gmra.mrb[0].mxu0 %v3537
        %v4624 = vpop.f32.mrb[0].mxu0
        %v4625 = vadd.f32 %v4464, %v4624
        %v4626 = vpop.f32.mrb[0].mxu0
        %v4627 = vpop.f32.mrb[0].mxu0
        %v4628 = vadd.f32 %v4467, %v4627
        %v4629 = vpop.f32.mrb[0].mxu0
        %4630 = vmatprep.mubr.bf16.mxu0 0
        %4631 = vmatmul.mubr.bf16.gmra.mrb[0].mxu0 %v3540
        %v4632 = vpop.f32.mrb[0].mxu0
        %v4633 = vadd.f32 %v4472, %v4632
        %v4634 = vpop.f32.mrb[0].mxu0
        %v4635 = vpop.f32.mrb[0].mxu0
        %v4636 = vadd.f32 %v4475, %v4635
        %v4637 = vpop.f32.mrb[0].mxu0
        %4638 = vmatprep.mubr.bf16.mxu0 0
        %4639 = vmatmul.mubr.bf16.gmra.mrb[0].mxu0 %v3543
        %v4640 = vpop.f32.mrb[0].mxu0
        %v4641 = vadd.f32 %v4480, %v4640
        %v4642 = vpop.f32.mrb[0].mxu0
        %v4643 = vpop.f32.mrb[0].mxu0
        %v4644 = vadd.f32 %v4483, %v4643
        %v4645 = vpop.f32.mrb[0].mxu0
        %4646 = vmatprep.mubr.bf16.mxu0 0
        %4647 = vmatmul.mubr.bf16.gmra.mrb[0].mxu0 %v3546
        %v4648 = vpop.f32.mrb[0].mxu0
        %v4649 = vadd.f32 %v4488, %v4648
        %v4650 = vpop.f32.mrb[0].mxu0
        %v4651 = vpop.f32.mrb[0].mxu0
        %v4652 = vadd.f32 %v4491, %v4651
        %v4653 = vpop.f32.mrb[0].mxu0
        %4654 = vmatprep.mubr.bf16.mxu0 0
        %4655 = vmatmul.mubr.bf16.gmra.mrb[0].mxu0 %v3549
        %v4656 = vpop.f32.mrb[0].mxu0
        %v4657 = vadd.f32 %v4496, %v4656
        %v4658 = vpop.f32.mrb[0].mxu0
        %v4659 = vpop.f32.mrb[0].mxu0
        %v4660 = vadd.f32 %v4499, %v4659
        %v4661 = vpop.f32.mrb[0].mxu0
        %4662 = vmatprep.mubr.bf16.mxu0 0
        %4663 = vmatmul.mubr.bf16.gmra.mrb[0].mxu0 %v3552
        %v4664 = vpop.f32.mrb[0].mxu0
        %v4665 = vadd.f32 %v4504, %v4664
        %v4666 = vpop.f32.mrb[0].mxu0
        %v4667 = vpop.f32.mrb[0].mxu0
        %v4668 = vadd.f32 %v4507, %v4667
        %v4669 = vpop.f32.mrb[0].mxu0
        %4670 = vmatprep.mubr.bf16.mxu0 0
        %4671 = vmatmul.mubr.bf16.gmra.mrb[0].mxu0 %v3555
        %v4672 = vpop.f32.mrb[0].mxu0
        %v4673 = vadd.f32 %v4512, %v4672
        %v4674 = vpop.f32.mrb[0].mxu0
        %v4675 = vpop.f32.mrb[0].mxu0
        %v4676 = vadd.f32 %v4515, %v4675
        %v4677 = vpop.f32.mrb[0].mxu0
        %4678 = vmatprep.mubr.bf16.mxu0 0
        %4679 = vmatmul.mubr.bf16.gmra.mrb[0].mxu0 %v3558
        %v4680 = vpop.f32.mrb[0].mxu0
        %v4681 = vadd.f32 %v4520, %v4680
        %v4682 = vpop.f32.mrb[0].mxu0
        %v4683 = vpop.f32.mrb[0].mxu0
        %v4684 = vadd.f32 %v4523, %v4683
        %v4685 = vpop.f32.mrb[0].mxu0
        %4686 = vdwg.mxu0
        %v4687 = vmax.f32 %v4561, 0.0
        %v4688 = vmax.f32 %v4564, 0.0
        %v4689 = vmax.f32 %v4569, 0.0
        %v4690 = vmax.f32 %v4572, 0.0
        %v4691 = vmax.f32 %v4577, 0.0
        %v4692 = vmax.f32 %v4580, 0.0
        %v4693 = vmax.f32 %v4585, 0.0
        %v4694 = vmax.f32 %v4588, 0.0
        %v4695 = vmax.f32 %v4593, 0.0
        %v4696 = vmax.f32 %v4596, 0.0
        %v4697 = vmax.f32 %v4601, 0.0
        %v4698 = vmax.f32 %v4604, 0.0
        %v4699 = vmax.f32 %v4609, 0.0
        %v4700 = vmax.f32 %v4612, 0.0
        %v4701 = vmax.f32 %v4617, 0.0
        %v4702 = vmax.f32 %v4620, 0.0
        %v4703 = vmax.f32 %v4625, 0.0
        %v4704 = vmax.f32 %v4628, 0.0
        %v4705 = vmax.f32 %v4633, 0.0
        %v4706 = vmax.f32 %v4636, 0.0
        %v4707 = vmax.f32 %v4641, 0.0
        %v4708 = vmax.f32 %v4644, 0.0
        %v4709 = vmax.f32 %v4649, 0.0
        %v4710 = vmax.f32 %v4652, 0.0
        %v4711 = vmax.f32 %v4657, 0.0
        %v4712 = vmax.f32 %v4660, 0.0
        %v4713 = vmax.f32 %v4665, 0.0
        %v4714 = vmax.f32 %v4668, 0.0
        %v4715 = vmax.f32 %v4673, 0.0
        %v4716 = vmax.f32 %v4676, 0.0
        %v4717 = vmax.f32 %v4681, 0.0
        %v4718 = vmax.f32 %v4684, 0.0
        %4719 = vxpose.xlu0.b32.start [1/16] %v4687, 128
        %4720 = vxpose.xlu0.b32.cont [2/16] %v4688, 128
        %4721 = vxpose.xlu0.b32.cont [3/16] %v4689, 128
        %4722 = vxpose.xlu0.b32.cont [4/16] %v4690, 128
        %4723 = vxpose.xlu0.b32.cont [5/16] %v4691, 128
        %4724 = vxpose.xlu0.b32.cont [6/16] %v4692, 128
        %4725 = vxpose.xlu0.b32.cont [7/16] %v4693, 128
        %4726 = vxpose.xlu0.b32.cont [8/16] %v4694, 128
        %4727 = vxpose.xlu0.b32.cont [9/16] %v4695, 128
        %4728 = vxpose.xlu0.b32.cont [10/16] %v4696, 128
        %4729 = vxpose.xlu0.b32.cont [11/16] %v4697, 128
        %4730 = vxpose.xlu0.b32.cont [12/16] %v4698, 128
        %4731 = vxpose.xlu0.b32.cont [13/16] %v4699, 128
        %4732 = vxpose.xlu0.b32.cont [14/16] %v4700, 128
        %4733 = vxpose.xlu0.b32.cont [15/16] %v4701, 128
        %4734 = vxpose.xlu0.b32.end [16/16] %v4702, 128
        %v4735 = vpop.trf.xlu0
        %v4736 = vpop.trf.xlu0
        %v4737 = vpop.trf.xlu0
        %v4738 = vpop.trf.xlu0
        %v4739 = vpop.trf.xlu0
        %v4740 = vpop.trf.xlu0
        %v4741 = vpop.trf.xlu0
        %v4742 = vpop.trf.xlu0
        %v4743 = vpop.trf.xlu0
        %v4744 = vpop.trf.xlu0
        %v4745 = vpop.trf.xlu0
        %v4746 = vpop.trf.xlu0
        %v4747 = vpop.trf.xlu0
        %v4748 = vpop.trf.xlu0
        %v4749 = vpop.trf.xlu0
        %v4750 = vpop.trf.xlu0
        %4751 = vxpose.xlu0.b32.start [1/16] %v4703, 128
        %4752 = vxpose.xlu0.b32.cont [2/16] %v4704, 128
        %4753 = vxpose.xlu0.b32.cont [3/16] %v4705, 128
        %4754 = vxpose.xlu0.b32.cont [4/16] %v4706, 128
        %4755 = vxpose.xlu0.b32.cont [5/16] %v4707, 128
        %4756 = vxpose.xlu0.b32.cont [6/16] %v4708, 128
        %4757 = vxpose.xlu0.b32.cont [7/16] %v4709, 128
        %4758 = vxpose.xlu0.b32.cont [8/16] %v4710, 128
        %4759 = vxpose.xlu0.b32.cont [9/16] %v4711, 128
        %4760 = vxpose.xlu0.b32.cont [10/16] %v4712, 128
        %4761 = vxpose.xlu0.b32.cont [11/16] %v4713, 128
        %4762 = vxpose.xlu0.b32.cont [12/16] %v4714, 128
        %4763 = vxpose.xlu0.b32.cont [13/16] %v4715, 128
        %4764 = vxpose.xlu0.b32.cont [14/16] %v4716, 128
        %4765 = vxpose.xlu0.b32.cont [15/16] %v4717, 128
        %4766 = vxpose.xlu0.b32.end [16/16] %v4718, 128
        %v4767 = vpop.trf.xlu0
        %v4768 = vpop.trf.xlu0
        %v4769 = vpop.trf.xlu0
        %v4770 = vpop.trf.xlu0
        %v4771 = vpop.trf.xlu0
        %v4772 = vpop.trf.xlu0
        %v4773 = vpop.trf.xlu0
        %v4774 = vpop.trf.xlu0
        %v4775 = vpop.trf.xlu0
        %v4776 = vpop.trf.xlu0
        %v4777 = vpop.trf.xlu0
        %v4778 = vpop.trf.xlu0
        %v4779 = vpop.trf.xlu0
        %v4780 = vpop.trf.xlu0
        %v4781 = vpop.trf.xlu0
        %v4782 = vpop.trf.xlu0
        %4783 = vst [vmem:[%s163] sm:$0xff] %v4735
        %4784 = vst [vmem:[%s163 + $0x8] sm:$0xff] %v4767
        %4785 = vst [vmem:[%s163 + $0x10] sm:$0xff] %v4736
        %4786 = vst [vmem:[%s163 + $0x18] sm:$0xff] %v4768
        %4787 = vst [vmem:[%s163 + $0x20] sm:$0xff] %v4737
        %4788 = vst [vmem:[%s163 + $0x28] sm:$0xff] %v4769
        %4789 = vst [vmem:[%s163 + $0x30] sm:$0xff] %v4738
        %4790 = vst [vmem:[%s163 + $0x38] sm:$0xff] %v4770
        %4791 = vst [vmem:[%s163 + $0x40] sm:$0xff] %v4739
        %4792 = vst [vmem:[%s163 + $0x48] sm:$0xff] %v4771
        %4793 = vst [vmem:[%s163 + $0x50] sm:$0xff] %v4740
        %4794 = vst [vmem:[%s163 + $0x58] sm:$0xff] %v4772
        %4795 = vst [vmem:[%s163 + $0x60] sm:$0xff] %v4741
        %4796 = vst [vmem:[%s163 + $0x68] sm:$0xff] %v4773
        %4797 = vst [vmem:[%s163 + $0x70] sm:$0xff] %v4742
        %4798 = vst [vmem:[%s163 + $0x78] sm:$0xff] %v4774
        %s4799 = sand.u32 %s93, 1
        %s4800 = scalar_lea.sflag [#allocation3], %s4799
        %s4801 = sand.u32 %s93, 1
        %s4802 = smul.addr %s4801, 128
        %s4803 = scalar_lea.vmem [#allocation2], %s4802
        // Predicated region
        $region33: #{tpu_custom_call.1} parent=31 // pred_check
          %p4804 = pneg %p103
        $region34: #{tpu_custom_call.1} parent=31 // pred_check_branch
          %4806 = sbr.rel (%p4804) target = $region36
        $region35: #{tpu_custom_call.1} parent=31 // pred_region
          %s4808 = ssub.s32 2048, 2048
          %4809 = vsyncadd %s4800, %s4808
          %s4810 = smul.addr %s17, 16
          %s4811 = smul.addr %s4810, 128
          %s4812 = scalar_lea.hbm %s3, %s4811
          %s4813 = sshll.u32 %s4803, 4
          %s4814 = int_to_ptr.vmem [resolvable:$true] %s4813
          %4819 = dma.vmem_to_hbm [thread:$0]  %s4814, 2048, %s4812, %s4800, 256, 256, 16
        $region36: #{tpu_custom_call.1} parent=31 // pred_fallthru
          _
      $region32: #{tpu_custom_call.1} parent=5 // pred_fallthru
        _
      %p4820 = scmp.le.s32.totalorder 2, %s12
      // Predicated region
      $region37: #{tpu_custom_call.1} parent=5 // pred_check
        %p4821 = pneg %p4820
      $region38: #{tpu_custom_call.1} parent=5 // pred_check_branch
        %4823 = sbr.rel (%p4821) target = $region40
      $region39: #{tpu_custom_call.1} parent=5 // pred_region
        %s4824 = ssub.s32 %s12, 2
        // Predicated region
        $region41: #{tpu_custom_call.1} parent=39 // pred_check
          %p4825 = pneg %p109
        $region42: #{tpu_custom_call.1} parent=39 // pred_check_branch
          %4827 = sbr.rel (%p4825) target = $region44
        $region43: #{tpu_custom_call.1} parent=39 // pred_region
          %s4828 = sand.u32 %s94, 1
          %s4829 = scalar_lea.sflag [#allocation3], %s4828
          %s4830 = sand.u32 %s94, 1
          %s4831 = smul.addr %s4830, 128
          %s4832 = scalar_lea.vmem [#allocation2], %s4831
          %4833 = dma.done %s4829, 2048
        $region44: #{tpu_custom_call.1} parent=39 // pred_fallthru
          _
      $region40: #{tpu_custom_call.1} parent=5 // pred_fallthru
        _
    $region6: #{tpu_custom_call.1} parent=1 // loop_footer
      %s16 = sadd.s32 1, %s12
    $region7: #{tpu_custom_call.1} parent=1 // loop_footer_branch
      %11 = sbr.rel target = $region3
    $region8: #{tpu_custom_call.1} parent=1 // loop_exit
      _
    %4834 = vsyncpa [#allocation3], 1
    %s4835 = scalar_lea.sflag [#allocation3], 1
    %4836 = vsyncpa %s4835, 1

</llo_original>
